<compile_context>
chip_gen: v7x
topology: tpu7x:2x2x1
jax: 0.10.0
libtpu: 0.0.40
codegen_flags: <defaults>
</compile_context>

<pallas_src>
import math

import jax
import jax.numpy as jnp
from jax.experimental import pallas as pl
from jax.experimental.pallas import tpu as pltpu

H = 32        # config.hidden
DH = 128      # Dense() internal hidden
NV = 3        # views: user / app / userlog
NH = 4        # classification heads (dense1..dense4)
NC = 2        # classes per head
TB = 128      # batch rows per grid step
NEG = -1e30   # finite stand-in for -inf in the masked softmax

# ---- packed input slab X lane layout (X_L = 128 lanes) ----
X_HX = 0                   # [0, 96)   lane-packed hiddens  [user | app | userlog]
X_VM = NV * H              # [96, 100) raw 4-column view mask
X_LAB = X_VM + 4           # [100,104) labels1..4 as float
X_VALID = X_LAB + NH       # [104,105) 1.0 for real rows, 0.0 for pad rows
X_L = 128

# ---- WK (layer-1, K = H = 32) lane offsets ----
O_HEADA = 0                # head_wa   : [   0,  512)
O_DECA = NH * DH           # dec_wa    : [ 512,  896)
O_DSA = O_DECA + NV * DH   # dense_wa  : [ 896, 1024)
WKL = O_DSA + DH           # 1024

# ---- W2 (everything else) lane offsets, rows = 512 ----
O_HEADB = 0                # head_wb class-major : rows 0:512, lanes [  0,   8)
O_DECB = 128               # dec_wb  block-diag  : rows 0:384, lanes [128, 224)
O_DSB = 224                # dense_wb            : rows 0:128, lanes [224, 256)
O_A1W1 = 256               # attn1 w1 block-diag : rows 0: 96, lanes [256, 352)
O_A1W2 = 352               # attn1 w2 block-diag : rows 0: 96, lanes [352, 355)
O_A2W1 = 384               # attn2 w1 block-diag : rows 0: 96, lanes [384, 480)
O_A2W2 = 480               # attn2 w2 block-diag : rows 0: 96, lanes [480, 483)
W2R = NH * DH              # 512 rows
W2L = 512                  # 512 lanes

# ---- BIAS lane offsets ----
OB_HEAD = 0                # head layer-1 bias   : [   0,  512)
OB_DEC = 512               # dec  layer-1 bias   : [ 512,  896)
OB_DS = 896                # dense layer-1 bias  : [ 896, 1024)
OB2_DEC = 1024             # dec  layer-2 bias   : [1024, 1120)
OB2_DS = 1120              # dense layer-2 bias  : [1120, 1152)
OB2_HEAD = 1152            # head layer-2 bias (class-major) : [1152, 1160)
BL = 1160

OUT_L = 16                 # lanes 0..7 logits (class-major), lane 8 per-row loss, rest 0


def _gelu(x):
    # exactly the formula in the PyTorch GeLU module
    return 0.5 * x * (1.0 + jnp.tanh(x * 0.7978845608 * (1.0 + 0.044715 * x * x)))


def _kernel(x_ref, wk_ref, w2_ref, b_ref, out_ref):
    f32, bf16 = jnp.float32, jnp.bfloat16
    x = x_ref[...]                                        # (TB, 128) f32
    tb = x.shape[0]

    hx = x[:, X_HX:X_HX + NV * H]                         # (TB, 96) lane-packed hiddens
    vm4 = x[:, X_VM:X_VM + 4]                             # (TB, 4)  raw view mask
    lab = x[:, X_LAB:X_LAB + NH]                          # (TB, 4)  labels as float
    valid = x[:, X_VALID:X_VALID + 1]                     # (TB, 1)

    # ----- get_3view_mask -----
    m0 = vm4[:, 0:1]
    m1 = (vm4[:, 1:2] + vm4[:, 2:3] >= 1.0).astype(f32)
    m2 = vm4[:, 3:4]
    mask3 = jnp.concatenate([m0, m1, m2], axis=1)         # (TB, 3)

    hx_b = hx.astype(bf16)

    # ----- MaskMlpAttention #1 (masked) via block-diagonal weights -----
    proj1 = jnp.tanh(jnp.dot(hx_b, w2_ref[0:NV * H, O_A1W1:O_A1W1 + NV * H],
                             preferred_element_type=f32))                       # (TB, 96)
    s1 = jnp.dot(proj1.astype(bf16), w2_ref[0:NV * H, O_A1W2:O_A1W2 + NV],
                 preferred_element_type=f32)                                    # (TB, 3)
    s1 = jnp.where(mask3 > 0.0, s1, NEG)
    e1 = jnp.exp(s1 - jnp.max(s1, axis=-1, keepdims=True))
    w1 = e1 * pl.reciprocal(jnp.sum(e1, axis=-1, keepdims=True), approx=True)   # (TB, 3)
    hidden = (w1[:, 0:1] * hx[:, 0:H]
              + w1[:, 1:2] * hx[:, H:2 * H]
              + w1[:, 2:3] * hx[:, 2 * H:3 * H])                                # (TB, H)

    # ----- three decoders fused: Linear -> GeLU -> block-diag Linear -----
    dec_h = _gelu(jnp.dot(hidden.astype(bf16), wk_ref[:, O_DECA:O_DECA + NV * DH],
                          preferred_element_type=f32)
                  + b_ref[:, OB_DEC:OB_DEC + NV * DH])                          # (TB, 384)
    gens = (jnp.dot(dec_h.astype(bf16), w2_ref[0:NV * DH, O_DECB:O_DECB + NV * H],
                    preferred_element_type=f32)
            + b_ref[:, OB2_DEC:OB2_DEC + NV * H])                               # (TB, 96)

    # ----- rebuild loss: one lane-dense masked reduction (per-row, /H only) -----
    d = hx - gens
    mexp = jnp.concatenate(
        [jnp.broadcast_to(mask3[:, v:v + 1], (tb, H)) for v in range(NV)], axis=1)
    reb_row = jnp.sum(d * d * mexp, axis=-1, keepdims=True) * (1.0 / H)         # (TB, 1)

    # ----- MaskMlpAttention #2 (no mask) on the generated views -----
    gens_b = gens.astype(bf16)
    proj2 = jnp.tanh(jnp.dot(gens_b, w2_ref[0:NV * H, O_A2W1:O_A2W1 + NV * H],
                             preferred_element_type=f32))
    s2 = jnp.dot(proj2.astype(bf16), w2_ref[0:NV * H, O_A2W2:O_A2W2 + NV],
                 preferred_element_type=f32)                                    # (TB, 3)
    e2 = jnp.exp(s2 - jnp.max(s2, axis=-1, keepdims=True))
    w2a = e2 * pl.reciprocal(jnp.sum(e2, axis=-1, keepdims=True), approx=True)
    hgen = (w2a[:, 0:1] * gens[:, 0:H]
            + w2a[:, 1:2] * gens[:, H:2 * H]
            + w2a[:, 2:3] * gens[:, 2 * H:3 * H])                               # (TB, H)

    # ----- residual then self.dense -----
    hres = hidden + hgen
    dh = _gelu(jnp.dot(hres.astype(bf16), wk_ref[:, O_DSA:O_DSA + DH],
                       preferred_element_type=f32)
               + b_ref[:, OB_DS:OB_DS + DH])                                    # (TB, 128)
    hid2 = (jnp.dot(dh.astype(bf16), w2_ref[0:DH, O_DSB:O_DSB + H],
                    preferred_element_type=f32)
            + b_ref[:, OB2_DS:OB2_DS + H])                                      # (TB, H)

    # ----- 4 classification heads fused (class-major lane packing) -----
    hh = _gelu(jnp.dot(hid2.astype(bf16), wk_ref[:, O_HEADA:O_HEADA + NH * DH],
                       preferred_element_type=f32)
               + b_ref[:, OB_HEAD:OB_HEAD + NH * DH])                           # (TB, 512)
    logits = (jnp.dot(hh.astype(bf16), w2_ref[:, O_HEADB:O_HEADB + NH * NC],
                      preferred_element_type=f32)
              + b_ref[:, OB2_HEAD:OB2_HEAD + NH * NC])                          # (TB, 8)

    # ----- vectorized cross-entropy over all 4 heads at once (labels in {0,1}) -----
    y0 = logits[:, 0:NH]                                  # class-0 logits, heads 1..4
    y1 = logits[:, NH:2 * NH]                             # class-1 logits, heads 1..4
    mx = jnp.maximum(y0, y1)
    lse = mx + jnp.log(jnp.exp(y0 - mx) + jnp.exp(y1 - mx))
    tgt = jnp.where(lab > 0.5, y1, y0)
    ce_row = jnp.sum(lse - tgt, axis=-1, keepdims=True)                         # (TB, 1)

    loss_row = (ce_row + reb_row) * valid                 # pad rows contribute 0
    out_ref[...] = jnp.concatenate(
        [logits, loss_row, jnp.zeros((tb, OUT_L - NH * NC - 1), f32)], axis=1)


def mask_multiview_generate(hiddens, view_mask, labels, pp, tile_b=TB):
    """hiddens: NV x (B, H) f32; view_mask: (B, 4) f32; labels: NH x (B,) int32."""
    f32 = jnp.float32
    b0 = hiddens[0].shape[0]

    # pack everything per-row into one (B, 128) slab
    hx = jnp.concatenate(hiddens, axis=1).astype(f32)                  # (B, 96)
    lab = jnp.stack(labels, axis=1).astype(f32)                        # (B, 4)
    valid = jnp.ones((b0, 1), f32)
    pad_lanes = X_L - (NV * H + 4 + NH + 1)
    x = jnp.concatenate([hx, view_mask.astype(f32), lab, valid,
                         jnp.zeros((b0, pad_lanes), f32)], axis=1)     # (B, 128)

    bp = -(-b0 // tile_b) * tile_b
    if bp != b0:
        x = jnp.pad(x, ((0, bp - b0), (0, 0)))
    nt = bp // tile_b

    per_row_mm = 2 * (NV * H * (NV * H) + NV * H * NV                  # attention 1
                      + H * (NV * DH) + (NV * DH) * (NV * H)           # fused decoders
                      + NV * H * (NV * H) + NV * H * NV                # attention 2
                      + H * DH + DH * H                                # self.dense
                      + H * (NH * DH) + (NH * DH) * (NH * NC))         # fused heads
    flops = bp * per_row_mm
    transcendentals = bp * (2 * NV * H + NV * DH + DH + NH * DH + 2 * NV + 3 * NH)
    bytes_accessed = (int(x.size) * 4 + int(pp["wk"].size) * 2
                      + int(pp["w2"].size) * 2 + int(pp["bias"].size) * 4
                      + bp * OUT_L * 4)

    fn = pl.pallas_call(
        _kernel,
        out_shape=jax.ShapeDtypeStruct((bp, OUT_L), f32),
        grid_spec=pltpu.PrefetchScalarGridSpec(
            num_scalar_prefetch=0,
            grid=(nt,),
            in_specs=[pl.BlockSpec((tile_b, X_L), lambda i: (i, 0)),
                      pl.BlockSpec((H, WKL), lambda i: (0, 0)),
                      pl.BlockSpec((W2R, W2L), lambda i: (0, 0)),
                      pl.BlockSpec((1, BL), lambda i: (0, 0))],
            out_specs=pl.BlockSpec((tile_b, OUT_L), lambda i: (i, 0))),
        compiler_params=pltpu.CompilerParams(
            dimension_semantics=("parallel",)),
        cost_estimate=pl.CostEstimate(flops=flops,
                                      transcendentals=transcendentals,
                                      bytes_accessed=bytes_accessed),
    )
    packed = fn(x, pp["wk"], pp["w2"], pp["bias"])

    loss = jnp.sum(packed[:, NH * NC]) / b0                            # pad rows are 0
    logits = packed[:b0, 0:NH * NC]                                    # class-major
    ys = tuple(jnp.stack([logits[:, hd], logits[:, NH + hd]], axis=1)  # (B, 2) per head
               for hd in range(NH))
    return (loss,) + ys


# -------------------- deterministic parameter construction --------------------

def _xavier(key, fi, fo):
    lim = math.sqrt(6.0 / (fi + fo))
    return jax.random.uniform(key, (fi, fo), jnp.float32, -lim, lim)


def _bias(key, fi, n):
    b = 1.0 / math.sqrt(fi)
    return jax.random.uniform(key, (1, n), jnp.float32, -b, b)


def make_packed_params(key):
    ks = iter(jax.random.split(key, 64))
    # attention pools: Linear(H, H, bias=False) + Linear(H, 1, bias=False)
    a1_w1 = _xavier(next(ks), H, H)
    a1_w2 = _xavier(next(ks), H, 1)
    a2_w1 = _xavier(next(ks), H, H)
    a2_w2 = _xavier(next(ks), H, 1)
    # three decoders: Dense(H, H) = Linear(H,128) -> GeLU -> Dropout(0) -> Linear(128,H)
    dec_wa = [_xavier(next(ks), H, DH) for _ in range(NV)]
    dec_ba = [_bias(next(ks), H, DH) for _ in range(NV)]
    dec_wb = [_xavier(next(ks), DH, H) for _ in range(NV)]
    dec_bb = [_bias(next(ks), DH, H) for _ in range(NV)]
    # self.dense: Dense(H, H)
    dsa, dsab = _xavier(next(ks), H, DH), _bias(next(ks), H, DH)
    dsb, dsbb = _xavier(next(ks), DH, H), _bias(next(ks), DH, H)
    # four heads dense1..dense4: Dense(H, 2)
    hwa = [_xavier(next(ks), H, DH) for _ in range(NH)]
    hba = [_bias(next(ks), H, DH) for _ in range(NH)]
    hwb = [_xavier(next(ks), DH, NC) for _ in range(NH)]
    hbb = [_bias(next(ks), DH, NC) for _ in range(NH)]

    # --- WK: layer-1 (K = H) weights lane-packed ---
    wk = jnp.concatenate([jnp.concatenate(hwa, axis=1),     # [   0,  512)
                          jnp.concatenate(dec_wa, axis=1),  # [ 512,  896)
                          dsa], axis=1)                     # [ 896, 1024)

    # --- W2: everything else at fixed (row, lane) offsets ---
    w2 = jnp.zeros((W2R, W2L), jnp.float32)
    for hd in range(NH):                                    # head_wb, class-major lanes
        for c in range(NC):
            w2 = w2.at[hd * DH:(hd + 1) * DH, O_HEADB + c * NH + hd].set(hwb[hd][:, c])
    for v in range(NV):                                     # dec_wb block-diagonal
        w2 = w2.at[v * DH:(v + 1) * DH, O_DECB + v * H:O_DECB + (v + 1) * H].set(dec_wb[v])
    w2 = w2.at[0:DH, O_DSB:O_DSB + H].set(dsb)              # dense second layer
    for v in range(NV):                                     # both attention pools
        w2 = w2.at[v * H:(v + 1) * H, O_A1W1 + v * H:O_A1W1 + (v + 1) * H].set(a1_w1)
        w2 = w2.at[v * H:(v + 1) * H, O_A1W2 + v].set(a1_w2[:, 0])
        w2 = w2.at[v * H:(v + 1) * H, O_A2W1 + v * H:O_A2W1 + (v + 1) * H].set(a2_w1)
        w2 = w2.at[v * H:(v + 1) * H, O_A2W2 + v].set(a2_w2[:, 0])

    # --- BIAS: all biases lane-packed (head layer-2 bias in class-major order) ---
    hbb_cm = jnp.concatenate([hbb[hd][:, c:c + 1] for c in range(NC) for hd in range(NH)],
                             axis=1)                        # (1, 8)
    bias = jnp.concatenate([jnp.concatenate(hba, axis=1),   # [   0,  512)
                            jnp.concatenate(dec_ba, axis=1),  # [ 512,  896)
                            dsab,                           # [ 896, 1024)
                            jnp.concatenate(dec_bb, axis=1),  # [1024, 1120)
                            dsbb,                           # [1120, 1152)
                            hbb_cm], axis=1)                # [1152, 1160)

    return {"wk": wk.astype(jnp.bfloat16),
            "w2": w2.astype(jnp.bfloat16),
            "bias": bias}


if __name__ == "__main__":
    root = jax.random.PRNGKey(0)
    k_par, k_h, k_m, k_l = jax.random.split(root, 4)

    pp = make_packed_params(k_par)

    B = 256  # module's batch_size; two 128-row tiles

    # three per-view hidden states (stand-ins for the undefined encoder outputs)
    kh = jax.random.split(k_h, NV)
    hiddens = [jax.random.normal(kh[i], (B, H), jnp.float32) for i in range(NV)]

    # raw 4-column view mask; force column 0 on so every row has >= 1 valid view
    vm = jax.random.bernoulli(k_m, 0.7, (B, 4)).astype(jnp.float32)
    vm = vm.at[:, 0].set(1.0)

    # labels1..4 in {0, 1}
    kl = jax.random.split(k_l, NH)
    labels = [jax.random.randint(kl[i], (B,), 0, NC, jnp.int32) for i in range(NH)]

    loss, y1, y2, y3, y4 = mask_multiview_generate(hiddens, vm, labels, pp)
    jax.block_until_ready((loss, y1, y2, y3, y4))
    print("KERNEL_OK")
</pallas_src>

<mosaic_0001>
module attributes {stable_mosaic.version = 11 : i64} {
  func.func @_kernel(%arg0: i32, %arg1: memref<128x128xf32, #tpu.memory_space<vmem>>, %arg2: memref<32x1024xbf16, #tpu.memory_space<vmem>>, %arg3: memref<512x512xbf16, #tpu.memory_space<vmem>>, %arg4: memref<1x1160xf32, #tpu.memory_space<vmem>>, %arg5: memref<128x16xf32, #tpu.memory_space<vmem>>) attributes {dimension_semantics = [#tpu.dimension_semantics<parallel>], iteration_bounds = array<i64: 2>, scalar_prefetch = 0 : i64, scratch_operands = 0 : i64, tpu.core_type = #tpu.core_type<tc>, window_params = [{transform_indices = @transform_0, window_bounds = array<i64: 128, 128>}, {pipeline_mode = #tpu.pipeline_mode<synchronous>, transform_indices = @transform_1, window_bounds = array<i64: 32, 1024>}, {pipeline_mode = #tpu.pipeline_mode<synchronous>, transform_indices = @transform_2, window_bounds = array<i64: 512, 512>}, {pipeline_mode = #tpu.pipeline_mode<synchronous>, transform_indices = @transform_3, window_bounds = array<i64: 1, 1160>}, {transform_indices = @transform_4, window_bounds = array<i64: 128, 16>}]} {
    %c0 = arith.constant 0 : index
    %c0_0 = arith.constant 0 : index
    %0 = vector.load %arg1[%c0, %c0_0] : memref<128x128xf32, #tpu.memory_space<vmem>>, vector<128x128xf32>
    %1 = vector.extract_strided_slice %0 {offsets = [0, 0], sizes = [128, 96], strides = [1, 1]} : vector<128x128xf32> to vector<128x96xf32>
    %2 = vector.extract_strided_slice %0 {offsets = [0, 96], sizes = [128, 4], strides = [1, 1]} : vector<128x128xf32> to vector<128x4xf32>
    %3 = vector.extract_strided_slice %0 {offsets = [0, 100], sizes = [128, 4], strides = [1, 1]} : vector<128x128xf32> to vector<128x4xf32>
    %4 = vector.extract_strided_slice %0 {offsets = [0, 104], sizes = [128, 1], strides = [1, 1]} : vector<128x128xf32> to vector<128x1xf32>
    %5 = vector.extract_strided_slice %2 {offsets = [0, 0], sizes = [128, 1], strides = [1, 1]} : vector<128x4xf32> to vector<128x1xf32>
    %6 = vector.extract_strided_slice %2 {offsets = [0, 1], sizes = [128, 1], strides = [1, 1]} : vector<128x4xf32> to vector<128x1xf32>
    %7 = vector.extract_strided_slice %2 {offsets = [0, 2], sizes = [128, 1], strides = [1, 1]} : vector<128x4xf32> to vector<128x1xf32>
    %8 = arith.addf %6, %7 : vector<128x1xf32>
    %cst = arith.constant 1.000000e+00 : f32
    %9 = vector.broadcast %cst : f32 to vector<128x1xf32>
    %10 = arith.cmpf oge, %8, %9 : vector<128x1xf32>
    %11 = arith.extui %10 : vector<128x1xi1> to vector<128x1xi32>
    %12 = arith.sitofp %11 : vector<128x1xi32> to vector<128x1xf32>
    %13 = vector.extract_strided_slice %2 {offsets = [0, 3], sizes = [128, 1], strides = [1, 1]} : vector<128x4xf32> to vector<128x1xf32>
    %14 = tpu.concatenate %5, %12, %13 in 1 : vector<128x1xf32>, vector<128x1xf32>, vector<128x1xf32> -> vector<128x3xf32>
    %15 = arith.truncf %1 : vector<128x96xf32> to vector<128x96xbf16>
    %c0_1 = arith.constant 0 : index
    %c256 = arith.constant 256 : index
    %16 = vector.load %arg3[%c0_1, %c256] : memref<512x512xbf16, #tpu.memory_space<vmem>>, vector<96x96xbf16>
    %cst_2 = arith.constant dense<0.000000e+00> : vector<128x96xf32>
    %17 = tpu.matmul %15, %16, %cst_2 {dimension_numbers = #tpu.dot_dimension_numbers<[1], [0], [0], [1], [0, 0, 1, 1], [], []>} : vector<128x96xbf16>, vector<96x96xbf16>, vector<128x96xf32> -> vector<128x96xf32>
    %18 = math.tanh %17 : vector<128x96xf32>
    %19 = arith.truncf %18 : vector<128x96xf32> to vector<128x96xbf16>
    %c0_3 = arith.constant 0 : index
    %c352 = arith.constant 352 : index
    %20 = vector.load %arg3[%c0_3, %c352] : memref<512x512xbf16, #tpu.memory_space<vmem>>, vector<96x3xbf16>
    %cst_4 = arith.constant dense<0.000000e+00> : vector<128x3xf32>
    %21 = tpu.matmul %19, %20, %cst_4 {dimension_numbers = #tpu.dot_dimension_numbers<[1], [0], [0], [1], [0, 0, 1, 1], [], []>} : vector<128x96xbf16>, vector<96x3xbf16>, vector<128x3xf32> -> vector<128x3xf32>
    %cst_5 = arith.constant 0.000000e+00 : f32
    %22 = vector.broadcast %cst_5 : f32 to vector<128x3xf32>
    %23 = arith.cmpf ogt, %14, %22 : vector<128x3xf32>
    %cst_6 = arith.constant -1.000000e+30 : f32
    %24 = vector.broadcast %cst_6 : f32 to vector<128x3xf32>
    %25 = arith.select %23, %21, %24 : vector<128x3xi1>, vector<128x3xf32>
    %cst_7 = arith.constant dense<0xFF800000> : vector<128xf32>
    %26 = vector.multi_reduction <maximumf>, %25, %cst_7 [1] : vector<128x3xf32> to vector<128xf32>
    %27 = vector.shape_cast %26 : vector<128xf32> to vector<128x1xf32>
    %28 = vector.broadcast %27 : vector<128x1xf32> to vector<128x3xf32>
    %29 = arith.subf %25, %28 : vector<128x3xf32>
    %30 = math.exp %29 : vector<128x3xf32>
    %cst_8 = arith.constant dense<0.000000e+00> : vector<128xf32>
    %31 = vector.multi_reduction <add>, %30, %cst_8 [1] : vector<128x3xf32> to vector<128xf32>
    %32 = vector.shape_cast %31 : vector<128xf32> to vector<128x1xf32>
    %33 = tpu.reciprocal %32 {approx = true} : vector<128x1xf32> -> vector<128x1xf32>
    %34 = vector.broadcast %33 : vector<128x1xf32> to vector<128x3xf32>
    %35 = arith.mulf %30, %34 : vector<128x3xf32>
    %36 = vector.extract_strided_slice %35 {offsets = [0, 0], sizes = [128, 1], strides = [1, 1]} : vector<128x3xf32> to vector<128x1xf32>
    %37 = vector.extract_strided_slice %1 {offsets = [0, 0], sizes = [128, 32], strides = [1, 1]} : vector<128x96xf32> to vector<128x32xf32>
    %38 = vector.broadcast %36 : vector<128x1xf32> to vector<128x32xf32>
    %39 = arith.mulf %38, %37 : vector<128x32xf32>
    %40 = vector.extract_strided_slice %35 {offsets = [0, 1], sizes = [128, 1], strides = [1, 1]} : vector<128x3xf32> to vector<128x1xf32>
    %41 = vector.extract_strided_slice %1 {offsets = [0, 32], sizes = [128, 32], strides = [1, 1]} : vector<128x96xf32> to vector<128x32xf32>
    %42 = vector.broadcast %40 : vector<128x1xf32> to vector<128x32xf32>
    %43 = arith.mulf %42, %41 : vector<128x32xf32>
    %44 = arith.addf %39, %43 : vector<128x32xf32>
    %45 = vector.extract_strided_slice %35 {offsets = [0, 2], sizes = [128, 1], strides = [1, 1]} : vector<128x3xf32> to vector<128x1xf32>
    %46 = vector.extract_strided_slice %1 {offsets = [0, 64], sizes = [128, 32], strides = [1, 1]} : vector<128x96xf32> to vector<128x32xf32>
    %47 = vector.broadcast %45 : vector<128x1xf32> to vector<128x32xf32>
    %48 = arith.mulf %47, %46 : vector<128x32xf32>
    %49 = arith.addf %44, %48 : vector<128x32xf32>
    %50 = arith.truncf %49 : vector<128x32xf32> to vector<128x32xbf16>
    %c0_9 = arith.constant 0 : index
    %c512 = arith.constant 512 : index
    %51 = vector.load %arg2[%c0_9, %c512] : memref<32x1024xbf16, #tpu.memory_space<vmem>>, vector<32x384xbf16>
    %cst_10 = arith.constant dense<0.000000e+00> : vector<128x384xf32>
    %52 = tpu.matmul %50, %51, %cst_10 {dimension_numbers = #tpu.dot_dimension_numbers<[1], [0], [0], [1], [0, 0, 1, 1], [], []>} : vector<128x32xbf16>, vector<32x384xbf16>, vector<128x384xf32> -> vector<128x384xf32>
    %c0_11 = arith.constant 0 : index
    %c512_12 = arith.constant 512 : index
    %53 = vector.load %arg4[%c0_11, %c512_12] : memref<1x1160xf32, #tpu.memory_space<vmem>>, vector<1x384xf32>
    %54 = vector.broadcast %53 : vector<1x384xf32> to vector<128x384xf32>
    %55 = arith.addf %52, %54 : vector<128x384xf32>
    %cst_13 = arith.constant 5.000000e-01 : f32
    %56 = vector.broadcast %cst_13 : f32 to vector<128x384xf32>
    %57 = arith.mulf %56, %55 : vector<128x384xf32>
    %cst_14 = arith.constant 0.797884583 : f32
    %58 = vector.broadcast %cst_14 : f32 to vector<128x384xf32>
    %59 = arith.mulf %55, %58 : vector<128x384xf32>
    %cst_15 = arith.constant 4.471500e-02 : f32
    %60 = vector.broadcast %cst_15 : f32 to vector<128x384xf32>
    %61 = arith.mulf %60, %55 : vector<128x384xf32>
    %62 = arith.mulf %61, %55 : vector<128x384xf32>
    %cst_16 = arith.constant 1.000000e+00 : f32
    %63 = vector.broadcast %cst_16 : f32 to vector<128x384xf32>
    %64 = arith.addf %63, %62 : vector<128x384xf32>
    %65 = arith.mulf %59, %64 : vector<128x384xf32>
    %66 = math.tanh %65 : vector<128x384xf32>
    %cst_17 = arith.constant 1.000000e+00 : f32
    %67 = vector.broadcast %cst_17 : f32 to vector<128x384xf32>
    %68 = arith.addf %67, %66 : vector<128x384xf32>
    %69 = arith.mulf %57, %68 : vector<128x384xf32>
    %70 = arith.truncf %69 : vector<128x384xf32> to vector<128x384xbf16>
    %c0_18 = arith.constant 0 : index
    %c128 = arith.constant 128 : index
    %71 = vector.load %arg3[%c0_18, %c128] : memref<512x512xbf16, #tpu.memory_space<vmem>>, vector<384x96xbf16>
    %cst_19 = arith.constant dense<0.000000e+00> : vector<128x96xf32>
    %72 = tpu.matmul %70, %71, %cst_19 {dimension_numbers = #tpu.dot_dimension_numbers<[1], [0], [0], [1], [0, 0, 1, 1], [], []>} : vector<128x384xbf16>, vector<384x96xbf16>, vector<128x96xf32> -> vector<128x96xf32>
    %c0_20 = arith.constant 0 : index
    %c1024 = arith.constant 1024 : index
    %73 = vector.load %arg4[%c0_20, %c1024] : memref<1x1160xf32, #tpu.memory_space<vmem>>, vector<1x96xf32>
    %74 = vector.broadcast %73 : vector<1x96xf32> to vector<128x96xf32>
    %75 = arith.addf %72, %74 : vector<128x96xf32>
    %76 = arith.subf %1, %75 : vector<128x96xf32>
    %77 = vector.extract_strided_slice %14 {offsets = [0, 0], sizes = [128, 1], strides = [1, 1]} : vector<128x3xf32> to vector<128x1xf32>
    %78 = vector.shape_cast %77 : vector<128x1xf32> to vector<128x1xf32>
    %79 = vector.broadcast %78 : vector<128x1xf32> to vector<128x32xf32>
    %80 = vector.extract_strided_slice %14 {offsets = [0, 1], sizes = [128, 1], strides = [1, 1]} : vector<128x3xf32> to vector<128x1xf32>
    %81 = vector.shape_cast %80 : vector<128x1xf32> to vector<128x1xf32>
    %82 = vector.broadcast %81 : vector<128x1xf32> to vector<128x32xf32>
    %83 = vector.extract_strided_slice %14 {offsets = [0, 2], sizes = [128, 1], strides = [1, 1]} : vector<128x3xf32> to vector<128x1xf32>
    %84 = vector.shape_cast %83 : vector<128x1xf32> to vector<128x1xf32>
    %85 = vector.broadcast %84 : vector<128x1xf32> to vector<128x32xf32>
    %86 = tpu.concatenate %79, %82, %85 in 1 : vector<128x32xf32>, vector<128x32xf32>, vector<128x32xf32> -> vector<128x96xf32>
    %87 = arith.mulf %76, %76 : vector<128x96xf32>
    %88 = arith.mulf %87, %86 : vector<128x96xf32>
    %cst_21 = arith.constant dense<0.000000e+00> : vector<128xf32>
    %89 = vector.multi_reduction <add>, %88, %cst_21 [1] : vector<128x96xf32> to vector<128xf32>
    %90 = vector.shape_cast %89 : vector<128xf32> to vector<128x1xf32>
    %cst_22 = arith.constant 3.125000e-02 : f32
    %91 = vector.broadcast %cst_22 : f32 to vector<128x1xf32>
    %92 = arith.mulf %90, %91 : vector<128x1xf32>
    %93 = arith.truncf %75 : vector<128x96xf32> to vector<128x96xbf16>
    %c0_23 = arith.constant 0 : index
    %c384 = arith.constant 384 : index
    %94 = vector.load %arg3[%c0_23, %c384] : memref<512x512xbf16, #tpu.memory_space<vmem>>, vector<96x96xbf16>
    %cst_24 = arith.constant dense<0.000000e+00> : vector<128x96xf32>
    %95 = tpu.matmul %93, %94, %cst_24 {dimension_numbers = #tpu.dot_dimension_numbers<[1], [0], [0], [1], [0, 0, 1, 1], [], []>} : vector<128x96xbf16>, vector<96x96xbf16>, vector<128x96xf32> -> vector<128x96xf32>
    %96 = math.tanh %95 : vector<128x96xf32>
    %97 = arith.truncf %96 : vector<128x96xf32> to vector<128x96xbf16>
    %c0_25 = arith.constant 0 : index
    %c480 = arith.constant 480 : index
    %98 = vector.load %arg3[%c0_25, %c480] : memref<512x512xbf16, #tpu.memory_space<vmem>>, vector<96x3xbf16>
    %cst_26 = arith.constant dense<0.000000e+00> : vector<128x3xf32>
    %99 = tpu.matmul %97, %98, %cst_26 {dimension_numbers = #tpu.dot_dimension_numbers<[1], [0], [0], [1], [0, 0, 1, 1], [], []>} : vector<128x96xbf16>, vector<96x3xbf16>, vector<128x3xf32> -> vector<128x3xf32>
    %cst_27 = arith.constant dense<0xFF800000> : vector<128xf32>
    %100 = vector.multi_reduction <maximumf>, %99, %cst_27 [1] : vector<128x3xf32> to vector<128xf32>
    %101 = vector.shape_cast %100 : vector<128xf32> to vector<128x1xf32>
    %102 = vector.broadcast %101 : vector<128x1xf32> to vector<128x3xf32>
    %103 = arith.subf %99, %102 : vector<128x3xf32>
    %104 = math.exp %103 : vector<128x3xf32>
    %cst_28 = arith.constant dense<0.000000e+00> : vector<128xf32>
    %105 = vector.multi_reduction <add>, %104, %cst_28 [1] : vector<128x3xf32> to vector<128xf32>
    %106 = vector.shape_cast %105 : vector<128xf32> to vector<128x1xf32>
    %107 = tpu.reciprocal %106 {approx = true} : vector<128x1xf32> -> vector<128x1xf32>
    %108 = vector.broadcast %107 : vector<128x1xf32> to vector<128x3xf32>
    %109 = arith.mulf %104, %108 : vector<128x3xf32>
    %110 = vector.extract_strided_slice %109 {offsets = [0, 0], sizes = [128, 1], strides = [1, 1]} : vector<128x3xf32> to vector<128x1xf32>
    %111 = vector.extract_strided_slice %75 {offsets = [0, 0], sizes = [128, 32], strides = [1, 1]} : vector<128x96xf32> to vector<128x32xf32>
    %112 = vector.broadcast %110 : vector<128x1xf32> to vector<128x32xf32>
    %113 = arith.mulf %112, %111 : vector<128x32xf32>
    %114 = vector.extract_strided_slice %109 {offsets = [0, 1], sizes = [128, 1], strides = [1, 1]} : vector<128x3xf32> to vector<128x1xf32>
    %115 = vector.extract_strided_slice %75 {offsets = [0, 32], sizes = [128, 32], strides = [1, 1]} : vector<128x96xf32> to vector<128x32xf32>
    %116 = vector.broadcast %114 : vector<128x1xf32> to vector<128x32xf32>
    %117 = arith.mulf %116, %115 : vector<128x32xf32>
    %118 = arith.addf %113, %117 : vector<128x32xf32>
    %119 = vector.extract_strided_slice %109 {offsets = [0, 2], sizes = [128, 1], strides = [1, 1]} : vector<128x3xf32> to vector<128x1xf32>
    %120 = vector.extract_strided_slice %75 {offsets = [0, 64], sizes = [128, 32], strides = [1, 1]} : vector<128x96xf32> to vector<128x32xf32>
    %121 = vector.broadcast %119 : vector<128x1xf32> to vector<128x32xf32>
    %122 = arith.mulf %121, %120 : vector<128x32xf32>
    %123 = arith.addf %118, %122 : vector<128x32xf32>
    %124 = arith.addf %49, %123 : vector<128x32xf32>
    %125 = arith.truncf %124 : vector<128x32xf32> to vector<128x32xbf16>
    %c0_29 = arith.constant 0 : index
    %c896 = arith.constant 896 : index
    %126 = vector.load %arg2[%c0_29, %c896] : memref<32x1024xbf16, #tpu.memory_space<vmem>>, vector<32x128xbf16>
    %cst_30 = arith.constant dense<0.000000e+00> : vector<128x128xf32>
    %127 = tpu.matmul %125, %126, %cst_30 {dimension_numbers = #tpu.dot_dimension_numbers<[1], [0], [0], [1], [0, 0, 1, 1], [], []>} : vector<128x32xbf16>, vector<32x128xbf16>, vector<128x128xf32> -> vector<128x128xf32>
    %c0_31 = arith.constant 0 : index
    %c896_32 = arith.constant 896 : index
    %128 = vector.load %arg4[%c0_31, %c896_32] : memref<1x1160xf32, #tpu.memory_space<vmem>>, vector<1x128xf32>
    %129 = vector.broadcast %128 : vector<1x128xf32> to vector<128x128xf32>
    %130 = arith.addf %127, %129 : vector<128x128xf32>
    %cst_33 = arith.constant 5.000000e-01 : f32
    %131 = vector.broadcast %cst_33 : f32 to vector<128x128xf32>
    %132 = arith.mulf %131, %130 : vector<128x128xf32>
    %cst_34 = arith.constant 0.797884583 : f32
    %133 = vector.broadcast %cst_34 : f32 to vector<128x128xf32>
    %134 = arith.mulf %130, %133 : vector<128x128xf32>
    %cst_35 = arith.constant 4.471500e-02 : f32
    %135 = vector.broadcast %cst_35 : f32 to vector<128x128xf32>
    %136 = arith.mulf %135, %130 : vector<128x128xf32>
    %137 = arith.mulf %136, %130 : vector<128x128xf32>
    %cst_36 = arith.constant 1.000000e+00 : f32
    %138 = vector.broadcast %cst_36 : f32 to vector<128x128xf32>
    %139 = arith.addf %138, %137 : vector<128x128xf32>
    %140 = arith.mulf %134, %139 : vector<128x128xf32>
    %141 = math.tanh %140 : vector<128x128xf32>
    %cst_37 = arith.constant 1.000000e+00 : f32
    %142 = vector.broadcast %cst_37 : f32 to vector<128x128xf32>
    %143 = arith.addf %142, %141 : vector<128x128xf32>
    %144 = arith.mulf %132, %143 : vector<128x128xf32>
    %145 = arith.truncf %144 : vector<128x128xf32> to vector<128x128xbf16>
    %c0_38 = arith.constant 0 : index
    %c224 = arith.constant 224 : index
    %146 = vector.load %arg3[%c0_38, %c224] : memref<512x512xbf16, #tpu.memory_space<vmem>>, vector<128x32xbf16>
    %cst_39 = arith.constant dense<0.000000e+00> : vector<128x32xf32>
    %147 = tpu.matmul %145, %146, %cst_39 {dimension_numbers = #tpu.dot_dimension_numbers<[1], [0], [0], [1], [0, 0, 1, 1], [], []>} : vector<128x128xbf16>, vector<128x32xbf16>, vector<128x32xf32> -> vector<128x32xf32>
    %c0_40 = arith.constant 0 : index
    %c1120 = arith.constant 1120 : index
    %148 = vector.load %arg4[%c0_40, %c1120] : memref<1x1160xf32, #tpu.memory_space<vmem>>, vector<1x32xf32>
    %149 = vector.broadcast %148 : vector<1x32xf32> to vector<128x32xf32>
    %150 = arith.addf %147, %149 : vector<128x32xf32>
    %151 = arith.truncf %150 : vector<128x32xf32> to vector<128x32xbf16>
    %c0_41 = arith.constant 0 : index
    %c0_42 = arith.constant 0 : index
    %152 = vector.load %arg2[%c0_41, %c0_42] : memref<32x1024xbf16, #tpu.memory_space<vmem>>, vector<32x512xbf16>
    %cst_43 = arith.constant dense<0.000000e+00> : vector<128x512xf32>
    %153 = tpu.matmul %151, %152, %cst_43 {dimension_numbers = #tpu.dot_dimension_numbers<[1], [0], [0], [1], [0, 0, 1, 1], [], []>} : vector<128x32xbf16>, vector<32x512xbf16>, vector<128x512xf32> -> vector<128x512xf32>
    %c0_44 = arith.constant 0 : index
    %c0_45 = arith.constant 0 : index
    %154 = vector.load %arg4[%c0_44, %c0_45] : memref<1x1160xf32, #tpu.memory_space<vmem>>, vector<1x512xf32>
    %155 = vector.broadcast %154 : vector<1x512xf32> to vector<128x512xf32>
    %156 = arith.addf %153, %155 : vector<128x512xf32>
    %cst_46 = arith.constant 5.000000e-01 : f32
    %157 = vector.broadcast %cst_46 : f32 to vector<128x512xf32>
    %158 = arith.mulf %157, %156 : vector<128x512xf32>
    %cst_47 = arith.constant 0.797884583 : f32
    %159 = vector.broadcast %cst_47 : f32 to vector<128x512xf32>
    %160 = arith.mulf %156, %159 : vector<128x512xf32>
    %cst_48 = arith.constant 4.471500e-02 : f32
    %161 = vector.broadcast %cst_48 : f32 to vector<128x512xf32>
    %162 = arith.mulf %161, %156 : vector<128x512xf32>
    %163 = arith.mulf %162, %156 : vector<128x512xf32>
    %cst_49 = arith.constant 1.000000e+00 : f32
    %164 = vector.broadcast %cst_49 : f32 to vector<128x512xf32>
    %165 = arith.addf %164, %163 : vector<128x512xf32>
    %166 = arith.mulf %160, %165 : vector<128x512xf32>
    %167 = math.tanh %166 : vector<128x512xf32>
    %cst_50 = arith.constant 1.000000e+00 : f32
    %168 = vector.broadcast %cst_50 : f32 to vector<128x512xf32>
    %169 = arith.addf %168, %167 : vector<128x512xf32>
    %170 = arith.mulf %158, %169 : vector<128x512xf32>
    %171 = arith.truncf %170 : vector<128x512xf32> to vector<128x512xbf16>
    %c0_51 = arith.constant 0 : index
    %c0_52 = arith.constant 0 : index
    %172 = vector.load %arg3[%c0_51, %c0_52] : memref<512x512xbf16, #tpu.memory_space<vmem>>, vector<512x8xbf16>
    %cst_53 = arith.constant dense<0.000000e+00> : vector<128x8xf32>
    %173 = tpu.matmul %171, %172, %cst_53 {dimension_numbers = #tpu.dot_dimension_numbers<[1], [0], [0], [1], [0, 0, 1, 1], [], []>} : vector<128x512xbf16>, vector<512x8xbf16>, vector<128x8xf32> -> vector<128x8xf32>
    %c0_54 = arith.constant 0 : index
    %c1152 = arith.constant 1152 : index
    %174 = vector.load %arg4[%c0_54, %c1152] : memref<1x1160xf32, #tpu.memory_space<vmem>>, vector<1x8xf32>
    %175 = vector.broadcast %174 : vector<1x8xf32> to vector<128x8xf32>
    %176 = arith.addf %173, %175 : vector<128x8xf32>
    %177 = vector.extract_strided_slice %176 {offsets = [0, 0], sizes = [128, 4], strides = [1, 1]} : vector<128x8xf32> to vector<128x4xf32>
    %178 = vector.extract_strided_slice %176 {offsets = [0, 4], sizes = [128, 4], strides = [1, 1]} : vector<128x8xf32> to vector<128x4xf32>
    %179 = arith.maximumf %177, %178 : vector<128x4xf32>
    %180 = arith.subf %177, %179 : vector<128x4xf32>
    %181 = math.exp %180 : vector<128x4xf32>
    %182 = arith.subf %178, %179 : vector<128x4xf32>
    %183 = math.exp %182 : vector<128x4xf32>
    %184 = arith.addf %181, %183 : vector<128x4xf32>
    %185 = math.log %184 : vector<128x4xf32>
    %186 = arith.addf %179, %185 : vector<128x4xf32>
    %cst_55 = arith.constant 5.000000e-01 : f32
    %187 = vector.broadcast %cst_55 : f32 to vector<128x4xf32>
    %188 = arith.cmpf ogt, %3, %187 : vector<128x4xf32>
    %189 = arith.select %188, %178, %177 : vector<128x4xi1>, vector<128x4xf32>
    %190 = arith.subf %186, %189 : vector<128x4xf32>
    %cst_56 = arith.constant dense<0.000000e+00> : vector<128xf32>
    %191 = vector.multi_reduction <add>, %190, %cst_56 [1] : vector<128x4xf32> to vector<128xf32>
    %192 = vector.shape_cast %191 : vector<128xf32> to vector<128x1xf32>
    %193 = arith.addf %192, %92 : vector<128x1xf32>
    %194 = arith.mulf %193, %4 : vector<128x1xf32>
    %cst_57 = arith.constant 0.000000e+00 : f32
    %195 = vector.broadcast %cst_57 : f32 to vector<128x7xf32>
    %196 = tpu.concatenate %176, %194, %195 in 1 : vector<128x8xf32>, vector<128x1xf32>, vector<128x7xf32> -> vector<128x16xf32>
    %c0_58 = arith.constant 0 : index
    %c0_59 = arith.constant 0 : index
    %197 = vector.load %arg5[%c0_58, %c0_59] : memref<128x16xf32, #tpu.memory_space<vmem>>, vector<128x16xf32>
    tpu.vector_store %arg5[%c0_58, %c0_59], %196 {strides = array<i32>} : memref<128x16xf32, #tpu.memory_space<vmem>>, vector<128x16xf32>,
    return
  }
  func.func @transform_0(%arg0: i32) -> (i32, i32) {
    %c0_i32 = arith.constant 0 : i32
    %c0_i32_0 = arith.constant 0 : i32
    return %arg0, %c0_i32 : i32, i32
  }
  func.func @transform_1(%arg0: i32) -> (i32, i32) {
    %c0_i32 = arith.constant 0 : i32
    %c0_i32_0 = arith.constant 0 : i32
    %c0_i32_1 = arith.constant 0 : i32
    return %c0_i32, %c0_i32_0 : i32, i32
  }
  func.func @transform_2(%arg0: i32) -> (i32, i32) {
    %c0_i32 = arith.constant 0 : i32
    %c0_i32_0 = arith.constant 0 : i32
    %c0_i32_1 = arith.constant 0 : i32
    return %c0_i32, %c0_i32_0 : i32, i32
  }
  func.func @transform_3(%arg0: i32) -> (i32, i32) {
    %c0_i32 = arith.constant 0 : i32
    %c0_i32_0 = arith.constant 0 : i32
    %c0_i32_1 = arith.constant 0 : i32
    return %c0_i32, %c0_i32_0 : i32, i32
  }
  func.func @transform_4(%arg0: i32) -> (i32, i32) {
    %c0_i32 = arith.constant 0 : i32
    %c0_i32_0 = arith.constant 0 : i32
    return %arg0, %c0_i32 : i32, i32
  }
}

</mosaic_0001>

<llo_original>
// kernel: tpu_custom_call.1
$region0: #{tpu_custom_call.1}
  #allocation0 [shape = 'u32[]', space=smem, size = 0x4, offset = 0x4, fixed_abs, tag = 'smem constant byte address 0x4 - core index']
  #allocation1 [shape = 'u32[144,128]{1,0:T(1,128)}', space=vmem, size = 0x12000, scoped, tag = 'internal scratch']
  %s0 = inlined_call_operand.hbm [shape: f32[256,128], index: 0, kind: input, shape index: {}]
  %s1 = inlined_call_operand.hbm [shape: bf16[32,1024], index: 1, kind: input, shape index: {}]
  %s2 = inlined_call_operand.hbm [shape: bf16[512,512], index: 2, kind: input, shape index: {}]
  %s3 = inlined_call_operand.vmem [shape: f32[1,1160], index: 3, kind: input, shape index: {}]
  %s4 = inlined_call_operand.vmem [shape: f32[256,16], index: 4, kind: output, shape index: {}]
  %s5 = sld [smem:[#allocation0]]
  $region61: #{tpu_custom_call.1} parent=0
    _
  %s7 = ssub.s32 1, %s5
  %s8 = scalar_select 0, %s7, %s5
  $region1: #{tpu_custom_call.1} parent=0
    #allocation2 [shape = 'u8[131072]{0}', space=vmem, size = 0x20000, scoped, tag = 'input window, operand 0']
    #allocation3 [shape = 's32[2]{0}', space=sflag, size = 0x8, scoped, tag = 'scoped memory for tpu_custom_call.1']
    #allocation4 [shape = 'u8[65536]{0}', space=vmem, size = 0x10000, scoped, tag = 'input window, operand 1, single buffered']
    #allocation5 [shape = 's32[1]{0}', space=sflag, size = 0x4, scoped, tag = 'scoped memory for tpu_custom_call.1']
    #allocation6 [shape = 'u8[524288]{0}', space=vmem, size = 0x80000, scoped, tag = 'input window, operand 2, single buffered']
    %9 = vsyncpa [#allocation3], 0
    %s10 = scalar_lea.sflag [#allocation3], 1
    %11 = vsyncpa %s10, 0
    %12 = vsyncpa [#allocation5], 0
    loop: start=0, step=1, limit=4
    $region2: #{tpu_custom_call.1} parent=1 // loop_pre_header
      _
    $region3: #{tpu_custom_call.1} parent=1 // loop_header
      %s14 = sphi 0, %s18
      %p15 = scmp.ge.s32.totalorder %s14, 4
      %s24 = sphi 0, %s26
      %s27 = sphi 0, %s24
      %s28 = sphi 0, %s27
      %s44 = sphi 0, %s28
      %s48 = sphi 0, %s48
      %s50 = sphi 0, %s48
      %s51 = sphi 0, %s50
      %s65 = sphi 0, %s51
      %s69 = sphi 0, %s69
      %s71 = sphi 0, %s69
      %s72 = sphi 0, %s71
      %s86 = sphi 0, %s72
      %s90 = sphi 0, %s90
      %s92 = sphi 0, %s90
      %s93 = sphi 0, %s92
      %s107 = sphi 0, %s93
      %s113 = sphi 0, %s115
      %s116 = sphi 0, %s113
      %s117 = sphi 0, %s116
      %s133 = sphi 0, %s117
    $region4: #{tpu_custom_call.1} parent=1 // loop_header_branch
      %17 = sbr.rel (%p15) target = $region8
    $region5: #{tpu_custom_call.1} parent=1 // loop_body
      %s19 = ssub.s32 %s14, 1
      %s20 = ssub.s32 %s14, 2
      %s21 = sadd.s32 %s14, 1
      %s22 = ssub.s32 %s14, %s21
      %p23 = scmp.eq.s32.totalorder %s22, 0
      %s25 = sadd.s32 %s24, 1
      %s26 = scalar_select %p23, %s24, %s25
      %p29 = pneg %p23
      %p30 = scmp.eq.s32.totalorder %s14, 1
      %p31 = por %p29, %p30
      %p32 = scmp.ne.s32.totalorder %s24, %s27
      %p33 = scmp.eq.s32.totalorder %s14, 0
      %p34 = por %p32, %p33
      %p35 = scmp.ne.s32.totalorder %s24, %s27
      %p36 = scmp.eq.s32.totalorder %s19, 1
      %p37 = por %p35, %p36
      %p38 = scmp.ne.s32.totalorder %s27, %s28
      %p39 = scmp.eq.s32.totalorder %s19, 0
      %p40 = por %p38, %p39
      %p41 = scmp.ne.s32.totalorder %s27, %s28
      %p42 = scmp.eq.s32.totalorder %s20, 1
      %p43 = por %p41, %p42
      %p45 = scmp.ne.s32.totalorder %s28, %s44
      %p46 = scmp.eq.s32.totalorder %s20, 0
      %p47 = por %p45, %p46
      %s49 = sadd.s32 %s48, 1
      %p52 = scmp.eq.s32.totalorder %s14, 1
      %p53 = scmp.ne.s32.totalorder %s48, %s50
      %p54 = scmp.eq.s32.totalorder %s14, 0
      %p55 = por %p53, %p54
      %p56 = scmp.ne.s32.totalorder %s48, %s50
      %p57 = scmp.eq.s32.totalorder %s19, 1
      %p58 = por %p56, %p57
      %p59 = scmp.ne.s32.totalorder %s50, %s51
      %p60 = scmp.eq.s32.totalorder %s19, 0
      %p61 = por %p59, %p60
      %p62 = scmp.ne.s32.totalorder %s50, %s51
      %p63 = scmp.eq.s32.totalorder %s20, 1
      %p64 = por %p62, %p63
      %p66 = scmp.ne.s32.totalorder %s51, %s65
      %p67 = scmp.eq.s32.totalorder %s20, 0
      %p68 = por %p66, %p67
      %s70 = sadd.s32 %s69, 1
      %p73 = scmp.eq.s32.totalorder %s14, 1
      %p74 = scmp.ne.s32.totalorder %s69, %s71
      %p75 = scmp.eq.s32.totalorder %s14, 0
      %p76 = por %p74, %p75
      %p77 = scmp.ne.s32.totalorder %s69, %s71
      %p78 = scmp.eq.s32.totalorder %s19, 1
      %p79 = por %p77, %p78
      %p80 = scmp.ne.s32.totalorder %s71, %s72
      %p81 = scmp.eq.s32.totalorder %s19, 0
      %p82 = por %p80, %p81
      %p83 = scmp.ne.s32.totalorder %s71, %s72
      %p84 = scmp.eq.s32.totalorder %s20, 1
      %p85 = por %p83, %p84
      %p87 = scmp.ne.s32.totalorder %s72, %s86
      %p88 = scmp.eq.s32.totalorder %s20, 0
      %p89 = por %p87, %p88
      %s91 = sadd.s32 %s90, 1
      %p94 = scmp.eq.s32.totalorder %s14, 1
      %p95 = scmp.ne.s32.totalorder %s90, %s92
      %p96 = scmp.eq.s32.totalorder %s14, 0
      %p97 = por %p95, %p96
      %p98 = scmp.ne.s32.totalorder %s90, %s92
      %p99 = scmp.eq.s32.totalorder %s19, 1
      %p100 = por %p98, %p99
      %p101 = scmp.ne.s32.totalorder %s92, %s93
      %p102 = scmp.eq.s32.totalorder %s19, 0
      %p103 = por %p101, %p102
      %p104 = scmp.ne.s32.totalorder %s92, %s93
      %p105 = scmp.eq.s32.totalorder %s20, 1
      %p106 = por %p104, %p105
      %p108 = scmp.ne.s32.totalorder %s93, %s107
      %p109 = scmp.eq.s32.totalorder %s20, 0
      %p110 = por %p108, %p109
      %s111 = ssub.s32 %s14, %s21
      %p112 = scmp.eq.s32.totalorder %s111, 0
      %s114 = sadd.s32 %s113, 1
      %s115 = scalar_select %p112, %s113, %s114
      %p118 = pneg %p112
      %p119 = scmp.eq.s32.totalorder %s14, 1
      %p120 = por %p118, %p119
      %p121 = scmp.ne.s32.totalorder %s113, %s116
      %p122 = scmp.eq.s32.totalorder %s14, 0
      %p123 = por %p121, %p122
      %p124 = scmp.ne.s32.totalorder %s113, %s116
      %p125 = scmp.eq.s32.totalorder %s19, 1
      %p126 = por %p124, %p125
      %p127 = scmp.ne.s32.totalorder %s116, %s117
      %p128 = scmp.eq.s32.totalorder %s19, 0
      %p129 = por %p127, %p128
      %p130 = scmp.ne.s32.totalorder %s116, %s117
      %p131 = scmp.eq.s32.totalorder %s20, 1
      %p132 = por %p130, %p131
      %p134 = scmp.ne.s32.totalorder %s117, %s133
      %p135 = scmp.eq.s32.totalorder %s20, 0
      %p136 = por %p134, %p135
      %p137 = scmp.le.s32.totalorder 1, %s14
      %p138 = scmp.lt.s32.totalorder %s14, 3
      %p139 = pnand %p137, %p138
      %p140 = pneg %p139
      // Predicated region
      $region9: #{tpu_custom_call.1} parent=5 // pred_check
        _
      $region10: #{tpu_custom_call.1} parent=5 // pred_check_branch
        %142 = sbr.rel (%p139) target = $region12
      $region11: #{tpu_custom_call.1} parent=5 // pred_region
        %s143 = ssub.s32 %s14, 1
        // Predicated region
        $region13: #{tpu_custom_call.1} parent=11 // pred_check
          %p144 = pneg %p61
        $region14: #{tpu_custom_call.1} parent=11 // pred_check_branch
          %146 = sbr.rel (%p144) target = $region16
        $region15: #{tpu_custom_call.1} parent=11 // pred_region
          %s148 = ssub.s32 2048, 2048
          %149 = vsyncadd [#allocation5], %s148
          %s150 = sshll.u32 [#allocation4], 4
          %s151 = int_to_ptr.vmem [resolvable:$true] %s150
          %156 = dma.hbm_to_vmem [thread:$0]  %s1, 2048, %s151, [#allocation5], 512, 512, 32
        $region16: #{tpu_custom_call.1} parent=11 // pred_fallthru
          _
        // Predicated region
        $region17: #{tpu_custom_call.1} parent=11 // pred_check
          %p157 = pneg %p82
        $region18: #{tpu_custom_call.1} parent=11 // pred_check_branch
          %159 = sbr.rel (%p157) target = $region20
        $region19: #{tpu_custom_call.1} parent=11 // pred_region
          %s161 = ssub.s32 16384, 16384
          %162 = vsyncadd [#allocation5], %s161
          %s163 = sshll.u32 [#allocation6], 4
          %s164 = int_to_ptr.vmem [resolvable:$true] %s163
          %169 = dma.hbm_to_vmem [thread:$0]  %s2, 16384, %s164, [#allocation5], 256, 256, 16
        $region20: #{tpu_custom_call.1} parent=11 // pred_fallthru
          _
        // Predicated region
        $region21: #{tpu_custom_call.1} parent=11 // pred_check
          %p170 = pneg %p103
        $region22: #{tpu_custom_call.1} parent=11 // pred_check_branch
          %172 = sbr.rel (%p170) target = $region24
        $region23: #{tpu_custom_call.1} parent=11 // pred_region
          _
        $region24: #{tpu_custom_call.1} parent=11 // pred_fallthru
          _
      $region12: #{tpu_custom_call.1} parent=5 // pred_fallthru
        _
      %p173 = scmp.lt.s32.totalorder %s14, 2
      // Predicated region
      $region25: #{tpu_custom_call.1} parent=5 // pred_check
        %p174 = pneg %p173
      $region26: #{tpu_custom_call.1} parent=5 // pred_check_branch
        %176 = sbr.rel (%p174) target = $region28
      $region27: #{tpu_custom_call.1} parent=5 // pred_region
        // Predicated region
        $region29: #{tpu_custom_call.1} parent=27 // pred_check
          %p177 = pneg %p34
        $region30: #{tpu_custom_call.1} parent=27 // pred_check_branch
          %179 = sbr.rel (%p177) target = $region32
        $region31: #{tpu_custom_call.1} parent=27 // pred_region
          %s180 = sand.u32 %s24, 1
          %s181 = scalar_lea.sflag [#allocation3], %s180
          %s182 = sand.u32 %s24, 1
          %s183 = smul.addr %s182, 128
          %s184 = scalar_lea.vmem [#allocation2], %s183
          %s185 = smul.u32 16, %s14
          %s187 = ssub.s32 2048, 2048
          %188 = vsyncadd %s181, %s187
          %s189 = smul.addr %s185, 128
          %s190 = scalar_lea.hbm %s0, %s189
          %s191 = sshll.u32 %s184, 4
          %s192 = int_to_ptr.vmem [resolvable:$true] %s191
          %197 = dma.hbm_to_vmem [thread:$0]  %s190, 2048, %s192, %s181, 128, 128, 8
        $region32: #{tpu_custom_call.1} parent=27 // pred_fallthru
          _
      $region28: #{tpu_custom_call.1} parent=5 // pred_fallthru
        _
      %p198 = scmp.le.s32.totalorder 1, %s14
      %p199 = scmp.lt.s32.totalorder %s14, 3
      %p200 = pnand %p198, %p199
      %p201 = pneg %p200
      // Predicated region
      $region33: #{tpu_custom_call.1} parent=5 // pred_check
        _
      $region34: #{tpu_custom_call.1} parent=5 // pred_check_branch
        %203 = sbr.rel (%p200) target = $region36
      $region35: #{tpu_custom_call.1} parent=5 // pred_region
        %s204 = ssub.s32 %s14, 1
        %s205 = sand.u32 %s27, 1
        %s206 = scalar_lea.sflag [#allocation3], %s205
        %s207 = sand.u32 %s27, 1
        %s208 = smul.addr %s207, 128
        %s209 = scalar_lea.vmem [#allocation2], %s208
        // Predicated region
        $region37: #{tpu_custom_call.1} parent=35 // pred_check
          %p210 = pneg %p40
        $region38: #{tpu_custom_call.1} parent=35 // pred_check_branch
          %212 = sbr.rel (%p210) target = $region40
        $region39: #{tpu_custom_call.1} parent=35 // pred_region
          %213 = dma.done %s206, 2048
        $region40: #{tpu_custom_call.1} parent=35 // pred_fallthru
          _
        // Predicated region
        $region41: #{tpu_custom_call.1} parent=35 // pred_check
          %p214 = pneg %p61
        $region42: #{tpu_custom_call.1} parent=35 // pred_check_branch
          %216 = sbr.rel (%p214) target = $region44
        $region43: #{tpu_custom_call.1} parent=35 // pred_region
          %217 = dma.done [#allocation5], 2048
        $region44: #{tpu_custom_call.1} parent=35 // pred_fallthru
          _
        // Predicated region
        $region45: #{tpu_custom_call.1} parent=35 // pred_check
          %p218 = pneg %p82
        $region46: #{tpu_custom_call.1} parent=35 // pred_check_branch
          %220 = sbr.rel (%p218) target = $region48
        $region47: #{tpu_custom_call.1} parent=35 // pred_region
          %221 = dma.done [#allocation5], 16384
        $region48: #{tpu_custom_call.1} parent=35 // pred_fallthru
          _
        %s222 = sand.u32 %s27, 1
        %s223 = scalar_lea.sflag [#allocation3], %s222
        %s224 = sand.u32 %s27, 1
        %s225 = smul.addr %s224, 128
        %s226 = scalar_lea.vmem [#allocation2], %s225
        %p227 = pneg %p40
        %p228 = pneg %p37
        %p229 = pneg %p61
        %p230 = pneg %p58
        %p231 = pneg %p82
        %p232 = pneg %p79
        %p233 = pneg %p103
        %p234 = pneg %p100
        %p235 = pneg %p129
        %p236 = pneg %p126
        %s237 = smul.u32 16, %s19
        %p238 = scmp.lt.s32.totalorder %s237, 31
        %s239 = scalar_select %p238, %s237, 31
        %s240 = smul.addr %s239, 8
        %s241 = scalar_lea.vmem %s4, %s240
        %s242 = smul.u32 16, %s19
        %s243 = smul.u32 16, %s19
        %p244 = scmp.lt.s32.totalorder %s243, 31
        %s245 = scalar_select %p244, %s243, 31
        %s246 = smul.addr %s245, 8
        %s247 = scalar_lea.vmem %s4, %s246
        %s248 = smul.u32 16, %s19
        %v250 = vld [vmem:[%s209] sm:$0xff]
        %v251 = vld [vmem:[%s209 + $0x8] sm:$0xff]
        %v252 = vld [vmem:[%s209 + $0x10] sm:$0xff]
        %v253 = vld [vmem:[%s209 + $0x18] sm:$0xff]
        %v254 = vld [vmem:[%s209 + $0x20] sm:$0xff]
        %v255 = vld [vmem:[%s209 + $0x28] sm:$0xff]
        %v256 = vld [vmem:[%s209 + $0x30] sm:$0xff]
        %v257 = vld [vmem:[%s209 + $0x38] sm:$0xff]
        %v258 = vld [vmem:[%s209 + $0x40] sm:$0xff]
        %v259 = vld [vmem:[%s209 + $0x48] sm:$0xff]
        %v260 = vld [vmem:[%s209 + $0x50] sm:$0xff]
        %v261 = vld [vmem:[%s209 + $0x58] sm:$0xff]
        %v262 = vld [vmem:[%s209 + $0x60] sm:$0xff]
        %v263 = vld [vmem:[%s209 + $0x68] sm:$0xff]
        %v264 = vld [vmem:[%s209 + $0x70] sm:$0xff]
        %v265 = vld [vmem:[%s209 + $0x78] sm:$0xff]
        %282 = vrot.lane.b32.xlu0 %v250, 127
        %v283 = vpop.permute.xlu0 %282
        %284 = vrot.lane.b32.xlu0 %v251, 127
        %v285 = vpop.permute.xlu0 %284
        %286 = vrot.lane.b32.xlu0 %v252, 127
        %v287 = vpop.permute.xlu0 %286
        %288 = vrot.lane.b32.xlu0 %v253, 127
        %v289 = vpop.permute.xlu0 %288
        %290 = vrot.lane.b32.xlu0 %v254, 127
        %v291 = vpop.permute.xlu0 %290
        %292 = vrot.lane.b32.xlu0 %v255, 127
        %v293 = vpop.permute.xlu0 %292
        %294 = vrot.lane.b32.xlu0 %v256, 127
        %v295 = vpop.permute.xlu0 %294
        %296 = vrot.lane.b32.xlu0 %v257, 127
        %v297 = vpop.permute.xlu0 %296
        %298 = vrot.lane.b32.xlu0 %v258, 127
        %v299 = vpop.permute.xlu0 %298
        %300 = vrot.lane.b32.xlu0 %v259, 127
        %v301 = vpop.permute.xlu0 %300
        %302 = vrot.lane.b32.xlu0 %v260, 127
        %v303 = vpop.permute.xlu0 %302
        %304 = vrot.lane.b32.xlu0 %v261, 127
        %v305 = vpop.permute.xlu0 %304
        %306 = vrot.lane.b32.xlu0 %v262, 127
        %v307 = vpop.permute.xlu0 %306
        %308 = vrot.lane.b32.xlu0 %v263, 127
        %v309 = vpop.permute.xlu0 %308
        %310 = vrot.lane.b32.xlu0 %v264, 127
        %v311 = vpop.permute.xlu0 %310
        %312 = vrot.lane.b32.xlu0 %v265, 127
        %v313 = vpop.permute.xlu0 %312
        %v330 = vadd.f32 %v250, %v283
        %v331 = vadd.f32 %v251, %v285
        %v332 = vadd.f32 %v252, %v287
        %v333 = vadd.f32 %v253, %v289
        %v334 = vadd.f32 %v254, %v291
        %v335 = vadd.f32 %v255, %v293
        %v336 = vadd.f32 %v256, %v295
        %v337 = vadd.f32 %v257, %v297
        %v338 = vadd.f32 %v258, %v299
        %v339 = vadd.f32 %v259, %v301
        %v340 = vadd.f32 %v260, %v303
        %v341 = vadd.f32 %v261, %v305
        %v342 = vadd.f32 %v262, %v307
        %v343 = vadd.f32 %v263, %v309
        %v344 = vadd.f32 %v264, %v311
        %v345 = vadd.f32 %v265, %v313
        %vm346 = vcmp.ge.f32.partialorder %v330, 1.0
        %vm347 = vcmp.ge.f32.partialorder %v331, 1.0
        %vm348 = vcmp.ge.f32.partialorder %v332, 1.0
        %vm349 = vcmp.ge.f32.partialorder %v333, 1.0
        %vm350 = vcmp.ge.f32.partialorder %v334, 1.0
        %vm351 = vcmp.ge.f32.partialorder %v335, 1.0
        %vm352 = vcmp.ge.f32.partialorder %v336, 1.0
        %vm353 = vcmp.ge.f32.partialorder %v337, 1.0
        %vm354 = vcmp.ge.f32.partialorder %v338, 1.0
        %vm355 = vcmp.ge.f32.partialorder %v339, 1.0
        %vm356 = vcmp.ge.f32.partialorder %v340, 1.0
        %vm357 = vcmp.ge.f32.partialorder %v341, 1.0
        %vm358 = vcmp.ge.f32.partialorder %v342, 1.0
        %vm359 = vcmp.ge.f32.partialorder %v343, 1.0
        %vm360 = vcmp.ge.f32.partialorder %v344, 1.0
        %vm361 = vcmp.ge.f32.partialorder %v345, 1.0
        %v362 = vsel %vm346, 1, 0
        %v363 = vsel %vm347, 1, 0
        %v364 = vsel %vm348, 1, 0
        %v365 = vsel %vm349, 1, 0
        %v366 = vsel %vm350, 1, 0
        %v367 = vsel %vm351, 1, 0
        %v368 = vsel %vm352, 1, 0
        %v369 = vsel %vm353, 1, 0
        %v370 = vsel %vm354, 1, 0
        %v371 = vsel %vm355, 1, 0
        %v372 = vsel %vm356, 1, 0
        %v373 = vsel %vm357, 1, 0
        %v374 = vsel %vm358, 1, 0
        %v375 = vsel %vm359, 1, 0
        %v376 = vsel %vm360, 1, 0
        %v377 = vsel %vm361, 1, 0
        %v378 = vcvt.s32.f32 %v362
        %v379 = vcvt.s32.f32 %v363
        %v380 = vcvt.s32.f32 %v364
        %v381 = vcvt.s32.f32 %v365
        %v382 = vcvt.s32.f32 %v366
        %v383 = vcvt.s32.f32 %v367
        %v384 = vcvt.s32.f32 %v368
        %v385 = vcvt.s32.f32 %v369
        %v386 = vcvt.s32.f32 %v370
        %v387 = vcvt.s32.f32 %v371
        %v388 = vcvt.s32.f32 %v372
        %v389 = vcvt.s32.f32 %v373
        %v390 = vcvt.s32.f32 %v374
        %v391 = vcvt.s32.f32 %v375
        %v392 = vcvt.s32.f32 %v376
        %v393 = vcvt.s32.f32 %v377
        %394 = vrot.lane.b32.xlu0 %v250, 32
        %v395 = vpop.permute.xlu0 %394
        %396 = vrot.lane.b32.xlu0 %v251, 32
        %v397 = vpop.permute.xlu0 %396
        %398 = vrot.lane.b32.xlu0 %v252, 32
        %v399 = vpop.permute.xlu0 %398
        %400 = vrot.lane.b32.xlu0 %v253, 32
        %v401 = vpop.permute.xlu0 %400
        %402 = vrot.lane.b32.xlu0 %v254, 32
        %v403 = vpop.permute.xlu0 %402
        %404 = vrot.lane.b32.xlu0 %v255, 32
        %v405 = vpop.permute.xlu0 %404
        %406 = vrot.lane.b32.xlu0 %v256, 32
        %v407 = vpop.permute.xlu0 %406
        %408 = vrot.lane.b32.xlu0 %v257, 32
        %v409 = vpop.permute.xlu0 %408
        %410 = vrot.lane.b32.xlu0 %v258, 32
        %v411 = vpop.permute.xlu0 %410
        %412 = vrot.lane.b32.xlu0 %v259, 32
        %v413 = vpop.permute.xlu0 %412
        %414 = vrot.lane.b32.xlu0 %v260, 32
        %v415 = vpop.permute.xlu0 %414
        %416 = vrot.lane.b32.xlu0 %v261, 32
        %v417 = vpop.permute.xlu0 %416
        %418 = vrot.lane.b32.xlu0 %v262, 32
        %v419 = vpop.permute.xlu0 %418
        %420 = vrot.lane.b32.xlu0 %v263, 32
        %v421 = vpop.permute.xlu0 %420
        %422 = vrot.lane.b32.xlu0 %v264, 32
        %v423 = vpop.permute.xlu0 %422
        %424 = vrot.lane.b32.xlu0 %v265, 32
        %v425 = vpop.permute.xlu0 %424
        %458 = vrot.lane.b32.xlu0 %v378, 32
        %v459 = vpop.permute.xlu0 %458
        %460 = vrot.lane.b32.xlu0 %v379, 32
        %v461 = vpop.permute.xlu0 %460
        %462 = vrot.lane.b32.xlu0 %v380, 32
        %v463 = vpop.permute.xlu0 %462
        %464 = vrot.lane.b32.xlu0 %v381, 32
        %v465 = vpop.permute.xlu0 %464
        %466 = vrot.lane.b32.xlu0 %v382, 32
        %v467 = vpop.permute.xlu0 %466
        %468 = vrot.lane.b32.xlu0 %v383, 32
        %v469 = vpop.permute.xlu0 %468
        %470 = vrot.lane.b32.xlu0 %v384, 32
        %v471 = vpop.permute.xlu0 %470
        %472 = vrot.lane.b32.xlu0 %v385, 32
        %v473 = vpop.permute.xlu0 %472
        %474 = vrot.lane.b32.xlu0 %v386, 32
        %v475 = vpop.permute.xlu0 %474
        %476 = vrot.lane.b32.xlu0 %v387, 32
        %v477 = vpop.permute.xlu0 %476
        %478 = vrot.lane.b32.xlu0 %v388, 32
        %v479 = vpop.permute.xlu0 %478
        %480 = vrot.lane.b32.xlu0 %v389, 32
        %v481 = vpop.permute.xlu0 %480
        %482 = vrot.lane.b32.xlu0 %v390, 32
        %v483 = vpop.permute.xlu0 %482
        %484 = vrot.lane.b32.xlu0 %v391, 32
        %v485 = vpop.permute.xlu0 %484
        %486 = vrot.lane.b32.xlu0 %v392, 32
        %v487 = vpop.permute.xlu0 %486
        %488 = vrot.lane.b32.xlu0 %v393, 32
        %v489 = vpop.permute.xlu0 %488
        %506 = vrot.lane.b32.xlu0 %v250, 31
        %v507 = vpop.permute.xlu0 %506
        %508 = vrot.lane.b32.xlu0 %v251, 31
        %v509 = vpop.permute.xlu0 %508
        %510 = vrot.lane.b32.xlu0 %v252, 31
        %v511 = vpop.permute.xlu0 %510
        %512 = vrot.lane.b32.xlu0 %v253, 31
        %v513 = vpop.permute.xlu0 %512
        %514 = vrot.lane.b32.xlu0 %v254, 31
        %v515 = vpop.permute.xlu0 %514
        %516 = vrot.lane.b32.xlu0 %v255, 31
        %v517 = vpop.permute.xlu0 %516
        %518 = vrot.lane.b32.xlu0 %v256, 31
        %v519 = vpop.permute.xlu0 %518
        %520 = vrot.lane.b32.xlu0 %v257, 31
        %v521 = vpop.permute.xlu0 %520
        %522 = vrot.lane.b32.xlu0 %v258, 31
        %v523 = vpop.permute.xlu0 %522
        %524 = vrot.lane.b32.xlu0 %v259, 31
        %v525 = vpop.permute.xlu0 %524
        %526 = vrot.lane.b32.xlu0 %v260, 31
        %v527 = vpop.permute.xlu0 %526
        %528 = vrot.lane.b32.xlu0 %v261, 31
        %v529 = vpop.permute.xlu0 %528
        %530 = vrot.lane.b32.xlu0 %v262, 31
        %v531 = vpop.permute.xlu0 %530
        %532 = vrot.lane.b32.xlu0 %v263, 31
        %v533 = vpop.permute.xlu0 %532
        %534 = vrot.lane.b32.xlu0 %v264, 31
        %v535 = vpop.permute.xlu0 %534
        %536 = vrot.lane.b32.xlu0 %v265, 31
        %v537 = vpop.permute.xlu0 %536
        %vm554 = vcmask 7168
        %v555 = vsel %vm554, %v395, %v459
        %v556 = vsel %vm554, %v397, %v461
        %v557 = vsel %vm554, %v399, %v463
        %v558 = vsel %vm554, %v401, %v465
        %v559 = vsel %vm554, %v403, %v467
        %v560 = vsel %vm554, %v405, %v469
        %v561 = vsel %vm554, %v407, %v471
        %v562 = vsel %vm554, %v409, %v473
        %v563 = vsel %vm554, %v411, %v475
        %v564 = vsel %vm554, %v413, %v477
        %v565 = vsel %vm554, %v415, %v479
        %v566 = vsel %vm554, %v417, %v481
        %v567 = vsel %vm554, %v419, %v483
        %v568 = vsel %vm554, %v421, %v485
        %v569 = vsel %vm554, %v423, %v487
        %v570 = vsel %vm554, %v425, %v489
        %vm571 = vcmask 15360
        %v572 = vsel %vm571, %v555, %v507
        %v573 = vsel %vm571, %v556, %v509
        %v574 = vsel %vm571, %v557, %v511
        %v575 = vsel %vm571, %v558, %v513
        %v576 = vsel %vm571, %v559, %v515
        %v577 = vsel %vm571, %v560, %v517
        %v578 = vsel %vm571, %v561, %v519
        %v579 = vsel %vm571, %v562, %v521
        %v580 = vsel %vm571, %v563, %v523
        %v581 = vsel %vm571, %v564, %v525
        %v582 = vsel %vm571, %v565, %v527
        %v583 = vsel %vm571, %v566, %v529
        %v584 = vsel %vm571, %v567, %v531
        %v585 = vsel %vm571, %v568, %v533
        %v586 = vsel %vm571, %v569, %v535
        %v587 = vsel %vm571, %v570, %v537
        %v588 = vpack.c.bf16 %v251, %v250
        %v589 = vpack.c.bf16 %v253, %v252
        %v590 = vpack.c.bf16 %v255, %v254
        %v591 = vpack.c.bf16 %v257, %v256
        %v592 = vpack.c.bf16 %v259, %v258
        %v593 = vpack.c.bf16 %v261, %v260
        %v594 = vpack.c.bf16 %v263, %v262
        %v595 = vpack.c.bf16 %v265, %v264
        %v596 = vld [vmem:[#allocation6 + $0x8] sm:$0xf]
        %v597 = vld [vmem:[#allocation6 + $0x18] sm:$0xf]
        %v598 = vld [vmem:[#allocation6 + $0x28] sm:$0xf]
        %v599 = vld [vmem:[#allocation6 + $0x38] sm:$0xf]
        %v600 = vld [vmem:[#allocation6 + $0x48] sm:$0xf]
        %v601 = vld [vmem:[#allocation6 + $0x58] sm:$0xf]
        %v602 = vld [vmem:[#allocation6 + $0x68] sm:$0xf]
        %v603 = vld [vmem:[#allocation6 + $0x78] sm:$0xf]
        %v604 = vld [vmem:[#allocation6 + $0x88] sm:$0xf]
        %v605 = vld [vmem:[#allocation6 + $0x98] sm:$0xf]
        %v606 = vld [vmem:[#allocation6 + $0xa8] sm:$0xf]
        %v607 = vld [vmem:[#allocation6 + $0xb8] sm:$0xf]
        %v620 = vunpack.c.l.b16 %v596
        %v621 = vunpack.c.l.b16 %v597
        %v622 = vunpack.c.l.b16 %v598
        %v623 = vunpack.c.l.b16 %v599
        %v624 = vunpack.c.l.b16 %v600
        %v625 = vunpack.c.l.b16 %v601
        %v626 = vunpack.c.l.b16 %v602
        %v627 = vunpack.c.l.b16 %v603
        %v628 = vunpack.c.l.b16 %v604
        %v629 = vunpack.c.l.b16 %v605
        %v630 = vunpack.c.l.b16 %v606
        %v631 = vunpack.c.l.b16 %v607
        %v632 = vpack.c.b16 %v621, %v620
        %v633 = vpack.c.b16 %v623, %v622
        %v634 = vpack.c.b16 %v625, %v624
        %v635 = vpack.c.b16 %v627, %v626
        %v636 = vpack.c.b16 %v629, %v628
        %v637 = vpack.c.b16 %v631, %v630
        %vm644 = vcmask 785408
        %v646 = vsel %vm644, %v588, 0
        %v649 = vsel %vm644, %v589, 0
        %v652 = vsel %vm644, %v590, 0
        %v655 = vsel %vm644, %v591, 0
        %v658 = vsel %vm644, %v592, 0
        %v661 = vsel %vm644, %v593, 0
        %v664 = vsel %vm644, %v594, 0
        %v667 = vsel %vm644, %v595, 0
        %669 = vmatprep.subr.bf16.mxu0 0
        %670 = vmatpush1.bf16.msra.mxu0 %v632
        %671 = vmatprep.subr.bf16.mxu0 0
        %672 = vmatpush1.bf16.msra.mxu0 %v633
        %673 = vmatprep.subr.bf16.mxu0 0
        %674 = vmatpush1.bf16.msra.mxu0 %v634
        %675 = vmatprep.subr.bf16.mxu0 0
        %676 = vmatpush1.bf16.msra.mxu0 %v635
        %677 = vmatprep.subr.bf16.mxu0 0
        %678 = vmatpush1.bf16.msra.mxu0 %v636
        %679 = vmatprep.subr.bf16.mxu0 0
        %680 = vmatpush1.bf16.msra.mxu0 %v637
        %681 = vmatprep.subr.bf16.mxu0 0
        %682 = vmatpush1.bf16.msra.mxu0 0
        %683 = vmatprep.subr.bf16.mxu0 0
        %684 = vmatpush1.bf16.msra.mxu0 0
        %685 = vmatprep.subr.bf16.mxu0 0
        %686 = vmatpush1.bf16.msra.mxu0 0
        %687 = vmatprep.subr.bf16.mxu0 0
        %688 = vmatpush1.bf16.msra.mxu0 0
        %689 = vmatprep.subr.bf16.mxu0 0
        %690 = vmatpush1.bf16.msra.mxu0 0
        %691 = vmatprep.subr.bf16.mxu0 0
        %692 = vmatpush1.bf16.msra.mxu0 0
        %693 = vmatprep.subr.bf16.mxu0 0
        %694 = vmatpush1.bf16.msra.mxu0 0
        %695 = vmatprep.subr.bf16.mxu0 0
        %696 = vmatpush1.bf16.msra.mxu0 0
        %697 = vmatprep.subr.bf16.mxu0 0
        %698 = vmatpush1.bf16.msra.mxu0 0
        %699 = vmatprep.subr.bf16.mxu0 0
        %700 = vmatpush1.bf16.msra.mxu0 0
        %701 = vmatprep.mubr.bf16.mxu0 0
        %702 = vmatmul.mubr.bf16.gmra.mrb[0].mxu0 %v646
        %v703 = vpop.f32.mrb[0].mxu0
        %v704 = vadd.f32 0.0, %v703
        %v705 = vpop.f32.mrb[0].mxu0
        %v706 = vpop.f32.mrb[0].mxu0
        %v707 = vadd.f32 0.0, %v706
        %v708 = vpop.f32.mrb[0].mxu0
        %709 = vmatprep.mubr.bf16.mxu0 0
        %710 = vmatmul.mubr.bf16.gmra.mrb[0].mxu0 %v649
        %v711 = vpop.f32.mrb[0].mxu0
        %v712 = vadd.f32 0.0, %v711
        %v713 = vpop.f32.mrb[0].mxu0
        %v714 = vpop.f32.mrb[0].mxu0
        %v715 = vadd.f32 0.0, %v714
        %v716 = vpop.f32.mrb[0].mxu0
        %717 = vmatprep.mubr.bf16.mxu0 0
        %718 = vmatmul.mubr.bf16.gmra.mrb[0].mxu0 %v652
        %v719 = vpop.f32.mrb[0].mxu0
        %v720 = vadd.f32 0.0, %v719
        %v721 = vpop.f32.mrb[0].mxu0
        %v722 = vpop.f32.mrb[0].mxu0
        %v723 = vadd.f32 0.0, %v722
        %v724 = vpop.f32.mrb[0].mxu0
        %725 = vmatprep.mubr.bf16.mxu0 0
        %726 = vmatmul.mubr.bf16.gmra.mrb[0].mxu0 %v655
        %v727 = vpop.f32.mrb[0].mxu0
        %v728 = vadd.f32 0.0, %v727
        %v729 = vpop.f32.mrb[0].mxu0
        %v730 = vpop.f32.mrb[0].mxu0
        %v731 = vadd.f32 0.0, %v730
        %v732 = vpop.f32.mrb[0].mxu0
        %733 = vmatprep.mubr.bf16.mxu0 0
        %734 = vmatmul.mubr.bf16.gmra.mrb[0].mxu0 %v658
        %v735 = vpop.f32.mrb[0].mxu0
        %v736 = vadd.f32 0.0, %v735
        %v737 = vpop.f32.mrb[0].mxu0
        %v738 = vpop.f32.mrb[0].mxu0
        %v739 = vadd.f32 0.0, %v738
        %v740 = vpop.f32.mrb[0].mxu0
        %741 = vmatprep.mubr.bf16.mxu0 0
        %742 = vmatmul.mubr.bf16.gmra.mrb[0].mxu0 %v661
        %v743 = vpop.f32.mrb[0].mxu0
        %v744 = vadd.f32 0.0, %v743
        %v745 = vpop.f32.mrb[0].mxu0
        %v746 = vpop.f32.mrb[0].mxu0
        %v747 = vadd.f32 0.0, %v746
        %v748 = vpop.f32.mrb[0].mxu0
        %749 = vmatprep.mubr.bf16.mxu0 0
        %750 = vmatmul.mubr.bf16.gmra.mrb[0].mxu0 %v664
        %v751 = vpop.f32.mrb[0].mxu0
        %v752 = vadd.f32 0.0, %v751
        %v753 = vpop.f32.mrb[0].mxu0
        %v754 = vpop.f32.mrb[0].mxu0
        %v755 = vadd.f32 0.0, %v754
        %v756 = vpop.f32.mrb[0].mxu0
        %757 = vmatprep.mubr.bf16.mxu0 0
        %758 = vmatmul.mubr.bf16.gmra.mrb[0].mxu0 %v667
        %v759 = vpop.f32.mrb[0].mxu0
        %v760 = vadd.f32 0.0, %v759
        %v761 = vpop.f32.mrb[0].mxu0
        %v762 = vpop.f32.mrb[0].mxu0
        %v763 = vadd.f32 0.0, %v762
        %v764 = vpop.f32.mrb[0].mxu0
        %765 = vdwg.mxu0
        %v766 = vtanh.pop %v704
        %v767 = vtanh.pop %v707
        %v768 = vtanh.pop %v712
        %v769 = vtanh.pop %v715
        %v770 = vtanh.pop %v720
        %v771 = vtanh.pop %v723
        %v772 = vtanh.pop %v728
        %v773 = vtanh.pop %v731
        %v774 = vtanh.pop %v736
        %v775 = vtanh.pop %v739
        %v776 = vtanh.pop %v744
        %v777 = vtanh.pop %v747
        %v778 = vtanh.pop %v752
        %v779 = vtanh.pop %v755
        %v780 = vtanh.pop %v760
        %v781 = vtanh.pop %v763
        %v782 = vpack.c.bf16 %v767, %v766
        %v783 = vpack.c.bf16 %v769, %v768
        %v784 = vpack.c.bf16 %v771, %v770
        %v785 = vpack.c.bf16 %v773, %v772
        %v786 = vpack.c.bf16 %v775, %v774
        %v787 = vpack.c.bf16 %v777, %v776
        %v788 = vpack.c.bf16 %v779, %v778
        %v789 = vpack.c.bf16 %v781, %v780
        %790 = vrot.lane.b32.xlu0 %v632, 32
        %v791 = vpop.permute.xlu0 %790
        %792 = vrot.lane.b32.xlu0 %v633, 32
        %v793 = vpop.permute.xlu0 %792
        %794 = vrot.lane.b32.xlu0 %v634, 32
        %v795 = vpop.permute.xlu0 %794
        %796 = vrot.lane.b32.xlu0 %v635, 32
        %v797 = vpop.permute.xlu0 %796
        %798 = vrot.lane.b32.xlu0 %v636, 32
        %v799 = vpop.permute.xlu0 %798
        %800 = vrot.lane.b32.xlu0 %v637, 32
        %v801 = vpop.permute.xlu0 %800
        %v809 = vsel %vm644, %v782, 0
        %v812 = vsel %vm644, %v783, 0
        %v815 = vsel %vm644, %v784, 0
        %v818 = vsel %vm644, %v785, 0
        %v821 = vsel %vm644, %v786, 0
        %v824 = vsel %vm644, %v787, 0
        %v827 = vsel %vm644, %v788, 0
        %v830 = vsel %vm644, %v789, 0
        %832 = vmatprep.subr.bf16.mxu0 0
        %833 = vmatpush1.bf16.msra.mxu0 %v791
        %834 = vmatprep.subr.bf16.mxu0 0
        %835 = vmatpush1.bf16.msra.mxu0 %v793
        %836 = vmatprep.subr.bf16.mxu0 0
        %837 = vmatpush1.bf16.msra.mxu0 %v795
        %838 = vmatprep.subr.bf16.mxu0 0
        %839 = vmatpush1.bf16.msra.mxu0 %v797
        %840 = vmatprep.subr.bf16.mxu0 0
        %841 = vmatpush1.bf16.msra.mxu0 %v799
        %842 = vmatprep.subr.bf16.mxu0 0
        %843 = vmatpush1.bf16.msra.mxu0 %v801
        %844 = vmatprep.subr.bf16.mxu0 0
        %845 = vmatpush1.bf16.msra.mxu0 0
        %846 = vmatprep.subr.bf16.mxu0 0
        %847 = vmatpush1.bf16.msra.mxu0 0
        %848 = vmatprep.subr.bf16.mxu0 0
        %849 = vmatpush1.bf16.msra.mxu0 0
        %850 = vmatprep.subr.bf16.mxu0 0
        %851 = vmatpush1.bf16.msra.mxu0 0
        %852 = vmatprep.subr.bf16.mxu0 0
        %853 = vmatpush1.bf16.msra.mxu0 0
        %854 = vmatprep.subr.bf16.mxu0 0
        %855 = vmatpush1.bf16.msra.mxu0 0
        %856 = vmatprep.subr.bf16.mxu0 0
        %857 = vmatpush1.bf16.msra.mxu0 0
        %858 = vmatprep.subr.bf16.mxu0 0
        %859 = vmatpush1.bf16.msra.mxu0 0
        %860 = vmatprep.subr.bf16.mxu0 0
        %861 = vmatpush1.bf16.msra.mxu0 0
        %862 = vmatprep.subr.bf16.mxu0 0
        %863 = vmatpush1.bf16.msra.mxu0 0
        %864 = vmatprep.mubr.bf16.mxu0 0
        %865 = vmatmul.mubr.bf16.gmra.mrb[0].mxu0 %v809
        %v866 = vpop.f32.mrb[0].mxu0
        %v867 = vadd.f32 0.0, %v866
        %v868 = vpop.f32.mrb[0].mxu0
        %v869 = vpop.f32.mrb[0].mxu0
        %v870 = vadd.f32 0.0, %v869
        %v871 = vpop.f32.mrb[0].mxu0
        %872 = vmatprep.mubr.bf16.mxu0 0
        %873 = vmatmul.mubr.bf16.gmra.mrb[0].mxu0 %v812
        %v874 = vpop.f32.mrb[0].mxu0
        %v875 = vadd.f32 0.0, %v874
        %v876 = vpop.f32.mrb[0].mxu0
        %v877 = vpop.f32.mrb[0].mxu0
        %v878 = vadd.f32 0.0, %v877
        %v879 = vpop.f32.mrb[0].mxu0
        %880 = vmatprep.mubr.bf16.mxu0 0
        %881 = vmatmul.mubr.bf16.gmra.mrb[0].mxu0 %v815
        %v882 = vpop.f32.mrb[0].mxu0
        %v883 = vadd.f32 0.0, %v882
        %v884 = vpop.f32.mrb[0].mxu0
        %v885 = vpop.f32.mrb[0].mxu0
        %v886 = vadd.f32 0.0, %v885
        %v887 = vpop.f32.mrb[0].mxu0
        %888 = vmatprep.mubr.bf16.mxu0 0
        %889 = vmatmul.mubr.bf16.gmra.mrb[0].mxu0 %v818
        %v890 = vpop.f32.mrb[0].mxu0
        %v891 = vadd.f32 0.0, %v890
        %v892 = vpop.f32.mrb[0].mxu0
        %v893 = vpop.f32.mrb[0].mxu0
        %v894 = vadd.f32 0.0, %v893
        %v895 = vpop.f32.mrb[0].mxu0
        %896 = vmatprep.mubr.bf16.mxu0 0
        %897 = vmatmul.mubr.bf16.gmra.mrb[0].mxu0 %v821
        %v898 = vpop.f32.mrb[0].mxu0
        %v899 = vadd.f32 0.0, %v898
        %v900 = vpop.f32.mrb[0].mxu0
        %v901 = vpop.f32.mrb[0].mxu0
        %v902 = vadd.f32 0.0, %v901
        %v903 = vpop.f32.mrb[0].mxu0
        %904 = vmatprep.mubr.bf16.mxu0 0
        %905 = vmatmul.mubr.bf16.gmra.mrb[0].mxu0 %v824
        %v906 = vpop.f32.mrb[0].mxu0
        %v907 = vadd.f32 0.0, %v906
        %v908 = vpop.f32.mrb[0].mxu0
        %v909 = vpop.f32.mrb[0].mxu0
        %v910 = vadd.f32 0.0, %v909
        %v911 = vpop.f32.mrb[0].mxu0
        %912 = vmatprep.mubr.bf16.mxu0 0
        %913 = vmatmul.mubr.bf16.gmra.mrb[0].mxu0 %v827
        %v914 = vpop.f32.mrb[0].mxu0
        %v915 = vadd.f32 0.0, %v914
        %v916 = vpop.f32.mrb[0].mxu0
        %v917 = vpop.f32.mrb[0].mxu0
        %v918 = vadd.f32 0.0, %v917
        %v919 = vpop.f32.mrb[0].mxu0
        %920 = vmatprep.mubr.bf16.mxu0 0
        %921 = vmatmul.mubr.bf16.gmra.mrb[0].mxu0 %v830
        %v922 = vpop.f32.mrb[0].mxu0
        %v923 = vadd.f32 0.0, %v922
        %v924 = vpop.f32.mrb[0].mxu0
        %v925 = vpop.f32.mrb[0].mxu0
        %v926 = vadd.f32 0.0, %v925
        %v927 = vpop.f32.mrb[0].mxu0
        %928 = vdwg.mxu0
        %vm929 = vcmp.gt.f32.partialorder %v572, 0.0
        %vm930 = vcmp.gt.f32.partialorder %v573, 0.0
        %vm931 = vcmp.gt.f32.partialorder %v574, 0.0
        %vm932 = vcmp.gt.f32.partialorder %v575, 0.0
        %vm933 = vcmp.gt.f32.partialorder %v576, 0.0
        %vm934 = vcmp.gt.f32.partialorder %v577, 0.0
        %vm935 = vcmp.gt.f32.partialorder %v578, 0.0
        %vm936 = vcmp.gt.f32.partialorder %v579, 0.0
        %vm937 = vcmp.gt.f32.partialorder %v580, 0.0
        %vm938 = vcmp.gt.f32.partialorder %v581, 0.0
        %vm939 = vcmp.gt.f32.partialorder %v582, 0.0
        %vm940 = vcmp.gt.f32.partialorder %v583, 0.0
        %vm941 = vcmp.gt.f32.partialorder %v584, 0.0
        %vm942 = vcmp.gt.f32.partialorder %v585, 0.0
        %vm943 = vcmp.gt.f32.partialorder %v586, 0.0
        %vm944 = vcmp.gt.f32.partialorder %v587, 0.0
        %v945 = vsel %vm929, %v867, -1e+30
        %v946 = vsel %vm930, %v870, -1e+30
        %v947 = vsel %vm931, %v875, -1e+30
        %v948 = vsel %vm932, %v878, -1e+30
        %v949 = vsel %vm933, %v883, -1e+30
        %v950 = vsel %vm934, %v886, -1e+30
        %v951 = vsel %vm935, %v891, -1e+30
        %v952 = vsel %vm936, %v894, -1e+30
        %v953 = vsel %vm937, %v899, -1e+30
        %v954 = vsel %vm938, %v902, -1e+30
        %v955 = vsel %vm939, %v907, -1e+30
        %v956 = vsel %vm940, %v910, -1e+30
        %v957 = vsel %vm941, %v915, -1e+30
        %v958 = vsel %vm942, %v918, -1e+30
        %v959 = vsel %vm943, %v923, -1e+30
        %v960 = vsel %vm944, %v926, -1e+30
        %vm961 = vcmask 23552
        %v962 = vsel %vm961, %v945, -inf
        %963 = vmax.xlane.f32.xlu0 %v962
        %v964 = vpop.xlane.xlu0 %963
        %v965 = vsel %vm961, %v946, -inf
        %966 = vmax.xlane.f32.xlu0 %v965
        %v967 = vpop.xlane.xlu0 %966
        %v968 = vsel %vm961, %v947, -inf
        %969 = vmax.xlane.f32.xlu0 %v968
        %v970 = vpop.xlane.xlu0 %969
        %v971 = vsel %vm961, %v948, -inf
        %972 = vmax.xlane.f32.xlu0 %v971
        %v973 = vpop.xlane.xlu0 %972
        %v974 = vsel %vm961, %v949, -inf
        %975 = vmax.xlane.f32.xlu0 %v974
        %v976 = vpop.xlane.xlu0 %975
        %v977 = vsel %vm961, %v950, -inf
        %978 = vmax.xlane.f32.xlu0 %v977
        %v979 = vpop.xlane.xlu0 %978
        %v980 = vsel %vm961, %v951, -inf
        %981 = vmax.xlane.f32.xlu0 %v980
        %v982 = vpop.xlane.xlu0 %981
        %v983 = vsel %vm961, %v952, -inf
        %984 = vmax.xlane.f32.xlu0 %v983
        %v985 = vpop.xlane.xlu0 %984
        %v986 = vsel %vm961, %v953, -inf
        %987 = vmax.xlane.f32.xlu0 %v986
        %v988 = vpop.xlane.xlu0 %987
        %v989 = vsel %vm961, %v954, -inf
        %990 = vmax.xlane.f32.xlu0 %v989
        %v991 = vpop.xlane.xlu0 %990
        %v992 = vsel %vm961, %v955, -inf
        %993 = vmax.xlane.f32.xlu0 %v992
        %v994 = vpop.xlane.xlu0 %993
        %v995 = vsel %vm961, %v956, -inf
        %996 = vmax.xlane.f32.xlu0 %v995
        %v997 = vpop.xlane.xlu0 %996
        %v998 = vsel %vm961, %v957, -inf
        %999 = vmax.xlane.f32.xlu0 %v998
        %v1000 = vpop.xlane.xlu0 %999
        %v1001 = vsel %vm961, %v958, -inf
        %1002 = vmax.xlane.f32.xlu0 %v1001
        %v1003 = vpop.xlane.xlu0 %1002
        %v1004 = vsel %vm961, %v959, -inf
        %1005 = vmax.xlane.f32.xlu0 %v1004
        %v1006 = vpop.xlane.xlu0 %1005
        %v1007 = vsel %vm961, %v960, -inf
        %1008 = vmax.xlane.f32.xlu0 %v1007
        %v1009 = vpop.xlane.xlu0 %1008
        %v1010 = vsub.f32 %v945, %v964
        %v1011 = vsub.f32 %v946, %v967
        %v1012 = vsub.f32 %v947, %v970
        %v1013 = vsub.f32 %v948, %v973
        %v1014 = vsub.f32 %v949, %v976
        %v1015 = vsub.f32 %v950, %v979
        %v1016 = vsub.f32 %v951, %v982
        %v1017 = vsub.f32 %v952, %v985
        %v1018 = vsub.f32 %v953, %v988
        %v1019 = vsub.f32 %v954, %v991
        %v1020 = vsub.f32 %v955, %v994
        %v1021 = vsub.f32 %v956, %v997
        %v1022 = vsub.f32 %v957, %v1000
        %v1023 = vsub.f32 %v958, %v1003
        %v1024 = vsub.f32 %v959, %v1006
        %v1025 = vsub.f32 %v960, %v1009
        %v1026 = vmul.f32 %v1010, 1.442695
        %v1027 = vpow.pop %v1026
        %v1028 = vmul.f32 %v1011, 1.442695
        %v1029 = vpow.pop %v1028
        %v1030 = vmul.f32 %v1012, 1.442695
        %v1031 = vpow.pop %v1030
        %v1032 = vmul.f32 %v1013, 1.442695
        %v1033 = vpow.pop %v1032
        %v1034 = vmul.f32 %v1014, 1.442695
        %v1035 = vpow.pop %v1034
        %v1036 = vmul.f32 %v1015, 1.442695
        %v1037 = vpow.pop %v1036
        %v1038 = vmul.f32 %v1016, 1.442695
        %v1039 = vpow.pop %v1038
        %v1040 = vmul.f32 %v1017, 1.442695
        %v1041 = vpow.pop %v1040
        %v1042 = vmul.f32 %v1018, 1.442695
        %v1043 = vpow.pop %v1042
        %v1044 = vmul.f32 %v1019, 1.442695
        %v1045 = vpow.pop %v1044
        %v1046 = vmul.f32 %v1020, 1.442695
        %v1047 = vpow.pop %v1046
        %v1048 = vmul.f32 %v1021, 1.442695
        %v1049 = vpow.pop %v1048
        %v1050 = vmul.f32 %v1022, 1.442695
        %v1051 = vpow.pop %v1050
        %v1052 = vmul.f32 %v1023, 1.442695
        %v1053 = vpow.pop %v1052
        %v1054 = vmul.f32 %v1024, 1.442695
        %v1055 = vpow.pop %v1054
        %v1056 = vmul.f32 %v1025, 1.442695
        %v1057 = vpow.pop %v1056
        %v1058 = vsel %vm961, %v1027, 0.0
        %1059 = vadd.xlane.f32.xlu0 %v1058
        %v1060 = vpop.xlane.xlu0 %1059
        %v1061 = vsel %vm961, %v1029, 0.0
        %1062 = vadd.xlane.f32.xlu0 %v1061
        %v1063 = vpop.xlane.xlu0 %1062
        %v1064 = vsel %vm961, %v1031, 0.0
        %1065 = vadd.xlane.f32.xlu0 %v1064
        %v1066 = vpop.xlane.xlu0 %1065
        %v1067 = vsel %vm961, %v1033, 0.0
        %1068 = vadd.xlane.f32.xlu0 %v1067
        %v1069 = vpop.xlane.xlu0 %1068
        %v1070 = vsel %vm961, %v1035, 0.0
        %1071 = vadd.xlane.f32.xlu0 %v1070
        %v1072 = vpop.xlane.xlu0 %1071
        %v1073 = vsel %vm961, %v1037, 0.0
        %1074 = vadd.xlane.f32.xlu0 %v1073
        %v1075 = vpop.xlane.xlu0 %1074
        %v1076 = vsel %vm961, %v1039, 0.0
        %1077 = vadd.xlane.f32.xlu0 %v1076
        %v1078 = vpop.xlane.xlu0 %1077
        %v1079 = vsel %vm961, %v1041, 0.0
        %1080 = vadd.xlane.f32.xlu0 %v1079
        %v1081 = vpop.xlane.xlu0 %1080
        %v1082 = vsel %vm961, %v1043, 0.0
        %1083 = vadd.xlane.f32.xlu0 %v1082
        %v1084 = vpop.xlane.xlu0 %1083
        %v1085 = vsel %vm961, %v1045, 0.0
        %1086 = vadd.xlane.f32.xlu0 %v1085
        %v1087 = vpop.xlane.xlu0 %1086
        %v1088 = vsel %vm961, %v1047, 0.0
        %1089 = vadd.xlane.f32.xlu0 %v1088
        %v1090 = vpop.xlane.xlu0 %1089
        %v1091 = vsel %vm961, %v1049, 0.0
        %1092 = vadd.xlane.f32.xlu0 %v1091
        %v1093 = vpop.xlane.xlu0 %1092
        %v1094 = vsel %vm961, %v1051, 0.0
        %1095 = vadd.xlane.f32.xlu0 %v1094
        %v1096 = vpop.xlane.xlu0 %1095
        %v1097 = vsel %vm961, %v1053, 0.0
        %1098 = vadd.xlane.f32.xlu0 %v1097
        %v1099 = vpop.xlane.xlu0 %1098
        %v1100 = vsel %vm961, %v1055, 0.0
        %1101 = vadd.xlane.f32.xlu0 %v1100
        %v1102 = vpop.xlane.xlu0 %1101
        %v1103 = vsel %vm961, %v1057, 0.0
        %1104 = vadd.xlane.f32.xlu0 %v1103
        %v1105 = vpop.xlane.xlu0 %1104
        %v1106 = vrcp.pop %v1060
        %v1107 = vrcp.pop %v1063
        %v1108 = vrcp.pop %v1066
        %v1109 = vrcp.pop %v1069
        %v1110 = vrcp.pop %v1072
        %v1111 = vrcp.pop %v1075
        %v1112 = vrcp.pop %v1078
        %v1113 = vrcp.pop %v1081
        %v1114 = vrcp.pop %v1084
        %v1115 = vrcp.pop %v1087
        %v1116 = vrcp.pop %v1090
        %v1117 = vrcp.pop %v1093
        %v1118 = vrcp.pop %v1096
        %v1119 = vrcp.pop %v1099
        %v1120 = vrcp.pop %v1102
        %v1121 = vrcp.pop %v1105
        %v1122 = vmul.f32 %v1027, %v1106
        %v1123 = vmul.f32 %v1029, %v1107
        %v1124 = vmul.f32 %v1031, %v1108
        %v1125 = vmul.f32 %v1033, %v1109
        %v1126 = vmul.f32 %v1035, %v1110
        %v1127 = vmul.f32 %v1037, %v1111
        %v1128 = vmul.f32 %v1039, %v1112
        %v1129 = vmul.f32 %v1041, %v1113
        %v1130 = vmul.f32 %v1043, %v1114
        %v1131 = vmul.f32 %v1045, %v1115
        %v1132 = vmul.f32 %v1047, %v1116
        %v1133 = vmul.f32 %v1049, %v1117
        %v1134 = vmul.f32 %v1051, %v1118
        %v1135 = vmul.f32 %v1053, %v1119
        %v1136 = vmul.f32 %v1055, %v1120
        %v1137 = vmul.f32 %v1057, %v1121
        %1139 = vset.pattern.permute.xlu0 0
        %1140 = vperm.xlu0 %1139, %v1122
        %v1141 = vpop.permute.xlu0 %1140
        %1144 = vset.pattern.permute.xlu0 0
        %1145 = vperm.xlu0 %1144, %v1123
        %v1146 = vpop.permute.xlu0 %1145
        %1149 = vset.pattern.permute.xlu0 0
        %1150 = vperm.xlu0 %1149, %v1124
        %v1151 = vpop.permute.xlu0 %1150
        %1154 = vset.pattern.permute.xlu0 0
        %1155 = vperm.xlu0 %1154, %v1125
        %v1156 = vpop.permute.xlu0 %1155
        %1159 = vset.pattern.permute.xlu0 0
        %1160 = vperm.xlu0 %1159, %v1126
        %v1161 = vpop.permute.xlu0 %1160
        %1164 = vset.pattern.permute.xlu0 0
        %1165 = vperm.xlu0 %1164, %v1127
        %v1166 = vpop.permute.xlu0 %1165
        %1169 = vset.pattern.permute.xlu0 0
        %1170 = vperm.xlu0 %1169, %v1128
        %v1171 = vpop.permute.xlu0 %1170
        %1174 = vset.pattern.permute.xlu0 0
        %1175 = vperm.xlu0 %1174, %v1129
        %v1176 = vpop.permute.xlu0 %1175
        %1179 = vset.pattern.permute.xlu0 0
        %1180 = vperm.xlu0 %1179, %v1130
        %v1181 = vpop.permute.xlu0 %1180
        %1184 = vset.pattern.permute.xlu0 0
        %1185 = vperm.xlu0 %1184, %v1131
        %v1186 = vpop.permute.xlu0 %1185
        %1189 = vset.pattern.permute.xlu0 0
        %1190 = vperm.xlu0 %1189, %v1132
        %v1191 = vpop.permute.xlu0 %1190
        %1194 = vset.pattern.permute.xlu0 0
        %1195 = vperm.xlu0 %1194, %v1133
        %v1196 = vpop.permute.xlu0 %1195
        %1199 = vset.pattern.permute.xlu0 0
        %1200 = vperm.xlu0 %1199, %v1134
        %v1201 = vpop.permute.xlu0 %1200
        %1204 = vset.pattern.permute.xlu0 0
        %1205 = vperm.xlu0 %1204, %v1135
        %v1206 = vpop.permute.xlu0 %1205
        %1209 = vset.pattern.permute.xlu0 0
        %1210 = vperm.xlu0 %1209, %v1136
        %v1211 = vpop.permute.xlu0 %1210
        %1214 = vset.pattern.permute.xlu0 0
        %1215 = vperm.xlu0 %1214, %v1137
        %v1216 = vpop.permute.xlu0 %1215
        %v1218 = vmul.f32 %v1141, %v250
        %v1219 = vmul.f32 %v1146, %v251
        %v1220 = vmul.f32 %v1151, %v252
        %v1221 = vmul.f32 %v1156, %v253
        %v1222 = vmul.f32 %v1161, %v254
        %v1223 = vmul.f32 %v1166, %v255
        %v1224 = vmul.f32 %v1171, %v256
        %v1225 = vmul.f32 %v1176, %v257
        %v1226 = vmul.f32 %v1181, %v258
        %v1227 = vmul.f32 %v1186, %v259
        %v1228 = vmul.f32 %v1191, %v260
        %v1229 = vmul.f32 %v1196, %v261
        %v1230 = vmul.f32 %v1201, %v262
        %v1231 = vmul.f32 %v1206, %v263
        %v1232 = vmul.f32 %v1211, %v264
        %v1233 = vmul.f32 %v1216, %v265
        %1234 = vset.pattern.permute.xlu0 1
        %1235 = vperm.xlu0 %1234, %v1122
        %v1236 = vpop.permute.xlu0 %1235
        %1238 = vset.pattern.permute.xlu0 1
        %1239 = vperm.xlu0 %1238, %v1123
        %v1240 = vpop.permute.xlu0 %1239
        %1242 = vset.pattern.permute.xlu0 1
        %1243 = vperm.xlu0 %1242, %v1124
        %v1244 = vpop.permute.xlu0 %1243
        %1246 = vset.pattern.permute.xlu0 1
        %1247 = vperm.xlu0 %1246, %v1125
        %v1248 = vpop.permute.xlu0 %1247
        %1250 = vset.pattern.permute.xlu0 1
        %1251 = vperm.xlu0 %1250, %v1126
        %v1252 = vpop.permute.xlu0 %1251
        %1254 = vset.pattern.permute.xlu0 1
        %1255 = vperm.xlu0 %1254, %v1127
        %v1256 = vpop.permute.xlu0 %1255
        %1258 = vset.pattern.permute.xlu0 1
        %1259 = vperm.xlu0 %1258, %v1128
        %v1260 = vpop.permute.xlu0 %1259
        %1262 = vset.pattern.permute.xlu0 1
        %1263 = vperm.xlu0 %1262, %v1129
        %v1264 = vpop.permute.xlu0 %1263
        %1266 = vset.pattern.permute.xlu0 1
        %1267 = vperm.xlu0 %1266, %v1130
        %v1268 = vpop.permute.xlu0 %1267
        %1270 = vset.pattern.permute.xlu0 1
        %1271 = vperm.xlu0 %1270, %v1131
        %v1272 = vpop.permute.xlu0 %1271
        %1274 = vset.pattern.permute.xlu0 1
        %1275 = vperm.xlu0 %1274, %v1132
        %v1276 = vpop.permute.xlu0 %1275
        %1278 = vset.pattern.permute.xlu0 1
        %1279 = vperm.xlu0 %1278, %v1133
        %v1280 = vpop.permute.xlu0 %1279
        %1282 = vset.pattern.permute.xlu0 1
        %1283 = vperm.xlu0 %1282, %v1134
        %v1284 = vpop.permute.xlu0 %1283
        %1286 = vset.pattern.permute.xlu0 1
        %1287 = vperm.xlu0 %1286, %v1135
        %v1288 = vpop.permute.xlu0 %1287
        %1290 = vset.pattern.permute.xlu0 1
        %1291 = vperm.xlu0 %1290, %v1136
        %v1292 = vpop.permute.xlu0 %1291
        %1294 = vset.pattern.permute.xlu0 1
        %1295 = vperm.xlu0 %1294, %v1137
        %v1296 = vpop.permute.xlu0 %1295
        %v1298 = vmul.f32 %v1236, %v250
        %v1299 = vmul.f32 %v1240, %v251
        %v1300 = vmul.f32 %v1244, %v252
        %v1301 = vmul.f32 %v1248, %v253
        %v1302 = vmul.f32 %v1252, %v254
        %v1303 = vmul.f32 %v1256, %v255
        %v1304 = vmul.f32 %v1260, %v256
        %v1305 = vmul.f32 %v1264, %v257
        %v1306 = vmul.f32 %v1268, %v258
        %v1307 = vmul.f32 %v1272, %v259
        %v1308 = vmul.f32 %v1276, %v260
        %v1309 = vmul.f32 %v1280, %v261
        %v1310 = vmul.f32 %v1284, %v262
        %v1311 = vmul.f32 %v1288, %v263
        %v1312 = vmul.f32 %v1292, %v264
        %v1313 = vmul.f32 %v1296, %v265
        %1330 = vrot.lane.b32.xlu0 %v1298, 96
        %v1331 = vpop.permute.xlu0 %1330
        %1332 = vrot.lane.b32.xlu0 %v1299, 96
        %v1333 = vpop.permute.xlu0 %1332
        %1334 = vrot.lane.b32.xlu0 %v1300, 96
        %v1335 = vpop.permute.xlu0 %1334
        %1336 = vrot.lane.b32.xlu0 %v1301, 96
        %v1337 = vpop.permute.xlu0 %1336
        %1338 = vrot.lane.b32.xlu0 %v1302, 96
        %v1339 = vpop.permute.xlu0 %1338
        %1340 = vrot.lane.b32.xlu0 %v1303, 96
        %v1341 = vpop.permute.xlu0 %1340
        %1342 = vrot.lane.b32.xlu0 %v1304, 96
        %v1343 = vpop.permute.xlu0 %1342
        %1344 = vrot.lane.b32.xlu0 %v1305, 96
        %v1345 = vpop.permute.xlu0 %1344
        %1346 = vrot.lane.b32.xlu0 %v1306, 96
        %v1347 = vpop.permute.xlu0 %1346
        %1348 = vrot.lane.b32.xlu0 %v1307, 96
        %v1349 = vpop.permute.xlu0 %1348
        %1350 = vrot.lane.b32.xlu0 %v1308, 96
        %v1351 = vpop.permute.xlu0 %1350
        %1352 = vrot.lane.b32.xlu0 %v1309, 96
        %v1353 = vpop.permute.xlu0 %1352
        %1354 = vrot.lane.b32.xlu0 %v1310, 96
        %v1355 = vpop.permute.xlu0 %1354
        %1356 = vrot.lane.b32.xlu0 %v1311, 96
        %v1357 = vpop.permute.xlu0 %1356
        %1358 = vrot.lane.b32.xlu0 %v1312, 96
        %v1359 = vpop.permute.xlu0 %1358
        %1360 = vrot.lane.b32.xlu0 %v1313, 96
        %v1361 = vpop.permute.xlu0 %1360
        %v1378 = vadd.f32 %v1218, %v1331
        %v1379 = vadd.f32 %v1219, %v1333
        %v1380 = vadd.f32 %v1220, %v1335
        %v1381 = vadd.f32 %v1221, %v1337
        %v1382 = vadd.f32 %v1222, %v1339
        %v1383 = vadd.f32 %v1223, %v1341
        %v1384 = vadd.f32 %v1224, %v1343
        %v1385 = vadd.f32 %v1225, %v1345
        %v1386 = vadd.f32 %v1226, %v1347
        %v1387 = vadd.f32 %v1227, %v1349
        %v1388 = vadd.f32 %v1228, %v1351
        %v1389 = vadd.f32 %v1229, %v1353
        %v1390 = vadd.f32 %v1230, %v1355
        %v1391 = vadd.f32 %v1231, %v1357
        %v1392 = vadd.f32 %v1232, %v1359
        %v1393 = vadd.f32 %v1233, %v1361
        %1394 = vset.pattern.permute.xlu0 2
        %1395 = vperm.xlu0 %1394, %v1122
        %v1396 = vpop.permute.xlu0 %1395
        %1398 = vset.pattern.permute.xlu0 2
        %1399 = vperm.xlu0 %1398, %v1123
        %v1400 = vpop.permute.xlu0 %1399
        %1402 = vset.pattern.permute.xlu0 2
        %1403 = vperm.xlu0 %1402, %v1124
        %v1404 = vpop.permute.xlu0 %1403
        %1406 = vset.pattern.permute.xlu0 2
        %1407 = vperm.xlu0 %1406, %v1125
        %v1408 = vpop.permute.xlu0 %1407
        %1410 = vset.pattern.permute.xlu0 2
        %1411 = vperm.xlu0 %1410, %v1126
        %v1412 = vpop.permute.xlu0 %1411
        %1414 = vset.pattern.permute.xlu0 2
        %1415 = vperm.xlu0 %1414, %v1127
        %v1416 = vpop.permute.xlu0 %1415
        %1418 = vset.pattern.permute.xlu0 2
        %1419 = vperm.xlu0 %1418, %v1128
        %v1420 = vpop.permute.xlu0 %1419
        %1422 = vset.pattern.permute.xlu0 2
        %1423 = vperm.xlu0 %1422, %v1129
        %v1424 = vpop.permute.xlu0 %1423
        %1426 = vset.pattern.permute.xlu0 2
        %1427 = vperm.xlu0 %1426, %v1130
        %v1428 = vpop.permute.xlu0 %1427
        %1430 = vset.pattern.permute.xlu0 2
        %1431 = vperm.xlu0 %1430, %v1131
        %v1432 = vpop.permute.xlu0 %1431
        %1434 = vset.pattern.permute.xlu0 2
        %1435 = vperm.xlu0 %1434, %v1132
        %v1436 = vpop.permute.xlu0 %1435
        %1438 = vset.pattern.permute.xlu0 2
        %1439 = vperm.xlu0 %1438, %v1133
        %v1440 = vpop.permute.xlu0 %1439
        %1442 = vset.pattern.permute.xlu0 2
        %1443 = vperm.xlu0 %1442, %v1134
        %v1444 = vpop.permute.xlu0 %1443
        %1446 = vset.pattern.permute.xlu0 2
        %1447 = vperm.xlu0 %1446, %v1135
        %v1448 = vpop.permute.xlu0 %1447
        %1450 = vset.pattern.permute.xlu0 2
        %1451 = vperm.xlu0 %1450, %v1136
        %v1452 = vpop.permute.xlu0 %1451
        %1454 = vset.pattern.permute.xlu0 2
        %1455 = vperm.xlu0 %1454, %v1137
        %v1456 = vpop.permute.xlu0 %1455
        %v1458 = vmul.f32 %v1396, %v250
        %v1459 = vmul.f32 %v1400, %v251
        %v1460 = vmul.f32 %v1404, %v252
        %v1461 = vmul.f32 %v1408, %v253
        %v1462 = vmul.f32 %v1412, %v254
        %v1463 = vmul.f32 %v1416, %v255
        %v1464 = vmul.f32 %v1420, %v256
        %v1465 = vmul.f32 %v1424, %v257
        %v1466 = vmul.f32 %v1428, %v258
        %v1467 = vmul.f32 %v1432, %v259
        %v1468 = vmul.f32 %v1436, %v260
        %v1469 = vmul.f32 %v1440, %v261
        %v1470 = vmul.f32 %v1444, %v262
        %v1471 = vmul.f32 %v1448, %v263
        %v1472 = vmul.f32 %v1452, %v264
        %v1473 = vmul.f32 %v1456, %v265
        %1490 = vrot.lane.b32.xlu0 %v1458, 64
        %v1491 = vpop.permute.xlu0 %1490
        %1492 = vrot.lane.b32.xlu0 %v1459, 64
        %v1493 = vpop.permute.xlu0 %1492
        %1494 = vrot.lane.b32.xlu0 %v1460, 64
        %v1495 = vpop.permute.xlu0 %1494
        %1496 = vrot.lane.b32.xlu0 %v1461, 64
        %v1497 = vpop.permute.xlu0 %1496
        %1498 = vrot.lane.b32.xlu0 %v1462, 64
        %v1499 = vpop.permute.xlu0 %1498
        %1500 = vrot.lane.b32.xlu0 %v1463, 64
        %v1501 = vpop.permute.xlu0 %1500
        %1502 = vrot.lane.b32.xlu0 %v1464, 64
        %v1503 = vpop.permute.xlu0 %1502
        %1504 = vrot.lane.b32.xlu0 %v1465, 64
        %v1505 = vpop.permute.xlu0 %1504
        %1506 = vrot.lane.b32.xlu0 %v1466, 64
        %v1507 = vpop.permute.xlu0 %1506
        %1508 = vrot.lane.b32.xlu0 %v1467, 64
        %v1509 = vpop.permute.xlu0 %1508
        %1510 = vrot.lane.b32.xlu0 %v1468, 64
        %v1511 = vpop.permute.xlu0 %1510
        %1512 = vrot.lane.b32.xlu0 %v1469, 64
        %v1513 = vpop.permute.xlu0 %1512
        %1514 = vrot.lane.b32.xlu0 %v1470, 64
        %v1515 = vpop.permute.xlu0 %1514
        %1516 = vrot.lane.b32.xlu0 %v1471, 64
        %v1517 = vpop.permute.xlu0 %1516
        %1518 = vrot.lane.b32.xlu0 %v1472, 64
        %v1519 = vpop.permute.xlu0 %1518
        %1520 = vrot.lane.b32.xlu0 %v1473, 64
        %v1521 = vpop.permute.xlu0 %1520
        %v1538 = vadd.f32 %v1378, %v1491
        %v1539 = vadd.f32 %v1379, %v1493
        %v1540 = vadd.f32 %v1380, %v1495
        %v1541 = vadd.f32 %v1381, %v1497
        %v1542 = vadd.f32 %v1382, %v1499
        %v1543 = vadd.f32 %v1383, %v1501
        %v1544 = vadd.f32 %v1384, %v1503
        %v1545 = vadd.f32 %v1385, %v1505
        %v1546 = vadd.f32 %v1386, %v1507
        %v1547 = vadd.f32 %v1387, %v1509
        %v1548 = vadd.f32 %v1388, %v1511
        %v1549 = vadd.f32 %v1389, %v1513
        %v1550 = vadd.f32 %v1390, %v1515
        %v1551 = vadd.f32 %v1391, %v1517
        %v1552 = vadd.f32 %v1392, %v1519
        %v1553 = vadd.f32 %v1393, %v1521
        %v1554 = vpack.c.bf16 %v1539, %v1538
        %v1555 = vpack.c.bf16 %v1541, %v1540
        %v1556 = vpack.c.bf16 %v1543, %v1542
        %v1557 = vpack.c.bf16 %v1545, %v1544
        %v1558 = vpack.c.bf16 %v1547, %v1546
        %v1559 = vpack.c.bf16 %v1549, %v1548
        %v1560 = vpack.c.bf16 %v1551, %v1550
        %v1561 = vpack.c.bf16 %v1553, %v1552
        %v1562 = vld [vmem:[#allocation4 + $0x10] sm:$0xff]
        %v1563 = vld [vmem:[#allocation4 + $0x18] sm:$0xf]
        %v1564 = vld [vmem:[#allocation4 + $0x30] sm:$0xff]
        %v1565 = vld [vmem:[#allocation4 + $0x38] sm:$0xf]
        %v1566 = vld [vmem:[#allocation4 + $0x50] sm:$0xff]
        %v1567 = vld [vmem:[#allocation4 + $0x58] sm:$0xf]
        %v1568 = vld [vmem:[#allocation4 + $0x70] sm:$0xff]
        %v1569 = vld [vmem:[#allocation4 + $0x78] sm:$0xf]
        %v1570 = vld [vmem:[%s3 + $0x4] sm:$0x7]
        %v1572 = vlaneseq
        %v1573 = vshrl.u32 %v1572, 7
        %v1574 = vsub.s32 0, %v1573
        %v1575 = vrot.slane %v1570, %v1574
        %v1576 = vlaneseq
        %v1577 = vshrl.u32 %v1576, 7
        %v1578 = vsub.s32 1, %v1577
        %v1579 = vrot.slane %v1570, %v1578
        %v1580 = vlaneseq
        %v1581 = vshrl.u32 %v1580, 7
        %v1582 = vsub.s32 2, %v1581
        %v1583 = vrot.slane %v1570, %v1582
        %v1595 = vunpack.c.l.b16 %v1562
        %v1596 = vunpack.c.h.b16 %v1562
        %v1597 = vunpack.c.l.b16 %v1563
        %v1598 = vunpack.c.l.b16 %v1564
        %v1599 = vunpack.c.h.b16 %v1564
        %v1600 = vunpack.c.l.b16 %v1565
        %v1601 = vunpack.c.l.b16 %v1566
        %v1602 = vunpack.c.h.b16 %v1566
        %v1603 = vunpack.c.l.b16 %v1567
        %v1604 = vunpack.c.l.b16 %v1568
        %v1605 = vunpack.c.h.b16 %v1568
        %v1606 = vunpack.c.l.b16 %v1569
        %v1607 = vpack.c.b16 %v1598, %v1595
        %v1608 = vpack.c.b16 %v1599, %v1596
        %v1609 = vpack.c.b16 %v1600, %v1597
        %v1610 = vpack.c.b16 %v1604, %v1601
        %v1611 = vpack.c.b16 %v1605, %v1602
        %v1612 = vpack.c.b16 %v1606, %v1603
        %vm1619 = vcmask 261120
        %v1621 = vsel %vm1619, %v1554, 0
        %v1624 = vsel %vm1619, %v1555, 0
        %v1627 = vsel %vm1619, %v1556, 0
        %v1630 = vsel %vm1619, %v1557, 0
        %v1633 = vsel %vm1619, %v1558, 0
        %v1636 = vsel %vm1619, %v1559, 0
        %v1639 = vsel %vm1619, %v1560, 0
        %v1642 = vsel %vm1619, %v1561, 0
        %1644 = vmatprep.subr.bf16.mxu0 %v1608
        %1645 = vmatpush1.bf16.msra.mxu0 %v1607
        %1646 = vmatprep.subr.bf16.mxu0 %v1611
        %1647 = vmatpush1.bf16.msra.mxu0 %v1610
        %1648 = vmatprep.subr.bf16.mxu0 0
        %1649 = vmatpush1.bf16.msra.mxu0 0
        %1650 = vmatprep.subr.bf16.mxu0 0
        %1651 = vmatpush1.bf16.msra.mxu0 0
        %1652 = vmatprep.subr.bf16.mxu0 0
        %1653 = vmatpush1.bf16.msra.mxu0 0
        %1654 = vmatprep.subr.bf16.mxu0 0
        %1655 = vmatpush1.bf16.msra.mxu0 0
        %1656 = vmatprep.subr.bf16.mxu0 0
        %1657 = vmatpush1.bf16.msra.mxu0 0
        %1658 = vmatprep.subr.bf16.mxu0 0
        %1659 = vmatpush1.bf16.msra.mxu0 0
        %1660 = vmatprep.subr.bf16.mxu0 0
        %1661 = vmatpush1.bf16.msra.mxu0 0
        %1662 = vmatprep.subr.bf16.mxu0 0
        %1663 = vmatpush1.bf16.msra.mxu0 0
        %1664 = vmatprep.subr.bf16.mxu0 0
        %1665 = vmatpush1.bf16.msra.mxu0 0
        %1666 = vmatprep.subr.bf16.mxu0 0
        %1667 = vmatpush1.bf16.msra.mxu0 0
        %1668 = vmatprep.subr.bf16.mxu0 0
        %1669 = vmatpush1.bf16.msra.mxu0 0
        %1670 = vmatprep.subr.bf16.mxu0 0
        %1671 = vmatpush1.bf16.msra.mxu0 0
        %1672 = vmatprep.subr.bf16.mxu0 0
        %1673 = vmatpush1.bf16.msra.mxu0 0
        %1674 = vmatprep.subr.bf16.mxu0 0
        %1675 = vmatpush1.bf16.msra.mxu0 0
        %1676 = vmatprep.mubr.bf16.mxu0 0
        %1677 = vmatmul.mubr.bf16.gmra.mrb[0].mxu0 %v1621
        %v1678 = vpop.f32.mrb[0].mxu0
        %v1679 = vadd.f32 %v1575, %v1678
        %v1680 = vpop.f32.mrb[0].mxu0
        %v1681 = vadd.f32 %v1579, %v1680
        %v1682 = vpop.f32.mrb[0].mxu0
        %v1683 = vadd.f32 %v1575, %v1682
        %v1684 = vpop.f32.mrb[0].mxu0
        %v1685 = vadd.f32 %v1579, %v1684
        %1686 = vmatprep.mubr.bf16.mxu0 0
        %1687 = vmatmul.mubr.bf16.gmra.mrb[0].mxu0 %v1624
        %v1688 = vpop.f32.mrb[0].mxu0
        %v1689 = vadd.f32 %v1575, %v1688
        %v1690 = vpop.f32.mrb[0].mxu0
        %v1691 = vadd.f32 %v1579, %v1690
        %v1692 = vpop.f32.mrb[0].mxu0
        %v1693 = vadd.f32 %v1575, %v1692
        %v1694 = vpop.f32.mrb[0].mxu0
        %v1695 = vadd.f32 %v1579, %v1694
        %1696 = vmatprep.mubr.bf16.mxu0 0
        %1697 = vmatmul.mubr.bf16.gmra.mrb[0].mxu0 %v1627
        %v1698 = vpop.f32.mrb[0].mxu0
        %v1699 = vadd.f32 %v1575, %v1698
        %v1700 = vpop.f32.mrb[0].mxu0
        %v1701 = vadd.f32 %v1579, %v1700
        %v1702 = vpop.f32.mrb[0].mxu0
        %v1703 = vadd.f32 %v1575, %v1702
        %v1704 = vpop.f32.mrb[0].mxu0
        %v1705 = vadd.f32 %v1579, %v1704
        %1706 = vmatprep.mubr.bf16.mxu0 0
        %1707 = vmatmul.mubr.bf16.gmra.mrb[0].mxu0 %v1630
        %v1708 = vpop.f32.mrb[0].mxu0
        %v1709 = vadd.f32 %v1575, %v1708
        %v1710 = vpop.f32.mrb[0].mxu0
        %v1711 = vadd.f32 %v1579, %v1710
        %v1712 = vpop.f32.mrb[0].mxu0
        %v1713 = vadd.f32 %v1575, %v1712
        %v1714 = vpop.f32.mrb[0].mxu0
        %v1715 = vadd.f32 %v1579, %v1714
        %1716 = vmatprep.mubr.bf16.mxu0 0
        %1717 = vmatmul.mubr.bf16.gmra.mrb[0].mxu0 %v1633
        %v1718 = vpop.f32.mrb[0].mxu0
        %v1719 = vadd.f32 %v1575, %v1718
        %v1720 = vpop.f32.mrb[0].mxu0
        %v1721 = vadd.f32 %v1579, %v1720
        %v1722 = vpop.f32.mrb[0].mxu0
        %v1723 = vadd.f32 %v1575, %v1722
        %v1724 = vpop.f32.mrb[0].mxu0
        %v1725 = vadd.f32 %v1579, %v1724
        %1726 = vmatprep.mubr.bf16.mxu0 0
        %1727 = vmatmul.mubr.bf16.gmra.mrb[0].mxu0 %v1636
        %v1728 = vpop.f32.mrb[0].mxu0
        %v1729 = vadd.f32 %v1575, %v1728
        %v1730 = vpop.f32.mrb[0].mxu0
        %v1731 = vadd.f32 %v1579, %v1730
        %v1732 = vpop.f32.mrb[0].mxu0
        %v1733 = vadd.f32 %v1575, %v1732
        %v1734 = vpop.f32.mrb[0].mxu0
        %v1735 = vadd.f32 %v1579, %v1734
        %1736 = vmatprep.mubr.bf16.mxu0 0
        %1737 = vmatmul.mubr.bf16.gmra.mrb[0].mxu0 %v1639
        %v1738 = vpop.f32.mrb[0].mxu0
        %v1739 = vadd.f32 %v1575, %v1738
        %v1740 = vpop.f32.mrb[0].mxu0
        %v1741 = vadd.f32 %v1579, %v1740
        %v1742 = vpop.f32.mrb[0].mxu0
        %v1743 = vadd.f32 %v1575, %v1742
        %v1744 = vpop.f32.mrb[0].mxu0
        %v1745 = vadd.f32 %v1579, %v1744
        %1746 = vmatprep.mubr.bf16.mxu0 0
        %1747 = vmatmul.mubr.bf16.gmra.mrb[0].mxu0 %v1642
        %v1748 = vpop.f32.mrb[0].mxu0
        %v1749 = vadd.f32 %v1575, %v1748
        %v1750 = vpop.f32.mrb[0].mxu0
        %v1751 = vadd.f32 %v1579, %v1750
        %v1752 = vpop.f32.mrb[0].mxu0
        %v1753 = vadd.f32 %v1575, %v1752
        %v1754 = vpop.f32.mrb[0].mxu0
        %v1755 = vadd.f32 %v1579, %v1754
        %1756 = vdwg.mxu0
        %1757 = vmatprep.subr.bf16.mxu0 0
        %1758 = vmatpush1.bf16.msra.mxu0 %v1609
        %1759 = vmatprep.subr.bf16.mxu0 0
        %1760 = vmatpush1.bf16.msra.mxu0 %v1612
        %1761 = vmatprep.subr.bf16.mxu0 0
        %1762 = vmatpush1.bf16.msra.mxu0 0
        %1763 = vmatprep.subr.bf16.mxu0 0
        %1764 = vmatpush1.bf16.msra.mxu0 0
        %1765 = vmatprep.subr.bf16.mxu0 0
        %1766 = vmatpush1.bf16.msra.mxu0 0
        %1767 = vmatprep.subr.bf16.mxu0 0
        %1768 = vmatpush1.bf16.msra.mxu0 0
        %1769 = vmatprep.subr.bf16.mxu0 0
        %1770 = vmatpush1.bf16.msra.mxu0 0
        %1771 = vmatprep.subr.bf16.mxu0 0
        %1772 = vmatpush1.bf16.msra.mxu0 0
        %1773 = vmatprep.subr.bf16.mxu0 0
        %1774 = vmatpush1.bf16.msra.mxu0 0
        %1775 = vmatprep.subr.bf16.mxu0 0
        %1776 = vmatpush1.bf16.msra.mxu0 0
        %1777 = vmatprep.subr.bf16.mxu0 0
        %1778 = vmatpush1.bf16.msra.mxu0 0
        %1779 = vmatprep.subr.bf16.mxu0 0
        %1780 = vmatpush1.bf16.msra.mxu0 0
        %1781 = vmatprep.subr.bf16.mxu0 0
        %1782 = vmatpush1.bf16.msra.mxu0 0
        %1783 = vmatprep.subr.bf16.mxu0 0
        %1784 = vmatpush1.bf16.msra.mxu0 0
        %1785 = vmatprep.subr.bf16.mxu0 0
        %1786 = vmatpush1.bf16.msra.mxu0 0
        %1787 = vmatprep.subr.bf16.mxu0 0
        %1788 = vmatpush1.bf16.msra.mxu0 0
        %1789 = vmatprep.mubr.bf16.mxu0 0
        %1790 = vmatmul.mubr.bf16.gmra.mrb[0].mxu0 %v1621
        %v1791 = vpop.f32.mrb[0].mxu0
        %v1792 = vadd.f32 %v1583, %v1791
        %v1793 = vpop.f32.mrb[0].mxu0
        %v1794 = vpop.f32.mrb[0].mxu0
        %v1795 = vadd.f32 %v1583, %v1794
        %v1796 = vpop.f32.mrb[0].mxu0
        %1797 = vmatprep.mubr.bf16.mxu0 0
        %1798 = vmatmul.mubr.bf16.gmra.mrb[0].mxu0 %v1624
        %v1799 = vpop.f32.mrb[0].mxu0
        %v1800 = vadd.f32 %v1583, %v1799
        %v1801 = vpop.f32.mrb[0].mxu0
        %v1802 = vpop.f32.mrb[0].mxu0
        %v1803 = vadd.f32 %v1583, %v1802
        %v1804 = vpop.f32.mrb[0].mxu0
        %1805 = vmatprep.mubr.bf16.mxu0 0
        %1806 = vmatmul.mubr.bf16.gmra.mrb[0].mxu0 %v1627
        %v1807 = vpop.f32.mrb[0].mxu0
        %v1808 = vadd.f32 %v1583, %v1807
        %v1809 = vpop.f32.mrb[0].mxu0
        %v1810 = vpop.f32.mrb[0].mxu0
        %v1811 = vadd.f32 %v1583, %v1810
        %v1812 = vpop.f32.mrb[0].mxu0
        %1813 = vmatprep.mubr.bf16.mxu0 0
        %1814 = vmatmul.mubr.bf16.gmra.mrb[0].mxu0 %v1630
        %v1815 = vpop.f32.mrb[0].mxu0
        %v1816 = vadd.f32 %v1583, %v1815
        %v1817 = vpop.f32.mrb[0].mxu0
        %v1818 = vpop.f32.mrb[0].mxu0
        %v1819 = vadd.f32 %v1583, %v1818
        %v1820 = vpop.f32.mrb[0].mxu0
        %1821 = vmatprep.mubr.bf16.mxu0 0
        %1822 = vmatmul.mubr.bf16.gmra.mrb[0].mxu0 %v1633
        %v1823 = vpop.f32.mrb[0].mxu0
        %v1824 = vadd.f32 %v1583, %v1823
        %v1825 = vpop.f32.mrb[0].mxu0
        %v1826 = vpop.f32.mrb[0].mxu0
        %v1827 = vadd.f32 %v1583, %v1826
        %v1828 = vpop.f32.mrb[0].mxu0
        %1829 = vmatprep.mubr.bf16.mxu0 0
        %1830 = vmatmul.mubr.bf16.gmra.mrb[0].mxu0 %v1636
        %v1831 = vpop.f32.mrb[0].mxu0
        %v1832 = vadd.f32 %v1583, %v1831
        %v1833 = vpop.f32.mrb[0].mxu0
        %v1834 = vpop.f32.mrb[0].mxu0
        %v1835 = vadd.f32 %v1583, %v1834
        %v1836 = vpop.f32.mrb[0].mxu0
        %1837 = vmatprep.mubr.bf16.mxu0 0
        %1838 = vmatmul.mubr.bf16.gmra.mrb[0].mxu0 %v1639
        %v1839 = vpop.f32.mrb[0].mxu0
        %v1840 = vadd.f32 %v1583, %v1839
        %v1841 = vpop.f32.mrb[0].mxu0
        %v1842 = vpop.f32.mrb[0].mxu0
        %v1843 = vadd.f32 %v1583, %v1842
        %v1844 = vpop.f32.mrb[0].mxu0
        %1845 = vmatprep.mubr.bf16.mxu0 0
        %1846 = vmatmul.mubr.bf16.gmra.mrb[0].mxu0 %v1642
        %v1847 = vpop.f32.mrb[0].mxu0
        %v1848 = vadd.f32 %v1583, %v1847
        %v1849 = vpop.f32.mrb[0].mxu0
        %v1850 = vpop.f32.mrb[0].mxu0
        %v1851 = vadd.f32 %v1583, %v1850
        %v1852 = vpop.f32.mrb[0].mxu0
        %1853 = vdwg.mxu0
        %v1854 = vmul.f32 %v1679, 0.5
        %v1855 = vmul.f32 %v1681, 0.5
        %v1856 = vmul.f32 %v1792, 0.5
        %v1857 = vmul.f32 %v1683, 0.5
        %v1858 = vmul.f32 %v1685, 0.5
        %v1859 = vmul.f32 %v1795, 0.5
        %v1860 = vmul.f32 %v1689, 0.5
        %v1861 = vmul.f32 %v1691, 0.5
        %v1862 = vmul.f32 %v1800, 0.5
        %v1863 = vmul.f32 %v1693, 0.5
        %v1864 = vmul.f32 %v1695, 0.5
        %v1865 = vmul.f32 %v1803, 0.5
        %v1866 = vmul.f32 %v1699, 0.5
        %v1867 = vmul.f32 %v1701, 0.5
        %v1868 = vmul.f32 %v1808, 0.5
        %v1869 = vmul.f32 %v1703, 0.5
        %v1870 = vmul.f32 %v1705, 0.5
        %v1871 = vmul.f32 %v1811, 0.5
        %v1872 = vmul.f32 %v1709, 0.5
        %v1873 = vmul.f32 %v1711, 0.5
        %v1874 = vmul.f32 %v1816, 0.5
        %v1875 = vmul.f32 %v1713, 0.5
        %v1876 = vmul.f32 %v1715, 0.5
        %v1877 = vmul.f32 %v1819, 0.5
        %v1878 = vmul.f32 %v1719, 0.5
        %v1879 = vmul.f32 %v1721, 0.5
        %v1880 = vmul.f32 %v1824, 0.5
        %v1881 = vmul.f32 %v1723, 0.5
        %v1882 = vmul.f32 %v1725, 0.5
        %v1883 = vmul.f32 %v1827, 0.5
        %v1884 = vmul.f32 %v1729, 0.5
        %v1885 = vmul.f32 %v1731, 0.5
        %v1886 = vmul.f32 %v1832, 0.5
        %v1887 = vmul.f32 %v1733, 0.5
        %v1888 = vmul.f32 %v1735, 0.5
        %v1889 = vmul.f32 %v1835, 0.5
        %v1890 = vmul.f32 %v1739, 0.5
        %v1891 = vmul.f32 %v1741, 0.5
        %v1892 = vmul.f32 %v1840, 0.5
        %v1893 = vmul.f32 %v1743, 0.5
        %v1894 = vmul.f32 %v1745, 0.5
        %v1895 = vmul.f32 %v1843, 0.5
        %v1896 = vmul.f32 %v1749, 0.5
        %v1897 = vmul.f32 %v1751, 0.5
        %v1898 = vmul.f32 %v1848, 0.5
        %v1899 = vmul.f32 %v1753, 0.5
        %v1900 = vmul.f32 %v1755, 0.5
        %v1901 = vmul.f32 %v1851, 0.5
        %v1902 = vmul.f32 %v1679, 0.7978846
        %v1903 = vmul.f32 %v1681, 0.7978846
        %v1904 = vmul.f32 %v1792, 0.7978846
        %v1905 = vmul.f32 %v1683, 0.7978846
        %v1906 = vmul.f32 %v1685, 0.7978846
        %v1907 = vmul.f32 %v1795, 0.7978846
        %v1908 = vmul.f32 %v1689, 0.7978846
        %v1909 = vmul.f32 %v1691, 0.7978846
        %v1910 = vmul.f32 %v1800, 0.7978846
        %v1911 = vmul.f32 %v1693, 0.7978846
        %v1912 = vmul.f32 %v1695, 0.7978846
        %v1913 = vmul.f32 %v1803, 0.7978846
        %v1914 = vmul.f32 %v1699, 0.7978846
        %v1915 = vmul.f32 %v1701, 0.7978846
        %v1916 = vmul.f32 %v1808, 0.7978846
        %v1917 = vmul.f32 %v1703, 0.7978846
        %v1918 = vmul.f32 %v1705, 0.7978846
        %v1919 = vmul.f32 %v1811, 0.7978846
        %v1920 = vmul.f32 %v1709, 0.7978846
        %v1921 = vmul.f32 %v1711, 0.7978846
        %v1922 = vmul.f32 %v1816, 0.7978846
        %v1923 = vmul.f32 %v1713, 0.7978846
        %v1924 = vmul.f32 %v1715, 0.7978846
        %v1925 = vmul.f32 %v1819, 0.7978846
        %v1926 = vmul.f32 %v1719, 0.7978846
        %v1927 = vmul.f32 %v1721, 0.7978846
        %v1928 = vmul.f32 %v1824, 0.7978846
        %v1929 = vmul.f32 %v1723, 0.7978846
        %v1930 = vmul.f32 %v1725, 0.7978846
        %v1931 = vmul.f32 %v1827, 0.7978846
        %v1932 = vmul.f32 %v1729, 0.7978846
        %v1933 = vmul.f32 %v1731, 0.7978846
        %v1934 = vmul.f32 %v1832, 0.7978846
        %v1935 = vmul.f32 %v1733, 0.7978846
        %v1936 = vmul.f32 %v1735, 0.7978846
        %v1937 = vmul.f32 %v1835, 0.7978846
        %v1938 = vmul.f32 %v1739, 0.7978846
        %v1939 = vmul.f32 %v1741, 0.7978846
        %v1940 = vmul.f32 %v1840, 0.7978846
        %v1941 = vmul.f32 %v1743, 0.7978846
        %v1942 = vmul.f32 %v1745, 0.7978846
        %v1943 = vmul.f32 %v1843, 0.7978846
        %v1944 = vmul.f32 %v1749, 0.7978846
        %v1945 = vmul.f32 %v1751, 0.7978846
        %v1946 = vmul.f32 %v1848, 0.7978846
        %v1947 = vmul.f32 %v1753, 0.7978846
        %v1948 = vmul.f32 %v1755, 0.7978846
        %v1949 = vmul.f32 %v1851, 0.7978846
        %v1950 = vmul.f32 %v1679, 0.044715
        %v1951 = vmul.f32 %v1681, 0.044715
        %v1952 = vmul.f32 %v1792, 0.044715
        %v1953 = vmul.f32 %v1683, 0.044715
        %v1954 = vmul.f32 %v1685, 0.044715
        %v1955 = vmul.f32 %v1795, 0.044715
        %v1956 = vmul.f32 %v1689, 0.044715
        %v1957 = vmul.f32 %v1691, 0.044715
        %v1958 = vmul.f32 %v1800, 0.044715
        %v1959 = vmul.f32 %v1693, 0.044715
        %v1960 = vmul.f32 %v1695, 0.044715
        %v1961 = vmul.f32 %v1803, 0.044715
        %v1962 = vmul.f32 %v1699, 0.044715
        %v1963 = vmul.f32 %v1701, 0.044715
        %v1964 = vmul.f32 %v1808, 0.044715
        %v1965 = vmul.f32 %v1703, 0.044715
        %v1966 = vmul.f32 %v1705, 0.044715
        %v1967 = vmul.f32 %v1811, 0.044715
        %v1968 = vmul.f32 %v1709, 0.044715
        %v1969 = vmul.f32 %v1711, 0.044715
        %v1970 = vmul.f32 %v1816, 0.044715
        %v1971 = vmul.f32 %v1713, 0.044715
        %v1972 = vmul.f32 %v1715, 0.044715
        %v1973 = vmul.f32 %v1819, 0.044715
        %v1974 = vmul.f32 %v1719, 0.044715
        %v1975 = vmul.f32 %v1721, 0.044715
        %v1976 = vmul.f32 %v1824, 0.044715
        %v1977 = vmul.f32 %v1723, 0.044715
        %v1978 = vmul.f32 %v1725, 0.044715
        %v1979 = vmul.f32 %v1827, 0.044715
        %v1980 = vmul.f32 %v1729, 0.044715
        %v1981 = vmul.f32 %v1731, 0.044715
        %v1982 = vmul.f32 %v1832, 0.044715
        %v1983 = vmul.f32 %v1733, 0.044715
        %v1984 = vmul.f32 %v1735, 0.044715
        %v1985 = vmul.f32 %v1835, 0.044715
        %v1986 = vmul.f32 %v1739, 0.044715
        %v1987 = vmul.f32 %v1741, 0.044715
        %v1988 = vmul.f32 %v1840, 0.044715
        %v1989 = vmul.f32 %v1743, 0.044715
        %v1990 = vmul.f32 %v1745, 0.044715
        %v1991 = vmul.f32 %v1843, 0.044715
        %v1992 = vmul.f32 %v1749, 0.044715
        %v1993 = vmul.f32 %v1751, 0.044715
        %v1994 = vmul.f32 %v1848, 0.044715
        %v1995 = vmul.f32 %v1753, 0.044715
        %v1996 = vmul.f32 %v1755, 0.044715
        %v1997 = vmul.f32 %v1851, 0.044715
        %v1998 = vmul.f32 %v1950, %v1679
        %v1999 = vmul.f32 %v1951, %v1681
        %v2000 = vmul.f32 %v1952, %v1792
        %v2001 = vmul.f32 %v1953, %v1683
        %v2002 = vmul.f32 %v1954, %v1685
        %v2003 = vmul.f32 %v1955, %v1795
        %v2004 = vmul.f32 %v1956, %v1689
        %v2005 = vmul.f32 %v1957, %v1691
        %v2006 = vmul.f32 %v1958, %v1800
        %v2007 = vmul.f32 %v1959, %v1693
        %v2008 = vmul.f32 %v1960, %v1695
        %v2009 = vmul.f32 %v1961, %v1803
        %v2010 = vmul.f32 %v1962, %v1699
        %v2011 = vmul.f32 %v1963, %v1701
        %v2012 = vmul.f32 %v1964, %v1808
        %v2013 = vmul.f32 %v1965, %v1703
        %v2014 = vmul.f32 %v1966, %v1705
        %v2015 = vmul.f32 %v1967, %v1811
        %v2016 = vmul.f32 %v1968, %v1709
        %v2017 = vmul.f32 %v1969, %v1711
        %v2018 = vmul.f32 %v1970, %v1816
        %v2019 = vmul.f32 %v1971, %v1713
        %v2020 = vmul.f32 %v1972, %v1715
        %v2021 = vmul.f32 %v1973, %v1819
        %v2022 = vmul.f32 %v1974, %v1719
        %v2023 = vmul.f32 %v1975, %v1721
        %v2024 = vmul.f32 %v1976, %v1824
        %v2025 = vmul.f32 %v1977, %v1723
        %v2026 = vmul.f32 %v1978, %v1725
        %v2027 = vmul.f32 %v1979, %v1827
        %v2028 = vmul.f32 %v1980, %v1729
        %v2029 = vmul.f32 %v1981, %v1731
        %v2030 = vmul.f32 %v1982, %v1832
        %v2031 = vmul.f32 %v1983, %v1733
        %v2032 = vmul.f32 %v1984, %v1735
        %v2033 = vmul.f32 %v1985, %v1835
        %v2034 = vmul.f32 %v1986, %v1739
        %v2035 = vmul.f32 %v1987, %v1741
        %v2036 = vmul.f32 %v1988, %v1840
        %v2037 = vmul.f32 %v1989, %v1743
        %v2038 = vmul.f32 %v1990, %v1745
        %v2039 = vmul.f32 %v1991, %v1843
        %v2040 = vmul.f32 %v1992, %v1749
        %v2041 = vmul.f32 %v1993, %v1751
        %v2042 = vmul.f32 %v1994, %v1848
        %v2043 = vmul.f32 %v1995, %v1753
        %v2044 = vmul.f32 %v1996, %v1755
        %v2045 = vmul.f32 %v1997, %v1851
        %v2046 = vadd.f32 %v1998, 1.0
        %v2047 = vadd.f32 %v1999, 1.0
        %v2048 = vadd.f32 %v2000, 1.0
        %v2049 = vadd.f32 %v2001, 1.0
        %v2050 = vadd.f32 %v2002, 1.0
        %v2051 = vadd.f32 %v2003, 1.0
        %v2052 = vadd.f32 %v2004, 1.0
        %v2053 = vadd.f32 %v2005, 1.0
        %v2054 = vadd.f32 %v2006, 1.0
        %v2055 = vadd.f32 %v2007, 1.0
        %v2056 = vadd.f32 %v2008, 1.0
        %v2057 = vadd.f32 %v2009, 1.0
        %v2058 = vadd.f32 %v2010, 1.0
        %v2059 = vadd.f32 %v2011, 1.0
        %v2060 = vadd.f32 %v2012, 1.0
        %v2061 = vadd.f32 %v2013, 1.0
        %v2062 = vadd.f32 %v2014, 1.0
        %v2063 = vadd.f32 %v2015, 1.0
        %v2064 = vadd.f32 %v2016, 1.0
        %v2065 = vadd.f32 %v2017, 1.0
        %v2066 = vadd.f32 %v2018, 1.0
        %v2067 = vadd.f32 %v2019, 1.0
        %v2068 = vadd.f32 %v2020, 1.0
        %v2069 = vadd.f32 %v2021, 1.0
        %v2070 = vadd.f32 %v2022, 1.0
        %v2071 = vadd.f32 %v2023, 1.0
        %v2072 = vadd.f32 %v2024, 1.0
        %v2073 = vadd.f32 %v2025, 1.0
        %v2074 = vadd.f32 %v2026, 1.0
        %v2075 = vadd.f32 %v2027, 1.0
        %v2076 = vadd.f32 %v2028, 1.0
        %v2077 = vadd.f32 %v2029, 1.0
        %v2078 = vadd.f32 %v2030, 1.0
        %v2079 = vadd.f32 %v2031, 1.0
        %v2080 = vadd.f32 %v2032, 1.0
        %v2081 = vadd.f32 %v2033, 1.0
        %v2082 = vadd.f32 %v2034, 1.0
        %v2083 = vadd.f32 %v2035, 1.0
        %v2084 = vadd.f32 %v2036, 1.0
        %v2085 = vadd.f32 %v2037, 1.0
        %v2086 = vadd.f32 %v2038, 1.0
        %v2087 = vadd.f32 %v2039, 1.0
        %v2088 = vadd.f32 %v2040, 1.0
        %v2089 = vadd.f32 %v2041, 1.0
        %v2090 = vadd.f32 %v2042, 1.0
        %v2091 = vadd.f32 %v2043, 1.0
        %v2092 = vadd.f32 %v2044, 1.0
        %v2093 = vadd.f32 %v2045, 1.0
        %v2094 = vmul.f32 %v1902, %v2046
        %v2095 = vmul.f32 %v1903, %v2047
        %v2096 = vmul.f32 %v1904, %v2048
        %v2097 = vmul.f32 %v1905, %v2049
        %v2098 = vmul.f32 %v1906, %v2050
        %v2099 = vmul.f32 %v1907, %v2051
        %v2100 = vmul.f32 %v1908, %v2052
        %v2101 = vmul.f32 %v1909, %v2053
        %v2102 = vmul.f32 %v1910, %v2054
        %v2103 = vmul.f32 %v1911, %v2055
        %v2104 = vmul.f32 %v1912, %v2056
        %v2105 = vmul.f32 %v1913, %v2057
        %v2106 = vmul.f32 %v1914, %v2058
        %v2107 = vmul.f32 %v1915, %v2059
        %v2108 = vmul.f32 %v1916, %v2060
        %v2109 = vmul.f32 %v1917, %v2061
        %v2110 = vmul.f32 %v1918, %v2062
        %v2111 = vmul.f32 %v1919, %v2063
        %v2112 = vmul.f32 %v1920, %v2064
        %v2113 = vmul.f32 %v1921, %v2065
        %v2114 = vmul.f32 %v1922, %v2066
        %v2115 = vmul.f32 %v1923, %v2067
        %v2116 = vmul.f32 %v1924, %v2068
        %v2117 = vmul.f32 %v1925, %v2069
        %v2118 = vmul.f32 %v1926, %v2070
        %v2119 = vmul.f32 %v1927, %v2071
        %v2120 = vmul.f32 %v1928, %v2072
        %v2121 = vmul.f32 %v1929, %v2073
        %v2122 = vmul.f32 %v1930, %v2074
        %v2123 = vmul.f32 %v1931, %v2075
        %v2124 = vmul.f32 %v1932, %v2076
        %v2125 = vmul.f32 %v1933, %v2077
        %v2126 = vmul.f32 %v1934, %v2078
        %v2127 = vmul.f32 %v1935, %v2079
        %v2128 = vmul.f32 %v1936, %v2080
        %v2129 = vmul.f32 %v1937, %v2081
        %v2130 = vmul.f32 %v1938, %v2082
        %v2131 = vmul.f32 %v1939, %v2083
        %v2132 = vmul.f32 %v1940, %v2084
        %v2133 = vmul.f32 %v1941, %v2085
        %v2134 = vmul.f32 %v1942, %v2086
        %v2135 = vmul.f32 %v1943, %v2087
        %v2136 = vmul.f32 %v1944, %v2088
        %v2137 = vmul.f32 %v1945, %v2089
        %v2138 = vmul.f32 %v1946, %v2090
        %v2139 = vmul.f32 %v1947, %v2091
        %v2140 = vmul.f32 %v1948, %v2092
        %v2141 = vmul.f32 %v1949, %v2093
        %v2142 = vtanh.pop %v2094
        %v2143 = vtanh.pop %v2095
        %v2144 = vtanh.pop %v2096
        %v2145 = vtanh.pop %v2097
        %v2146 = vtanh.pop %v2098
        %v2147 = vtanh.pop %v2099
        %v2148 = vtanh.pop %v2100
        %v2149 = vtanh.pop %v2101
        %v2150 = vtanh.pop %v2102
        %v2151 = vtanh.pop %v2103
        %v2152 = vtanh.pop %v2104
        %v2153 = vtanh.pop %v2105
        %v2154 = vtanh.pop %v2106
        %v2155 = vtanh.pop %v2107
        %v2156 = vtanh.pop %v2108
        %v2157 = vtanh.pop %v2109
        %v2158 = vtanh.pop %v2110
        %v2159 = vtanh.pop %v2111
        %v2160 = vtanh.pop %v2112
        %v2161 = vtanh.pop %v2113
        %v2162 = vtanh.pop %v2114
        %v2163 = vtanh.pop %v2115
        %v2164 = vtanh.pop %v2116
        %v2165 = vtanh.pop %v2117
        %v2166 = vtanh.pop %v2118
        %v2167 = vtanh.pop %v2119
        %v2168 = vtanh.pop %v2120
        %v2169 = vtanh.pop %v2121
        %v2170 = vtanh.pop %v2122
        %v2171 = vtanh.pop %v2123
        %v2172 = vtanh.pop %v2124
        %v2173 = vtanh.pop %v2125
        %v2174 = vtanh.pop %v2126
        %v2175 = vtanh.pop %v2127
        %v2176 = vtanh.pop %v2128
        %v2177 = vtanh.pop %v2129
        %v2178 = vtanh.pop %v2130
        %v2179 = vtanh.pop %v2131
        %v2180 = vtanh.pop %v2132
        %v2181 = vtanh.pop %v2133
        %v2182 = vtanh.pop %v2134
        %v2183 = vtanh.pop %v2135
        %v2184 = vtanh.pop %v2136
        %v2185 = vtanh.pop %v2137
        %v2186 = vtanh.pop %v2138
        %v2187 = vtanh.pop %v2139
        %v2188 = vtanh.pop %v2140
        %v2189 = vtanh.pop %v2141
        %v2190 = vadd.f32 %v2142, 1.0
        %v2191 = vadd.f32 %v2143, 1.0
        %v2192 = vadd.f32 %v2144, 1.0
        %v2193 = vadd.f32 %v2145, 1.0
        %v2194 = vadd.f32 %v2146, 1.0
        %v2195 = vadd.f32 %v2147, 1.0
        %v2196 = vadd.f32 %v2148, 1.0
        %v2197 = vadd.f32 %v2149, 1.0
        %v2198 = vadd.f32 %v2150, 1.0
        %v2199 = vadd.f32 %v2151, 1.0
        %v2200 = vadd.f32 %v2152, 1.0
        %v2201 = vadd.f32 %v2153, 1.0
        %v2202 = vadd.f32 %v2154, 1.0
        %v2203 = vadd.f32 %v2155, 1.0
        %v2204 = vadd.f32 %v2156, 1.0
        %v2205 = vadd.f32 %v2157, 1.0
        %v2206 = vadd.f32 %v2158, 1.0
        %v2207 = vadd.f32 %v2159, 1.0
        %v2208 = vadd.f32 %v2160, 1.0
        %v2209 = vadd.f32 %v2161, 1.0
        %v2210 = vadd.f32 %v2162, 1.0
        %v2211 = vadd.f32 %v2163, 1.0
        %v2212 = vadd.f32 %v2164, 1.0
        %v2213 = vadd.f32 %v2165, 1.0
        %v2214 = vadd.f32 %v2166, 1.0
        %v2215 = vadd.f32 %v2167, 1.0
        %v2216 = vadd.f32 %v2168, 1.0
        %v2217 = vadd.f32 %v2169, 1.0
        %v2218 = vadd.f32 %v2170, 1.0
        %v2219 = vadd.f32 %v2171, 1.0
        %v2220 = vadd.f32 %v2172, 1.0
        %v2221 = vadd.f32 %v2173, 1.0
        %v2222 = vadd.f32 %v2174, 1.0
        %v2223 = vadd.f32 %v2175, 1.0
        %v2224 = vadd.f32 %v2176, 1.0
        %v2225 = vadd.f32 %v2177, 1.0
        %v2226 = vadd.f32 %v2178, 1.0
        %v2227 = vadd.f32 %v2179, 1.0
        %v2228 = vadd.f32 %v2180, 1.0
        %v2229 = vadd.f32 %v2181, 1.0
        %v2230 = vadd.f32 %v2182, 1.0
        %v2231 = vadd.f32 %v2183, 1.0
        %v2232 = vadd.f32 %v2184, 1.0
        %v2233 = vadd.f32 %v2185, 1.0
        %v2234 = vadd.f32 %v2186, 1.0
        %v2235 = vadd.f32 %v2187, 1.0
        %v2236 = vadd.f32 %v2188, 1.0
        %v2237 = vadd.f32 %v2189, 1.0
        %v2238 = vmul.f32 %v1854, %v2190
        %v2239 = vmul.f32 %v1855, %v2191
        %v2240 = vmul.f32 %v1856, %v2192
        %v2241 = vmul.f32 %v1857, %v2193
        %v2242 = vmul.f32 %v1858, %v2194
        %v2243 = vmul.f32 %v1859, %v2195
        %v2244 = vmul.f32 %v1860, %v2196
        %v2245 = vmul.f32 %v1861, %v2197
        %v2246 = vmul.f32 %v1862, %v2198
        %v2247 = vmul.f32 %v1863, %v2199
        %v2248 = vmul.f32 %v1864, %v2200
        %v2249 = vmul.f32 %v1865, %v2201
        %v2250 = vmul.f32 %v1866, %v2202
        %v2251 = vmul.f32 %v1867, %v2203
        %v2252 = vmul.f32 %v1868, %v2204
        %v2253 = vmul.f32 %v1869, %v2205
        %v2254 = vmul.f32 %v1870, %v2206
        %v2255 = vmul.f32 %v1871, %v2207
        %v2256 = vmul.f32 %v1872, %v2208
        %v2257 = vmul.f32 %v1873, %v2209
        %v2258 = vmul.f32 %v1874, %v2210
        %v2259 = vmul.f32 %v1875, %v2211
        %v2260 = vmul.f32 %v1876, %v2212
        %v2261 = vmul.f32 %v1877, %v2213
        %v2262 = vmul.f32 %v1878, %v2214
        %v2263 = vmul.f32 %v1879, %v2215
        %v2264 = vmul.f32 %v1880, %v2216
        %v2265 = vmul.f32 %v1881, %v2217
        %v2266 = vmul.f32 %v1882, %v2218
        %v2267 = vmul.f32 %v1883, %v2219
        %v2268 = vmul.f32 %v1884, %v2220
        %v2269 = vmul.f32 %v1885, %v2221
        %v2270 = vmul.f32 %v1886, %v2222
        %v2271 = vmul.f32 %v1887, %v2223
        %v2272 = vmul.f32 %v1888, %v2224
        %v2273 = vmul.f32 %v1889, %v2225
        %v2274 = vmul.f32 %v1890, %v2226
        %v2275 = vmul.f32 %v1891, %v2227
        %v2276 = vmul.f32 %v1892, %v2228
        %v2277 = vmul.f32 %v1893, %v2229
        %v2278 = vmul.f32 %v1894, %v2230
        %v2279 = vmul.f32 %v1895, %v2231
        %v2280 = vmul.f32 %v1896, %v2232
        %v2281 = vmul.f32 %v1897, %v2233
        %v2282 = vmul.f32 %v1898, %v2234
        %v2283 = vmul.f32 %v1899, %v2235
        %v2284 = vmul.f32 %v1900, %v2236
        %v2285 = vmul.f32 %v1901, %v2237
        %v2286 = vpack.c.bf16 %v2241, %v2238
        %v2287 = vpack.c.bf16 %v2242, %v2239
        %v2288 = vpack.c.bf16 %v2243, %v2240
        %v2289 = vpack.c.bf16 %v2247, %v2244
        %v2290 = vpack.c.bf16 %v2248, %v2245
        %v2291 = vpack.c.bf16 %v2249, %v2246
        %v2292 = vpack.c.bf16 %v2253, %v2250
        %v2293 = vpack.c.bf16 %v2254, %v2251
        %v2294 = vpack.c.bf16 %v2255, %v2252
        %v2295 = vpack.c.bf16 %v2259, %v2256
        %v2296 = vpack.c.bf16 %v2260, %v2257
        %v2297 = vpack.c.bf16 %v2261, %v2258
        %v2298 = vpack.c.bf16 %v2265, %v2262
        %v2299 = vpack.c.bf16 %v2266, %v2263
        %v2300 = vpack.c.bf16 %v2267, %v2264
        %v2301 = vpack.c.bf16 %v2271, %v2268
        %v2302 = vpack.c.bf16 %v2272, %v2269
        %v2303 = vpack.c.bf16 %v2273, %v2270
        %v2304 = vpack.c.bf16 %v2277, %v2274
        %v2305 = vpack.c.bf16 %v2278, %v2275
        %v2306 = vpack.c.bf16 %v2279, %v2276
        %v2307 = vpack.c.bf16 %v2283, %v2280
        %v2308 = vpack.c.bf16 %v2284, %v2281
        %v2309 = vpack.c.bf16 %v2285, %v2282
        %v2310 = vld [vmem:[#allocation6 + $0x4] sm:$0xf]
        %v2311 = vld [vmem:[#allocation6 + $0x14] sm:$0xf]
        %v2312 = vld [vmem:[#allocation6 + $0x24] sm:$0xf]
        %v2313 = vld [vmem:[#allocation6 + $0x34] sm:$0xf]
        %v2314 = vld [vmem:[#allocation6 + $0x44] sm:$0xf]
        %v2315 = vld [vmem:[#allocation6 + $0x54] sm:$0xf]
        %v2316 = vld [vmem:[#allocation6 + $0x64] sm:$0xf]
        %v2317 = vld [vmem:[#allocation6 + $0x74] sm:$0xf]
        %v2318 = vld [vmem:[#allocation6 + $0x84] sm:$0xf]
        %v2319 = vld [vmem:[#allocation6 + $0x94] sm:$0xf]
        %v2320 = vld [vmem:[#allocation6 + $0xa4] sm:$0xf]
        %v2321 = vld [vmem:[#allocation6 + $0xb4] sm:$0xf]
        %v2322 = vld [vmem:[#allocation6 + $0xc4] sm:$0xf]
        %v2323 = vld [vmem:[#allocation6 + $0xd4] sm:$0xf]
        %v2324 = vld [vmem:[#allocation6 + $0xe4] sm:$0xf]
        %v2325 = vld [vmem:[#allocation6 + $0xf4] sm:$0xf]
        %v2326 = vld [vmem:[#allocation6 + $0x104] sm:$0xf]
        %v2327 = vld [vmem:[#allocation6 + $0x114] sm:$0xf]
        %v2328 = vld [vmem:[#allocation6 + $0x124] sm:$0xf]
        %v2329 = vld [vmem:[#allocation6 + $0x134] sm:$0xf]
        %v2330 = vld [vmem:[#allocation6 + $0x144] sm:$0xf]
        %v2331 = vld [vmem:[#allocation6 + $0x154] sm:$0xf]
        %v2332 = vld [vmem:[#allocation6 + $0x164] sm:$0xf]
        %v2333 = vld [vmem:[#allocation6 + $0x174] sm:$0xf]
        %v2334 = vld [vmem:[#allocation6 + $0x184] sm:$0xf]
        %v2335 = vld [vmem:[#allocation6 + $0x194] sm:$0xf]
        %v2336 = vld [vmem:[#allocation6 + $0x1a4] sm:$0xf]
        %v2337 = vld [vmem:[#allocation6 + $0x1b4] sm:$0xf]
        %v2338 = vld [vmem:[#allocation6 + $0x1c4] sm:$0xf]
        %v2339 = vld [vmem:[#allocation6 + $0x1d4] sm:$0xf]
        %v2340 = vld [vmem:[#allocation6 + $0x1e4] sm:$0xf]
        %v2341 = vld [vmem:[#allocation6 + $0x1f4] sm:$0xf]
        %v2342 = vld [vmem:[#allocation6 + $0x204] sm:$0xf]
        %v2343 = vld [vmem:[#allocation6 + $0x214] sm:$0xf]
        %v2344 = vld [vmem:[#allocation6 + $0x224] sm:$0xf]
        %v2345 = vld [vmem:[#allocation6 + $0x234] sm:$0xf]
        %v2346 = vld [vmem:[#allocation6 + $0x244] sm:$0xf]
        %v2347 = vld [vmem:[#allocation6 + $0x254] sm:$0xf]
        %v2348 = vld [vmem:[#allocation6 + $0x264] sm:$0xf]
        %v2349 = vld [vmem:[#allocation6 + $0x274] sm:$0xf]
        %v2350 = vld [vmem:[#allocation6 + $0x284] sm:$0xf]
        %v2351 = vld [vmem:[#allocation6 + $0x294] sm:$0xf]
        %v2352 = vld [vmem:[#allocation6 + $0x2a4] sm:$0xf]
        %v2353 = vld [vmem:[#allocation6 + $0x2b4] sm:$0xf]
        %v2354 = vld [vmem:[#allocation6 + $0x2c4] sm:$0xf]
        %v2355 = vld [vmem:[#allocation6 + $0x2d4] sm:$0xf]
        %v2356 = vld [vmem:[#allocation6 + $0x2e4] sm:$0xf]
        %v2357 = vld [vmem:[#allocation6 + $0x2f4] sm:$0xf]
        %v2358 = vld [vmem:[%s3 + $0x8] sm:$0x1]
        %v2360 = vlaneseq
        %v2361 = vshrl.u32 %v2360, 7
        %v2362 = vsub.s32 0, %v2361
        %v2363 = vrot.slane %v2358, %v2362
        %v2413 = vunpack.c.l.b16 %v2310
        %v2414 = vunpack.c.l.b16 %v2311
        %v2415 = vunpack.c.l.b16 %v2312
        %v2416 = vunpack.c.l.b16 %v2313
        %v2417 = vunpack.c.l.b16 %v2314
        %v2418 = vunpack.c.l.b16 %v2315
        %v2419 = vunpack.c.l.b16 %v2316
        %v2420 = vunpack.c.l.b16 %v2317
        %v2421 = vunpack.c.l.b16 %v2318
        %v2422 = vunpack.c.l.b16 %v2319
        %v2423 = vunpack.c.l.b16 %v2320
        %v2424 = vunpack.c.l.b16 %v2321
        %v2425 = vunpack.c.l.b16 %v2322
        %v2426 = vunpack.c.l.b16 %v2323
        %v2427 = vunpack.c.l.b16 %v2324
        %v2428 = vunpack.c.l.b16 %v2325
        %v2429 = vunpack.c.l.b16 %v2326
        %v2430 = vunpack.c.l.b16 %v2327
        %v2431 = vunpack.c.l.b16 %v2328
        %v2432 = vunpack.c.l.b16 %v2329
        %v2433 = vunpack.c.l.b16 %v2330
        %v2434 = vunpack.c.l.b16 %v2331
        %v2435 = vunpack.c.l.b16 %v2332
        %v2436 = vunpack.c.l.b16 %v2333
        %v2437 = vunpack.c.l.b16 %v2334
        %v2438 = vunpack.c.l.b16 %v2335
        %v2439 = vunpack.c.l.b16 %v2336
        %v2440 = vunpack.c.l.b16 %v2337
        %v2441 = vunpack.c.l.b16 %v2338
        %v2442 = vunpack.c.l.b16 %v2339
        %v2443 = vunpack.c.l.b16 %v2340
        %v2444 = vunpack.c.l.b16 %v2341
        %v2445 = vunpack.c.l.b16 %v2342
        %v2446 = vunpack.c.l.b16 %v2343
        %v2447 = vunpack.c.l.b16 %v2344
        %v2448 = vunpack.c.l.b16 %v2345
        %v2449 = vunpack.c.l.b16 %v2346
        %v2450 = vunpack.c.l.b16 %v2347
        %v2451 = vunpack.c.l.b16 %v2348
        %v2452 = vunpack.c.l.b16 %v2349
        %v2453 = vunpack.c.l.b16 %v2350
        %v2454 = vunpack.c.l.b16 %v2351
        %v2455 = vunpack.c.l.b16 %v2352
        %v2456 = vunpack.c.l.b16 %v2353
        %v2457 = vunpack.c.l.b16 %v2354
        %v2458 = vunpack.c.l.b16 %v2355
        %v2459 = vunpack.c.l.b16 %v2356
        %v2460 = vunpack.c.l.b16 %v2357
        %v2461 = vpack.c.b16 %v2414, %v2413
        %v2462 = vpack.c.b16 %v2416, %v2415
        %v2463 = vpack.c.b16 %v2418, %v2417
        %v2464 = vpack.c.b16 %v2420, %v2419
        %v2465 = vpack.c.b16 %v2422, %v2421
        %v2466 = vpack.c.b16 %v2424, %v2423
        %v2467 = vpack.c.b16 %v2426, %v2425
        %v2468 = vpack.c.b16 %v2428, %v2427
        %v2469 = vpack.c.b16 %v2430, %v2429
        %v2470 = vpack.c.b16 %v2432, %v2431
        %v2471 = vpack.c.b16 %v2434, %v2433
        %v2472 = vpack.c.b16 %v2436, %v2435
        %v2473 = vpack.c.b16 %v2438, %v2437
        %v2474 = vpack.c.b16 %v2440, %v2439
        %v2475 = vpack.c.b16 %v2442, %v2441
        %v2476 = vpack.c.b16 %v2444, %v2443
        %v2477 = vpack.c.b16 %v2446, %v2445
        %v2478 = vpack.c.b16 %v2448, %v2447
        %v2479 = vpack.c.b16 %v2450, %v2449
        %v2480 = vpack.c.b16 %v2452, %v2451
        %v2481 = vpack.c.b16 %v2454, %v2453
        %v2482 = vpack.c.b16 %v2456, %v2455
        %v2483 = vpack.c.b16 %v2458, %v2457
        %v2484 = vpack.c.b16 %v2460, %v2459
        %2509 = vmatprep.subr.bf16.mxu0 0
        %2510 = vmatpush1.bf16.msra.mxu0 %v2461
        %2511 = vmatprep.subr.bf16.mxu0 0
        %2512 = vmatpush1.bf16.msra.mxu0 %v2462
        %2513 = vmatprep.subr.bf16.mxu0 0
        %2514 = vmatpush1.bf16.msra.mxu0 %v2463
        %2515 = vmatprep.subr.bf16.mxu0 0
        %2516 = vmatpush1.bf16.msra.mxu0 %v2464
        %2517 = vmatprep.subr.bf16.mxu0 0
        %2518 = vmatpush1.bf16.msra.mxu0 %v2465
        %2519 = vmatprep.subr.bf16.mxu0 0
        %2520 = vmatpush1.bf16.msra.mxu0 %v2466
        %2521 = vmatprep.subr.bf16.mxu0 0
        %2522 = vmatpush1.bf16.msra.mxu0 %v2467
        %2523 = vmatprep.subr.bf16.mxu0 0
        %2524 = vmatpush1.bf16.msra.mxu0 %v2468
        %2525 = vmatprep.subr.bf16.mxu0 0
        %2526 = vmatpush1.bf16.msra.mxu0 %v2469
        %2527 = vmatprep.subr.bf16.mxu0 0
        %2528 = vmatpush1.bf16.msra.mxu0 %v2470
        %2529 = vmatprep.subr.bf16.mxu0 0
        %2530 = vmatpush1.bf16.msra.mxu0 %v2471
        %2531 = vmatprep.subr.bf16.mxu0 0
        %2532 = vmatpush1.bf16.msra.mxu0 %v2472
        %2533 = vmatprep.subr.bf16.mxu0 0
        %2534 = vmatpush1.bf16.msra.mxu0 %v2473
        %2535 = vmatprep.subr.bf16.mxu0 0
        %2536 = vmatpush1.bf16.msra.mxu0 %v2474
        %2537 = vmatprep.subr.bf16.mxu0 0
        %2538 = vmatpush1.bf16.msra.mxu0 %v2475
        %2539 = vmatprep.subr.bf16.mxu0 0
        %2540 = vmatpush1.bf16.msra.mxu0 %v2476
        %2541 = vmatprep.mubr.bf16.mxu0 %v2287
        %2542 = vmatmul.mubr.bf16.gmra.mrb[0].mxu0 %v2286
        %v2543 = vpop.f32.mrb[0].mxu0
        %v2544 = vadd.f32 %v2363, %v2543
        %v2545 = vpop.f32.mrb[0].mxu0
        %v2546 = vpop.f32.mrb[0].mxu0
        %v2547 = vadd.f32 %v2363, %v2546
        %v2548 = vpop.f32.mrb[0].mxu0
        %2549 = vmatprep.mubr.bf16.mxu0 %v2290
        %2550 = vmatmul.mubr.bf16.gmra.mrb[0].mxu0 %v2289
        %v2551 = vpop.f32.mrb[0].mxu0
        %v2552 = vadd.f32 %v2363, %v2551
        %v2553 = vpop.f32.mrb[0].mxu0
        %v2554 = vpop.f32.mrb[0].mxu0
        %v2555 = vadd.f32 %v2363, %v2554
        %v2556 = vpop.f32.mrb[0].mxu0
        %2557 = vmatprep.mubr.bf16.mxu0 %v2293
        %2558 = vmatmul.mubr.bf16.gmra.mrb[0].mxu0 %v2292
        %v2559 = vpop.f32.mrb[0].mxu0
        %v2560 = vadd.f32 %v2363, %v2559
        %v2561 = vpop.f32.mrb[0].mxu0
        %v2562 = vpop.f32.mrb[0].mxu0
        %v2563 = vadd.f32 %v2363, %v2562
        %v2564 = vpop.f32.mrb[0].mxu0
        %2565 = vmatprep.mubr.bf16.mxu0 %v2296
        %2566 = vmatmul.mubr.bf16.gmra.mrb[0].mxu0 %v2295
        %v2567 = vpop.f32.mrb[0].mxu0
        %v2568 = vadd.f32 %v2363, %v2567
        %v2569 = vpop.f32.mrb[0].mxu0
        %v2570 = vpop.f32.mrb[0].mxu0
        %v2571 = vadd.f32 %v2363, %v2570
        %v2572 = vpop.f32.mrb[0].mxu0
        %2573 = vmatprep.mubr.bf16.mxu0 %v2299
        %2574 = vmatmul.mubr.bf16.gmra.mrb[0].mxu0 %v2298
        %v2575 = vpop.f32.mrb[0].mxu0
        %v2576 = vadd.f32 %v2363, %v2575
        %v2577 = vpop.f32.mrb[0].mxu0
        %v2578 = vpop.f32.mrb[0].mxu0
        %v2579 = vadd.f32 %v2363, %v2578
        %v2580 = vpop.f32.mrb[0].mxu0
        %2581 = vmatprep.mubr.bf16.mxu0 %v2302
        %2582 = vmatmul.mubr.bf16.gmra.mrb[0].mxu0 %v2301
        %v2583 = vpop.f32.mrb[0].mxu0
        %v2584 = vadd.f32 %v2363, %v2583
        %v2585 = vpop.f32.mrb[0].mxu0
        %v2586 = vpop.f32.mrb[0].mxu0
        %v2587 = vadd.f32 %v2363, %v2586
        %v2588 = vpop.f32.mrb[0].mxu0
        %2589 = vmatprep.mubr.bf16.mxu0 %v2305
        %2590 = vmatmul.mubr.bf16.gmra.mrb[0].mxu0 %v2304
        %v2591 = vpop.f32.mrb[0].mxu0
        %v2592 = vadd.f32 %v2363, %v2591
        %v2593 = vpop.f32.mrb[0].mxu0
        %v2594 = vpop.f32.mrb[0].mxu0
        %v2595 = vadd.f32 %v2363, %v2594
        %v2596 = vpop.f32.mrb[0].mxu0
        %2597 = vmatprep.mubr.bf16.mxu0 %v2308
        %2598 = vmatmul.mubr.bf16.gmra.mrb[0].mxu0 %v2307
        %v2599 = vpop.f32.mrb[0].mxu0
        %v2600 = vadd.f32 %v2363, %v2599
        %v2601 = vpop.f32.mrb[0].mxu0
        %v2602 = vpop.f32.mrb[0].mxu0
        %v2603 = vadd.f32 %v2363, %v2602
        %v2604 = vpop.f32.mrb[0].mxu0
        %2605 = vdwg.mxu0
        %2606 = vmatprep.subr.bf16.mxu0 0
        %2607 = vmatpush1.bf16.msra.mxu0 %v2477
        %2608 = vmatprep.subr.bf16.mxu0 0
        %2609 = vmatpush1.bf16.msra.mxu0 %v2478
        %2610 = vmatprep.subr.bf16.mxu0 0
        %2611 = vmatpush1.bf16.msra.mxu0 %v2479
        %2612 = vmatprep.subr.bf16.mxu0 0
        %2613 = vmatpush1.bf16.msra.mxu0 %v2480
        %2614 = vmatprep.subr.bf16.mxu0 0
        %2615 = vmatpush1.bf16.msra.mxu0 %v2481
        %2616 = vmatprep.subr.bf16.mxu0 0
        %2617 = vmatpush1.bf16.msra.mxu0 %v2482
        %2618 = vmatprep.subr.bf16.mxu0 0
        %2619 = vmatpush1.bf16.msra.mxu0 %v2483
        %2620 = vmatprep.subr.bf16.mxu0 0
        %2621 = vmatpush1.bf16.msra.mxu0 %v2484
        %2622 = vmatprep.subr.bf16.mxu0 0
        %2623 = vmatpush1.bf16.msra.mxu0 0
        %2624 = vmatprep.subr.bf16.mxu0 0
        %2625 = vmatpush1.bf16.msra.mxu0 0
        %2626 = vmatprep.subr.bf16.mxu0 0
        %2627 = vmatpush1.bf16.msra.mxu0 0
        %2628 = vmatprep.subr.bf16.mxu0 0
        %2629 = vmatpush1.bf16.msra.mxu0 0
        %2630 = vmatprep.subr.bf16.mxu0 0
        %2631 = vmatpush1.bf16.msra.mxu0 0
        %2632 = vmatprep.subr.bf16.mxu0 0
        %2633 = vmatpush1.bf16.msra.mxu0 0
        %2634 = vmatprep.subr.bf16.mxu0 0
        %2635 = vmatpush1.bf16.msra.mxu0 0
        %2636 = vmatprep.subr.bf16.mxu0 0
        %2637 = vmatpush1.bf16.msra.mxu0 0
        %2638 = vmatprep.mubr.bf16.mxu0 0
        %2639 = vmatmul.mubr.bf16.gmra.mrb[0].mxu0 %v2288
        %v2640 = vpop.f32.mrb[0].mxu0
        %v2641 = vadd.f32 %v2544, %v2640
        %v2642 = vpop.f32.mrb[0].mxu0
        %v2643 = vpop.f32.mrb[0].mxu0
        %v2644 = vadd.f32 %v2547, %v2643
        %v2645 = vpop.f32.mrb[0].mxu0
        %2646 = vmatprep.mubr.bf16.mxu0 0
        %2647 = vmatmul.mubr.bf16.gmra.mrb[0].mxu0 %v2291
        %v2648 = vpop.f32.mrb[0].mxu0
        %v2649 = vadd.f32 %v2552, %v2648
        %v2650 = vpop.f32.mrb[0].mxu0
        %v2651 = vpop.f32.mrb[0].mxu0
        %v2652 = vadd.f32 %v2555, %v2651
        %v2653 = vpop.f32.mrb[0].mxu0
        %2654 = vmatprep.mubr.bf16.mxu0 0
        %2655 = vmatmul.mubr.bf16.gmra.mrb[0].mxu0 %v2294
        %v2656 = vpop.f32.mrb[0].mxu0
        %v2657 = vadd.f32 %v2560, %v2656
        %v2658 = vpop.f32.mrb[0].mxu0
        %v2659 = vpop.f32.mrb[0].mxu0
        %v2660 = vadd.f32 %v2563, %v2659
        %v2661 = vpop.f32.mrb[0].mxu0
        %2662 = vmatprep.mubr.bf16.mxu0 0
        %2663 = vmatmul.mubr.bf16.gmra.mrb[0].mxu0 %v2297
        %v2664 = vpop.f32.mrb[0].mxu0
        %v2665 = vadd.f32 %v2568, %v2664
        %v2666 = vpop.f32.mrb[0].mxu0
        %v2667 = vpop.f32.mrb[0].mxu0
        %v2668 = vadd.f32 %v2571, %v2667
        %v2669 = vpop.f32.mrb[0].mxu0
        %2670 = vmatprep.mubr.bf16.mxu0 0
        %2671 = vmatmul.mubr.bf16.gmra.mrb[0].mxu0 %v2300
        %v2672 = vpop.f32.mrb[0].mxu0
        %v2673 = vadd.f32 %v2576, %v2672
        %v2674 = vpop.f32.mrb[0].mxu0
        %v2675 = vpop.f32.mrb[0].mxu0
        %v2676 = vadd.f32 %v2579, %v2675
        %v2677 = vpop.f32.mrb[0].mxu0
        %2678 = vmatprep.mubr.bf16.mxu0 0
        %2679 = vmatmul.mubr.bf16.gmra.mrb[0].mxu0 %v2303
        %v2680 = vpop.f32.mrb[0].mxu0
        %v2681 = vadd.f32 %v2584, %v2680
        %v2682 = vpop.f32.mrb[0].mxu0
        %v2683 = vpop.f32.mrb[0].mxu0
        %v2684 = vadd.f32 %v2587, %v2683
        %v2685 = vpop.f32.mrb[0].mxu0
        %2686 = vmatprep.mubr.bf16.mxu0 0
        %2687 = vmatmul.mubr.bf16.gmra.mrb[0].mxu0 %v2306
        %v2688 = vpop.f32.mrb[0].mxu0
        %v2689 = vadd.f32 %v2592, %v2688
        %v2690 = vpop.f32.mrb[0].mxu0
        %v2691 = vpop.f32.mrb[0].mxu0
        %v2692 = vadd.f32 %v2595, %v2691
        %v2693 = vpop.f32.mrb[0].mxu0
        %2694 = vmatprep.mubr.bf16.mxu0 0
        %2695 = vmatmul.mubr.bf16.gmra.mrb[0].mxu0 %v2309
        %v2696 = vpop.f32.mrb[0].mxu0
        %v2697 = vadd.f32 %v2600, %v2696
        %v2698 = vpop.f32.mrb[0].mxu0
        %v2699 = vpop.f32.mrb[0].mxu0
        %v2700 = vadd.f32 %v2603, %v2699
        %v2701 = vpop.f32.mrb[0].mxu0
        %2702 = vdwg.mxu0
        %v2703 = vsub.f32 %v250, %v2641
        %v2704 = vsub.f32 %v251, %v2644
        %v2705 = vsub.f32 %v252, %v2649
        %v2706 = vsub.f32 %v253, %v2652
        %v2707 = vsub.f32 %v254, %v2657
        %v2708 = vsub.f32 %v255, %v2660
        %v2709 = vsub.f32 %v256, %v2665
        %v2710 = vsub.f32 %v257, %v2668
        %v2711 = vsub.f32 %v258, %v2673
        %v2712 = vsub.f32 %v259, %v2676
        %v2713 = vsub.f32 %v260, %v2681
        %v2714 = vsub.f32 %v261, %v2684
        %v2715 = vsub.f32 %v262, %v2689
        %v2716 = vsub.f32 %v263, %v2692
        %v2717 = vsub.f32 %v264, %v2697
        %v2718 = vsub.f32 %v265, %v2700
        %2720 = vset.pattern.permute.xlu0 0
        %2721 = vperm.xlu0 %2720, %v572
        %v2722 = vpop.permute.xlu0 %2721
        %2725 = vset.pattern.permute.xlu0 0
        %2726 = vperm.xlu0 %2725, %v573
        %v2727 = vpop.permute.xlu0 %2726
        %2730 = vset.pattern.permute.xlu0 0
        %2731 = vperm.xlu0 %2730, %v574
        %v2732 = vpop.permute.xlu0 %2731
        %2735 = vset.pattern.permute.xlu0 0
        %2736 = vperm.xlu0 %2735, %v575
        %v2737 = vpop.permute.xlu0 %2736
        %2740 = vset.pattern.permute.xlu0 0
        %2741 = vperm.xlu0 %2740, %v576
        %v2742 = vpop.permute.xlu0 %2741
        %2745 = vset.pattern.permute.xlu0 0
        %2746 = vperm.xlu0 %2745, %v577
        %v2747 = vpop.permute.xlu0 %2746
        %2750 = vset.pattern.permute.xlu0 0
        %2751 = vperm.xlu0 %2750, %v578
        %v2752 = vpop.permute.xlu0 %2751
        %2755 = vset.pattern.permute.xlu0 0
        %2756 = vperm.xlu0 %2755, %v579
        %v2757 = vpop.permute.xlu0 %2756
        %2760 = vset.pattern.permute.xlu0 0
        %2761 = vperm.xlu0 %2760, %v580
        %v2762 = vpop.permute.xlu0 %2761
        %2765 = vset.pattern.permute.xlu0 0
        %2766 = vperm.xlu0 %2765, %v581
        %v2767 = vpop.permute.xlu0 %2766
        %2770 = vset.pattern.permute.xlu0 0
        %2771 = vperm.xlu0 %2770, %v582
        %v2772 = vpop.permute.xlu0 %2771
        %2775 = vset.pattern.permute.xlu0 0
        %2776 = vperm.xlu0 %2775, %v583
        %v2777 = vpop.permute.xlu0 %2776
        %2780 = vset.pattern.permute.xlu0 0
        %2781 = vperm.xlu0 %2780, %v584
        %v2782 = vpop.permute.xlu0 %2781
        %2785 = vset.pattern.permute.xlu0 0
        %2786 = vperm.xlu0 %2785, %v585
        %v2787 = vpop.permute.xlu0 %2786
        %2790 = vset.pattern.permute.xlu0 0
        %2791 = vperm.xlu0 %2790, %v586
        %v2792 = vpop.permute.xlu0 %2791
        %2795 = vset.pattern.permute.xlu0 0
        %2796 = vperm.xlu0 %2795, %v587
        %v2797 = vpop.permute.xlu0 %2796
        %2799 = vset.pattern.permute.xlu0 1
        %2800 = vperm.xlu0 %2799, %v572
        %v2801 = vpop.permute.xlu0 %2800
        %2803 = vset.pattern.permute.xlu0 1
        %2804 = vperm.xlu0 %2803, %v573
        %v2805 = vpop.permute.xlu0 %2804
        %2807 = vset.pattern.permute.xlu0 1
        %2808 = vperm.xlu0 %2807, %v574
        %v2809 = vpop.permute.xlu0 %2808
        %2811 = vset.pattern.permute.xlu0 1
        %2812 = vperm.xlu0 %2811, %v575
        %v2813 = vpop.permute.xlu0 %2812
        %2815 = vset.pattern.permute.xlu0 1
        %2816 = vperm.xlu0 %2815, %v576
        %v2817 = vpop.permute.xlu0 %2816
        %2819 = vset.pattern.permute.xlu0 1
        %2820 = vperm.xlu0 %2819, %v577
        %v2821 = vpop.permute.xlu0 %2820
        %2823 = vset.pattern.permute.xlu0 1
        %2824 = vperm.xlu0 %2823, %v578
        %v2825 = vpop.permute.xlu0 %2824
        %2827 = vset.pattern.permute.xlu0 1
        %2828 = vperm.xlu0 %2827, %v579
        %v2829 = vpop.permute.xlu0 %2828
        %2831 = vset.pattern.permute.xlu0 1
        %2832 = vperm.xlu0 %2831, %v580
        %v2833 = vpop.permute.xlu0 %2832
        %2835 = vset.pattern.permute.xlu0 1
        %2836 = vperm.xlu0 %2835, %v581
        %v2837 = vpop.permute.xlu0 %2836
        %2839 = vset.pattern.permute.xlu0 1
        %2840 = vperm.xlu0 %2839, %v582
        %v2841 = vpop.permute.xlu0 %2840
        %2843 = vset.pattern.permute.xlu0 1
        %2844 = vperm.xlu0 %2843, %v583
        %v2845 = vpop.permute.xlu0 %2844
        %2847 = vset.pattern.permute.xlu0 1
        %2848 = vperm.xlu0 %2847, %v584
        %v2849 = vpop.permute.xlu0 %2848
        %2851 = vset.pattern.permute.xlu0 1
        %2852 = vperm.xlu0 %2851, %v585
        %v2853 = vpop.permute.xlu0 %2852
        %2855 = vset.pattern.permute.xlu0 1
        %2856 = vperm.xlu0 %2855, %v586
        %v2857 = vpop.permute.xlu0 %2856
        %2859 = vset.pattern.permute.xlu0 1
        %2860 = vperm.xlu0 %2859, %v587
        %v2861 = vpop.permute.xlu0 %2860
        %2863 = vset.pattern.permute.xlu0 2
        %2864 = vperm.xlu0 %2863, %v572
        %v2865 = vpop.permute.xlu0 %2864
        %2867 = vset.pattern.permute.xlu0 2
        %2868 = vperm.xlu0 %2867, %v573
        %v2869 = vpop.permute.xlu0 %2868
        %2871 = vset.pattern.permute.xlu0 2
        %2872 = vperm.xlu0 %2871, %v574
        %v2873 = vpop.permute.xlu0 %2872
        %2875 = vset.pattern.permute.xlu0 2
        %2876 = vperm.xlu0 %2875, %v575
        %v2877 = vpop.permute.xlu0 %2876
        %2879 = vset.pattern.permute.xlu0 2
        %2880 = vperm.xlu0 %2879, %v576
        %v2881 = vpop.permute.xlu0 %2880
        %2883 = vset.pattern.permute.xlu0 2
        %2884 = vperm.xlu0 %2883, %v577
        %v2885 = vpop.permute.xlu0 %2884
        %2887 = vset.pattern.permute.xlu0 2
        %2888 = vperm.xlu0 %2887, %v578
        %v2889 = vpop.permute.xlu0 %2888
        %2891 = vset.pattern.permute.xlu0 2
        %2892 = vperm.xlu0 %2891, %v579
        %v2893 = vpop.permute.xlu0 %2892
        %2895 = vset.pattern.permute.xlu0 2
        %2896 = vperm.xlu0 %2895, %v580
        %v2897 = vpop.permute.xlu0 %2896
        %2899 = vset.pattern.permute.xlu0 2
        %2900 = vperm.xlu0 %2899, %v581
        %v2901 = vpop.permute.xlu0 %2900
        %2903 = vset.pattern.permute.xlu0 2
        %2904 = vperm.xlu0 %2903, %v582
        %v2905 = vpop.permute.xlu0 %2904
        %2907 = vset.pattern.permute.xlu0 2
        %2908 = vperm.xlu0 %2907, %v583
        %v2909 = vpop.permute.xlu0 %2908
        %2911 = vset.pattern.permute.xlu0 2
        %2912 = vperm.xlu0 %2911, %v584
        %v2913 = vpop.permute.xlu0 %2912
        %2915 = vset.pattern.permute.xlu0 2
        %2916 = vperm.xlu0 %2915, %v585
        %v2917 = vpop.permute.xlu0 %2916
        %2919 = vset.pattern.permute.xlu0 2
        %2920 = vperm.xlu0 %2919, %v586
        %v2921 = vpop.permute.xlu0 %2920
        %2923 = vset.pattern.permute.xlu0 2
        %2924 = vperm.xlu0 %2923, %v587
        %v2925 = vpop.permute.xlu0 %2924
        %v2927 = vsel %vm1619, %v2722, %v2801
        %v2928 = vsel %vm1619, %v2727, %v2805
        %v2929 = vsel %vm1619, %v2732, %v2809
        %v2930 = vsel %vm1619, %v2737, %v2813
        %v2931 = vsel %vm1619, %v2742, %v2817
        %v2932 = vsel %vm1619, %v2747, %v2821
        %v2933 = vsel %vm1619, %v2752, %v2825
        %v2934 = vsel %vm1619, %v2757, %v2829
        %v2935 = vsel %vm1619, %v2762, %v2833
        %v2936 = vsel %vm1619, %v2767, %v2837
        %v2937 = vsel %vm1619, %v2772, %v2841
        %v2938 = vsel %vm1619, %v2777, %v2845
        %v2939 = vsel %vm1619, %v2782, %v2849
        %v2940 = vsel %vm1619, %v2787, %v2853
        %v2941 = vsel %vm1619, %v2792, %v2857
        %v2942 = vsel %vm1619, %v2797, %v2861
        %vm2943 = vcmask 523264
        %v2944 = vsel %vm2943, %v2927, %v2865
        %v2945 = vsel %vm2943, %v2928, %v2869
        %v2946 = vsel %vm2943, %v2929, %v2873
        %v2947 = vsel %vm2943, %v2930, %v2877
        %v2948 = vsel %vm2943, %v2931, %v2881
        %v2949 = vsel %vm2943, %v2932, %v2885
        %v2950 = vsel %vm2943, %v2933, %v2889
        %v2951 = vsel %vm2943, %v2934, %v2893
        %v2952 = vsel %vm2943, %v2935, %v2897
        %v2953 = vsel %vm2943, %v2936, %v2901
        %v2954 = vsel %vm2943, %v2937, %v2905
        %v2955 = vsel %vm2943, %v2938, %v2909
        %v2956 = vsel %vm2943, %v2939, %v2913
        %v2957 = vsel %vm2943, %v2940, %v2917
        %v2958 = vsel %vm2943, %v2941, %v2921
        %v2959 = vsel %vm2943, %v2942, %v2925
        %v2960 = vmul.f32 %v2703, %v2703
        %v2961 = vmul.f32 %v2704, %v2704
        %v2962 = vmul.f32 %v2705, %v2705
        %v2963 = vmul.f32 %v2706, %v2706
        %v2964 = vmul.f32 %v2707, %v2707
        %v2965 = vmul.f32 %v2708, %v2708
        %v2966 = vmul.f32 %v2709, %v2709
        %v2967 = vmul.f32 %v2710, %v2710
        %v2968 = vmul.f32 %v2711, %v2711
        %v2969 = vmul.f32 %v2712, %v2712
        %v2970 = vmul.f32 %v2713, %v2713
        %v2971 = vmul.f32 %v2714, %v2714
        %v2972 = vmul.f32 %v2715, %v2715
        %v2973 = vmul.f32 %v2716, %v2716
        %v2974 = vmul.f32 %v2717, %v2717
        %v2975 = vmul.f32 %v2718, %v2718
        %v2976 = vmul.f32 %v2960, %v2944
        %v2977 = vmul.f32 %v2961, %v2945
        %v2978 = vmul.f32 %v2962, %v2946
        %v2979 = vmul.f32 %v2963, %v2947
        %v2980 = vmul.f32 %v2964, %v2948
        %v2981 = vmul.f32 %v2965, %v2949
        %v2982 = vmul.f32 %v2966, %v2950
        %v2983 = vmul.f32 %v2967, %v2951
        %v2984 = vmul.f32 %v2968, %v2952
        %v2985 = vmul.f32 %v2969, %v2953
        %v2986 = vmul.f32 %v2970, %v2954
        %v2987 = vmul.f32 %v2971, %v2955
        %v2988 = vmul.f32 %v2972, %v2956
        %v2989 = vmul.f32 %v2973, %v2957
        %v2990 = vmul.f32 %v2974, %v2958
        %v2991 = vmul.f32 %v2975, %v2959
        %v2992 = vsel %vm644, %v2976, 0.0
        %2993 = vadd.xlane.f32.xlu0 %v2992
        %v2994 = vpop.xlane.xlu0 %2993
        %v2995 = vsel %vm644, %v2977, 0.0
        %2996 = vadd.xlane.f32.xlu0 %v2995
        %v2997 = vpop.xlane.xlu0 %2996
        %v2998 = vsel %vm644, %v2978, 0.0
        %2999 = vadd.xlane.f32.xlu0 %v2998
        %v3000 = vpop.xlane.xlu0 %2999
        %v3001 = vsel %vm644, %v2979, 0.0
        %3002 = vadd.xlane.f32.xlu0 %v3001
        %v3003 = vpop.xlane.xlu0 %3002
        %v3004 = vsel %vm644, %v2980, 0.0
        %3005 = vadd.xlane.f32.xlu0 %v3004
        %v3006 = vpop.xlane.xlu0 %3005
        %v3007 = vsel %vm644, %v2981, 0.0
        %3008 = vadd.xlane.f32.xlu0 %v3007
        %v3009 = vpop.xlane.xlu0 %3008
        %v3010 = vsel %vm644, %v2982, 0.0
        %3011 = vadd.xlane.f32.xlu0 %v3010
        %v3012 = vpop.xlane.xlu0 %3011
        %v3013 = vsel %vm644, %v2983, 0.0
        %3014 = vadd.xlane.f32.xlu0 %v3013
        %v3015 = vpop.xlane.xlu0 %3014
        %v3016 = vsel %vm644, %v2984, 0.0
        %3017 = vadd.xlane.f32.xlu0 %v3016
        %v3018 = vpop.xlane.xlu0 %3017
        %v3019 = vsel %vm644, %v2985, 0.0
        %3020 = vadd.xlane.f32.xlu0 %v3019
        %v3021 = vpop.xlane.xlu0 %3020
        %v3022 = vsel %vm644, %v2986, 0.0
        %3023 = vadd.xlane.f32.xlu0 %v3022
        %v3024 = vpop.xlane.xlu0 %3023
        %v3025 = vsel %vm644, %v2987, 0.0
        %3026 = vadd.xlane.f32.xlu0 %v3025
        %v3027 = vpop.xlane.xlu0 %3026
        %v3028 = vsel %vm644, %v2988, 0.0
        %3029 = vadd.xlane.f32.xlu0 %v3028
        %v3030 = vpop.xlane.xlu0 %3029
        %v3031 = vsel %vm644, %v2989, 0.0
        %3032 = vadd.xlane.f32.xlu0 %v3031
        %v3033 = vpop.xlane.xlu0 %3032
        %v3034 = vsel %vm644, %v2990, 0.0
        %3035 = vadd.xlane.f32.xlu0 %v3034
        %v3036 = vpop.xlane.xlu0 %3035
        %v3037 = vsel %vm644, %v2991, 0.0
        %3038 = vadd.xlane.f32.xlu0 %v3037
        %v3039 = vpop.xlane.xlu0 %3038
        %v3040 = vmul.f32 %v2994, 0.03125
        %v3041 = vmul.f32 %v2997, 0.03125
        %v3042 = vmul.f32 %v3000, 0.03125
        %v3043 = vmul.f32 %v3003, 0.03125
        %v3044 = vmul.f32 %v3006, 0.03125
        %v3045 = vmul.f32 %v3009, 0.03125
        %v3046 = vmul.f32 %v3012, 0.03125
        %v3047 = vmul.f32 %v3015, 0.03125
        %v3048 = vmul.f32 %v3018, 0.03125
        %v3049 = vmul.f32 %v3021, 0.03125
        %v3050 = vmul.f32 %v3024, 0.03125
        %v3051 = vmul.f32 %v3027, 0.03125
        %v3052 = vmul.f32 %v3030, 0.03125
        %v3053 = vmul.f32 %v3033, 0.03125
        %v3054 = vmul.f32 %v3036, 0.03125
        %v3055 = vmul.f32 %v3039, 0.03125
        %v3056 = vpack.c.bf16 %v2644, %v2641
        %v3057 = vpack.c.bf16 %v2652, %v2649
        %v3058 = vpack.c.bf16 %v2660, %v2657
        %v3059 = vpack.c.bf16 %v2668, %v2665
        %v3060 = vpack.c.bf16 %v2676, %v2673
        %v3061 = vpack.c.bf16 %v2684, %v2681
        %v3062 = vpack.c.bf16 %v2692, %v2689
        %v3063 = vpack.c.bf16 %v2700, %v2697
        %v3064 = vld [vmem:[#allocation6 + $0xc] sm:$0xf]
        %v3065 = vld [vmem:[#allocation6 + $0x1c] sm:$0xf]
        %v3066 = vld [vmem:[#allocation6 + $0x2c] sm:$0xf]
        %v3067 = vld [vmem:[#allocation6 + $0x3c] sm:$0xf]
        %v3068 = vld [vmem:[#allocation6 + $0x4c] sm:$0xf]
        %v3069 = vld [vmem:[#allocation6 + $0x5c] sm:$0xf]
        %v3070 = vld [vmem:[#allocation6 + $0x6c] sm:$0xf]
        %v3071 = vld [vmem:[#allocation6 + $0x7c] sm:$0xf]
        %v3072 = vld [vmem:[#allocation6 + $0x8c] sm:$0xf]
        %v3073 = vld [vmem:[#allocation6 + $0x9c] sm:$0xf]
        %v3074 = vld [vmem:[#allocation6 + $0xac] sm:$0xf]
        %v3075 = vld [vmem:[#allocation6 + $0xbc] sm:$0xf]
        %v3088 = vunpack.c.l.b16 %v3064
        %v3089 = vunpack.c.l.b16 %v3065
        %v3090 = vunpack.c.l.b16 %v3066
        %v3091 = vunpack.c.l.b16 %v3067
        %v3092 = vunpack.c.l.b16 %v3068
        %v3093 = vunpack.c.l.b16 %v3069
        %v3094 = vunpack.c.l.b16 %v3070
        %v3095 = vunpack.c.l.b16 %v3071
        %v3096 = vunpack.c.l.b16 %v3072
        %v3097 = vunpack.c.l.b16 %v3073
        %v3098 = vunpack.c.l.b16 %v3074
        %v3099 = vunpack.c.l.b16 %v3075
        %v3100 = vpack.c.b16 %v3089, %v3088
        %v3101 = vpack.c.b16 %v3091, %v3090
        %v3102 = vpack.c.b16 %v3093, %v3092
        %v3103 = vpack.c.b16 %v3095, %v3094
        %v3104 = vpack.c.b16 %v3097, %v3096
        %v3105 = vpack.c.b16 %v3099, %v3098
        %v3113 = vsel %vm644, %v3056, 0
        %v3116 = vsel %vm644, %v3057, 0
        %v3119 = vsel %vm644, %v3058, 0
        %v3122 = vsel %vm644, %v3059, 0
        %v3125 = vsel %vm644, %v3060, 0
        %v3128 = vsel %vm644, %v3061, 0
        %v3131 = vsel %vm644, %v3062, 0
        %v3134 = vsel %vm644, %v3063, 0
        %3136 = vmatprep.subr.bf16.mxu0 0
        %3137 = vmatpush1.bf16.msra.mxu0 %v3100
        %3138 = vmatprep.subr.bf16.mxu0 0
        %3139 = vmatpush1.bf16.msra.mxu0 %v3101
        %3140 = vmatprep.subr.bf16.mxu0 0
        %3141 = vmatpush1.bf16.msra.mxu0 %v3102
        %3142 = vmatprep.subr.bf16.mxu0 0
        %3143 = vmatpush1.bf16.msra.mxu0 %v3103
        %3144 = vmatprep.subr.bf16.mxu0 0
        %3145 = vmatpush1.bf16.msra.mxu0 %v3104
        %3146 = vmatprep.subr.bf16.mxu0 0
        %3147 = vmatpush1.bf16.msra.mxu0 %v3105
        %3148 = vmatprep.subr.bf16.mxu0 0
        %3149 = vmatpush1.bf16.msra.mxu0 0
        %3150 = vmatprep.subr.bf16.mxu0 0
        %3151 = vmatpush1.bf16.msra.mxu0 0
        %3152 = vmatprep.subr.bf16.mxu0 0
        %3153 = vmatpush1.bf16.msra.mxu0 0
        %3154 = vmatprep.subr.bf16.mxu0 0
        %3155 = vmatpush1.bf16.msra.mxu0 0
        %3156 = vmatprep.subr.bf16.mxu0 0
        %3157 = vmatpush1.bf16.msra.mxu0 0
        %3158 = vmatprep.subr.bf16.mxu0 0
        %3159 = vmatpush1.bf16.msra.mxu0 0
        %3160 = vmatprep.subr.bf16.mxu0 0
        %3161 = vmatpush1.bf16.msra.mxu0 0
        %3162 = vmatprep.subr.bf16.mxu0 0
        %3163 = vmatpush1.bf16.msra.mxu0 0
        %3164 = vmatprep.subr.bf16.mxu0 0
        %3165 = vmatpush1.bf16.msra.mxu0 0
        %3166 = vmatprep.subr.bf16.mxu0 0
        %3167 = vmatpush1.bf16.msra.mxu0 0
        %3168 = vmatprep.mubr.bf16.mxu0 0
        %3169 = vmatmul.mubr.bf16.gmra.mrb[0].mxu0 %v3113
        %v3170 = vpop.f32.mrb[0].mxu0
        %v3171 = vadd.f32 0.0, %v3170
        %v3172 = vpop.f32.mrb[0].mxu0
        %v3173 = vpop.f32.mrb[0].mxu0
        %v3174 = vadd.f32 0.0, %v3173
        %v3175 = vpop.f32.mrb[0].mxu0
        %3176 = vmatprep.mubr.bf16.mxu0 0
        %3177 = vmatmul.mubr.bf16.gmra.mrb[0].mxu0 %v3116
        %v3178 = vpop.f32.mrb[0].mxu0
        %v3179 = vadd.f32 0.0, %v3178
        %v3180 = vpop.f32.mrb[0].mxu0
        %v3181 = vpop.f32.mrb[0].mxu0
        %v3182 = vadd.f32 0.0, %v3181
        %v3183 = vpop.f32.mrb[0].mxu0
        %3184 = vmatprep.mubr.bf16.mxu0 0
        %3185 = vmatmul.mubr.bf16.gmra.mrb[0].mxu0 %v3119
        %v3186 = vpop.f32.mrb[0].mxu0
        %v3187 = vadd.f32 0.0, %v3186
        %v3188 = vpop.f32.mrb[0].mxu0
        %v3189 = vpop.f32.mrb[0].mxu0
        %v3190 = vadd.f32 0.0, %v3189
        %v3191 = vpop.f32.mrb[0].mxu0
        %3192 = vmatprep.mubr.bf16.mxu0 0
        %3193 = vmatmul.mubr.bf16.gmra.mrb[0].mxu0 %v3122
        %v3194 = vpop.f32.mrb[0].mxu0
        %v3195 = vadd.f32 0.0, %v3194
        %v3196 = vpop.f32.mrb[0].mxu0
        %v3197 = vpop.f32.mrb[0].mxu0
        %v3198 = vadd.f32 0.0, %v3197
        %v3199 = vpop.f32.mrb[0].mxu0
        %3200 = vmatprep.mubr.bf16.mxu0 0
        %3201 = vmatmul.mubr.bf16.gmra.mrb[0].mxu0 %v3125
        %v3202 = vpop.f32.mrb[0].mxu0
        %v3203 = vadd.f32 0.0, %v3202
        %v3204 = vpop.f32.mrb[0].mxu0
        %v3205 = vpop.f32.mrb[0].mxu0
        %v3206 = vadd.f32 0.0, %v3205
        %v3207 = vpop.f32.mrb[0].mxu0
        %3208 = vmatprep.mubr.bf16.mxu0 0
        %3209 = vmatmul.mubr.bf16.gmra.mrb[0].mxu0 %v3128
        %v3210 = vpop.f32.mrb[0].mxu0
        %v3211 = vadd.f32 0.0, %v3210
        %v3212 = vpop.f32.mrb[0].mxu0
        %v3213 = vpop.f32.mrb[0].mxu0
        %v3214 = vadd.f32 0.0, %v3213
        %v3215 = vpop.f32.mrb[0].mxu0
        %3216 = vmatprep.mubr.bf16.mxu0 0
        %3217 = vmatmul.mubr.bf16.gmra.mrb[0].mxu0 %v3131
        %v3218 = vpop.f32.mrb[0].mxu0
        %v3219 = vadd.f32 0.0, %v3218
        %v3220 = vpop.f32.mrb[0].mxu0
        %v3221 = vpop.f32.mrb[0].mxu0
        %v3222 = vadd.f32 0.0, %v3221
        %v3223 = vpop.f32.mrb[0].mxu0
        %3224 = vmatprep.mubr.bf16.mxu0 0
        %3225 = vmatmul.mubr.bf16.gmra.mrb[0].mxu0 %v3134
        %v3226 = vpop.f32.mrb[0].mxu0
        %v3227 = vadd.f32 0.0, %v3226
        %v3228 = vpop.f32.mrb[0].mxu0
        %v3229 = vpop.f32.mrb[0].mxu0
        %v3230 = vadd.f32 0.0, %v3229
        %v3231 = vpop.f32.mrb[0].mxu0
        %3232 = vdwg.mxu0
        %v3233 = vtanh.pop %v3171
        %v3234 = vtanh.pop %v3174
        %v3235 = vtanh.pop %v3179
        %v3236 = vtanh.pop %v3182
        %v3237 = vtanh.pop %v3187
        %v3238 = vtanh.pop %v3190
        %v3239 = vtanh.pop %v3195
        %v3240 = vtanh.pop %v3198
        %v3241 = vtanh.pop %v3203
        %v3242 = vtanh.pop %v3206
        %v3243 = vtanh.pop %v3211
        %v3244 = vtanh.pop %v3214
        %v3245 = vtanh.pop %v3219
        %v3246 = vtanh.pop %v3222
        %v3247 = vtanh.pop %v3227
        %v3248 = vtanh.pop %v3230
        %v3249 = vpack.c.bf16 %v3234, %v3233
        %v3250 = vpack.c.bf16 %v3236, %v3235
        %v3251 = vpack.c.bf16 %v3238, %v3237
        %v3252 = vpack.c.bf16 %v3240, %v3239
        %v3253 = vpack.c.bf16 %v3242, %v3241
        %v3254 = vpack.c.bf16 %v3244, %v3243
        %v3255 = vpack.c.bf16 %v3246, %v3245
        %v3256 = vpack.c.bf16 %v3248, %v3247
        %3257 = vrot.lane.b32.xlu0 %v3100, 32
        %v3258 = vpop.permute.xlu0 %3257
        %3259 = vrot.lane.b32.xlu0 %v3101, 32
        %v3260 = vpop.permute.xlu0 %3259
        %3261 = vrot.lane.b32.xlu0 %v3102, 32
        %v3262 = vpop.permute.xlu0 %3261
        %3263 = vrot.lane.b32.xlu0 %v3103, 32
        %v3264 = vpop.permute.xlu0 %3263
        %3265 = vrot.lane.b32.xlu0 %v3104, 32
        %v3266 = vpop.permute.xlu0 %3265
        %3267 = vrot.lane.b32.xlu0 %v3105, 32
        %v3268 = vpop.permute.xlu0 %3267
        %v3276 = vsel %vm644, %v3249, 0
        %v3279 = vsel %vm644, %v3250, 0
        %v3282 = vsel %vm644, %v3251, 0
        %v3285 = vsel %vm644, %v3252, 0
        %v3288 = vsel %vm644, %v3253, 0
        %v3291 = vsel %vm644, %v3254, 0
        %v3294 = vsel %vm644, %v3255, 0
        %v3297 = vsel %vm644, %v3256, 0
        %3299 = vmatprep.subr.bf16.mxu0 0
        %3300 = vmatpush1.bf16.msra.mxu0 %v3258
        %3301 = vmatprep.subr.bf16.mxu0 0
        %3302 = vmatpush1.bf16.msra.mxu0 %v3260
        %3303 = vmatprep.subr.bf16.mxu0 0
        %3304 = vmatpush1.bf16.msra.mxu0 %v3262
        %3305 = vmatprep.subr.bf16.mxu0 0
        %3306 = vmatpush1.bf16.msra.mxu0 %v3264
        %3307 = vmatprep.subr.bf16.mxu0 0
        %3308 = vmatpush1.bf16.msra.mxu0 %v3266
        %3309 = vmatprep.subr.bf16.mxu0 0
        %3310 = vmatpush1.bf16.msra.mxu0 %v3268
        %3311 = vmatprep.subr.bf16.mxu0 0
        %3312 = vmatpush1.bf16.msra.mxu0 0
        %3313 = vmatprep.subr.bf16.mxu0 0
        %3314 = vmatpush1.bf16.msra.mxu0 0
        %3315 = vmatprep.subr.bf16.mxu0 0
        %3316 = vmatpush1.bf16.msra.mxu0 0
        %3317 = vmatprep.subr.bf16.mxu0 0
        %3318 = vmatpush1.bf16.msra.mxu0 0
        %3319 = vmatprep.subr.bf16.mxu0 0
        %3320 = vmatpush1.bf16.msra.mxu0 0
        %3321 = vmatprep.subr.bf16.mxu0 0
        %3322 = vmatpush1.bf16.msra.mxu0 0
        %3323 = vmatprep.subr.bf16.mxu0 0
        %3324 = vmatpush1.bf16.msra.mxu0 0
        %3325 = vmatprep.subr.bf16.mxu0 0
        %3326 = vmatpush1.bf16.msra.mxu0 0
        %3327 = vmatprep.subr.bf16.mxu0 0
        %3328 = vmatpush1.bf16.msra.mxu0 0
        %3329 = vmatprep.subr.bf16.mxu0 0
        %3330 = vmatpush1.bf16.msra.mxu0 0
        %3331 = vmatprep.mubr.bf16.mxu0 0
        %3332 = vmatmul.mubr.bf16.gmra.mrb[0].mxu0 %v3276
        %v3333 = vpop.f32.mrb[0].mxu0
        %v3334 = vadd.f32 0.0, %v3333
        %v3335 = vpop.f32.mrb[0].mxu0
        %v3336 = vpop.f32.mrb[0].mxu0
        %v3337 = vadd.f32 0.0, %v3336
        %v3338 = vpop.f32.mrb[0].mxu0
        %3339 = vmatprep.mubr.bf16.mxu0 0
        %3340 = vmatmul.mubr.bf16.gmra.mrb[0].mxu0 %v3279
        %v3341 = vpop.f32.mrb[0].mxu0
        %v3342 = vadd.f32 0.0, %v3341
        %v3343 = vpop.f32.mrb[0].mxu0
        %v3344 = vpop.f32.mrb[0].mxu0
        %v3345 = vadd.f32 0.0, %v3344
        %v3346 = vpop.f32.mrb[0].mxu0
        %3347 = vmatprep.mubr.bf16.mxu0 0
        %3348 = vmatmul.mubr.bf16.gmra.mrb[0].mxu0 %v3282
        %v3349 = vpop.f32.mrb[0].mxu0
        %v3350 = vadd.f32 0.0, %v3349
        %v3351 = vpop.f32.mrb[0].mxu0
        %v3352 = vpop.f32.mrb[0].mxu0
        %v3353 = vadd.f32 0.0, %v3352
        %v3354 = vpop.f32.mrb[0].mxu0
        %3355 = vmatprep.mubr.bf16.mxu0 0
        %3356 = vmatmul.mubr.bf16.gmra.mrb[0].mxu0 %v3285
        %v3357 = vpop.f32.mrb[0].mxu0
        %v3358 = vadd.f32 0.0, %v3357
        %v3359 = vpop.f32.mrb[0].mxu0
        %v3360 = vpop.f32.mrb[0].mxu0
        %v3361 = vadd.f32 0.0, %v3360
        %v3362 = vpop.f32.mrb[0].mxu0
        %3363 = vmatprep.mubr.bf16.mxu0 0
        %3364 = vmatmul.mubr.bf16.gmra.mrb[0].mxu0 %v3288
        %v3365 = vpop.f32.mrb[0].mxu0
        %v3366 = vadd.f32 0.0, %v3365
        %v3367 = vpop.f32.mrb[0].mxu0
        %v3368 = vpop.f32.mrb[0].mxu0
        %v3369 = vadd.f32 0.0, %v3368
        %v3370 = vpop.f32.mrb[0].mxu0
        %3371 = vmatprep.mubr.bf16.mxu0 0
        %3372 = vmatmul.mubr.bf16.gmra.mrb[0].mxu0 %v3291
        %v3373 = vpop.f32.mrb[0].mxu0
        %v3374 = vadd.f32 0.0, %v3373
        %v3375 = vpop.f32.mrb[0].mxu0
        %v3376 = vpop.f32.mrb[0].mxu0
        %v3377 = vadd.f32 0.0, %v3376
        %v3378 = vpop.f32.mrb[0].mxu0
        %3379 = vmatprep.mubr.bf16.mxu0 0
        %3380 = vmatmul.mubr.bf16.gmra.mrb[0].mxu0 %v3294
        %v3381 = vpop.f32.mrb[0].mxu0
        %v3382 = vadd.f32 0.0, %v3381
        %v3383 = vpop.f32.mrb[0].mxu0
        %v3384 = vpop.f32.mrb[0].mxu0
        %v3385 = vadd.f32 0.0, %v3384
        %v3386 = vpop.f32.mrb[0].mxu0
        %3387 = vmatprep.mubr.bf16.mxu0 0
        %3388 = vmatmul.mubr.bf16.gmra.mrb[0].mxu0 %v3297
        %v3389 = vpop.f32.mrb[0].mxu0
        %v3390 = vadd.f32 0.0, %v3389
        %v3391 = vpop.f32.mrb[0].mxu0
        %v3392 = vpop.f32.mrb[0].mxu0
        %v3393 = vadd.f32 0.0, %v3392
        %v3394 = vpop.f32.mrb[0].mxu0
        %3395 = vdwg.mxu0
        %v3396 = vsel %vm961, %v3334, -inf
        %3397 = vmax.xlane.f32.xlu0 %v3396
        %v3398 = vpop.xlane.xlu0 %3397
        %v3399 = vsel %vm961, %v3337, -inf
        %3400 = vmax.xlane.f32.xlu0 %v3399
        %v3401 = vpop.xlane.xlu0 %3400
        %v3402 = vsel %vm961, %v3342, -inf
        %3403 = vmax.xlane.f32.xlu0 %v3402
        %v3404 = vpop.xlane.xlu0 %3403
        %v3405 = vsel %vm961, %v3345, -inf
        %3406 = vmax.xlane.f32.xlu0 %v3405
        %v3407 = vpop.xlane.xlu0 %3406
        %v3408 = vsel %vm961, %v3350, -inf
        %3409 = vmax.xlane.f32.xlu0 %v3408
        %v3410 = vpop.xlane.xlu0 %3409
        %v3411 = vsel %vm961, %v3353, -inf
        %3412 = vmax.xlane.f32.xlu0 %v3411
        %v3413 = vpop.xlane.xlu0 %3412
        %v3414 = vsel %vm961, %v3358, -inf
        %3415 = vmax.xlane.f32.xlu0 %v3414
        %v3416 = vpop.xlane.xlu0 %3415
        %v3417 = vsel %vm961, %v3361, -inf
        %3418 = vmax.xlane.f32.xlu0 %v3417
        %v3419 = vpop.xlane.xlu0 %3418
        %v3420 = vsel %vm961, %v3366, -inf
        %3421 = vmax.xlane.f32.xlu0 %v3420
        %v3422 = vpop.xlane.xlu0 %3421
        %v3423 = vsel %vm961, %v3369, -inf
        %3424 = vmax.xlane.f32.xlu0 %v3423
        %v3425 = vpop.xlane.xlu0 %3424
        %v3426 = vsel %vm961, %v3374, -inf
        %3427 = vmax.xlane.f32.xlu0 %v3426
        %v3428 = vpop.xlane.xlu0 %3427
        %v3429 = vsel %vm961, %v3377, -inf
        %3430 = vmax.xlane.f32.xlu0 %v3429
        %v3431 = vpop.xlane.xlu0 %3430
        %v3432 = vsel %vm961, %v3382, -inf
        %3433 = vmax.xlane.f32.xlu0 %v3432
        %v3434 = vpop.xlane.xlu0 %3433
        %v3435 = vsel %vm961, %v3385, -inf
        %3436 = vmax.xlane.f32.xlu0 %v3435
        %v3437 = vpop.xlane.xlu0 %3436
        %v3438 = vsel %vm961, %v3390, -inf
        %3439 = vmax.xlane.f32.xlu0 %v3438
        %v3440 = vpop.xlane.xlu0 %3439
        %v3441 = vsel %vm961, %v3393, -inf
        %3442 = vmax.xlane.f32.xlu0 %v3441
        %v3443 = vpop.xlane.xlu0 %3442
        %v3444 = vsub.f32 %v3334, %v3398
        %v3445 = vsub.f32 %v3337, %v3401
        %v3446 = vsub.f32 %v3342, %v3404
        %v3447 = vsub.f32 %v3345, %v3407
        %v3448 = vsub.f32 %v3350, %v3410
        %v3449 = vsub.f32 %v3353, %v3413
        %v3450 = vsub.f32 %v3358, %v3416
        %v3451 = vsub.f32 %v3361, %v3419
        %v3452 = vsub.f32 %v3366, %v3422
        %v3453 = vsub.f32 %v3369, %v3425
        %v3454 = vsub.f32 %v3374, %v3428
        %v3455 = vsub.f32 %v3377, %v3431
        %v3456 = vsub.f32 %v3382, %v3434
        %v3457 = vsub.f32 %v3385, %v3437
        %v3458 = vsub.f32 %v3390, %v3440
        %v3459 = vsub.f32 %v3393, %v3443
        %v3460 = vmul.f32 %v3444, 1.442695
        %v3461 = vpow.pop %v3460
        %v3462 = vmul.f32 %v3445, 1.442695
        %v3463 = vpow.pop %v3462
        %v3464 = vmul.f32 %v3446, 1.442695
        %v3465 = vpow.pop %v3464
        %v3466 = vmul.f32 %v3447, 1.442695
        %v3467 = vpow.pop %v3466
        %v3468 = vmul.f32 %v3448, 1.442695
        %v3469 = vpow.pop %v3468
        %v3470 = vmul.f32 %v3449, 1.442695
        %v3471 = vpow.pop %v3470
        %v3472 = vmul.f32 %v3450, 1.442695
        %v3473 = vpow.pop %v3472
        %v3474 = vmul.f32 %v3451, 1.442695
        %v3475 = vpow.pop %v3474
        %v3476 = vmul.f32 %v3452, 1.442695
        %v3477 = vpow.pop %v3476
        %v3478 = vmul.f32 %v3453, 1.442695
        %v3479 = vpow.pop %v3478
        %v3480 = vmul.f32 %v3454, 1.442695
        %v3481 = vpow.pop %v3480
        %v3482 = vmul.f32 %v3455, 1.442695
        %v3483 = vpow.pop %v3482
        %v3484 = vmul.f32 %v3456, 1.442695
        %v3485 = vpow.pop %v3484
        %v3486 = vmul.f32 %v3457, 1.442695
        %v3487 = vpow.pop %v3486
        %v3488 = vmul.f32 %v3458, 1.442695
        %v3489 = vpow.pop %v3488
        %v3490 = vmul.f32 %v3459, 1.442695
        %v3491 = vpow.pop %v3490
        %v3492 = vsel %vm961, %v3461, 0.0
        %3493 = vadd.xlane.f32.xlu0 %v3492
        %v3494 = vpop.xlane.xlu0 %3493
        %v3495 = vsel %vm961, %v3463, 0.0
        %3496 = vadd.xlane.f32.xlu0 %v3495
        %v3497 = vpop.xlane.xlu0 %3496
        %v3498 = vsel %vm961, %v3465, 0.0
        %3499 = vadd.xlane.f32.xlu0 %v3498
        %v3500 = vpop.xlane.xlu0 %3499
        %v3501 = vsel %vm961, %v3467, 0.0
        %3502 = vadd.xlane.f32.xlu0 %v3501
        %v3503 = vpop.xlane.xlu0 %3502
        %v3504 = vsel %vm961, %v3469, 0.0
        %3505 = vadd.xlane.f32.xlu0 %v3504
        %v3506 = vpop.xlane.xlu0 %3505
        %v3507 = vsel %vm961, %v3471, 0.0
        %3508 = vadd.xlane.f32.xlu0 %v3507
        %v3509 = vpop.xlane.xlu0 %3508
        %v3510 = vsel %vm961, %v3473, 0.0
        %3511 = vadd.xlane.f32.xlu0 %v3510
        %v3512 = vpop.xlane.xlu0 %3511
        %v3513 = vsel %vm961, %v3475, 0.0
        %3514 = vadd.xlane.f32.xlu0 %v3513
        %v3515 = vpop.xlane.xlu0 %3514
        %v3516 = vsel %vm961, %v3477, 0.0
        %3517 = vadd.xlane.f32.xlu0 %v3516
        %v3518 = vpop.xlane.xlu0 %3517
        %v3519 = vsel %vm961, %v3479, 0.0
        %3520 = vadd.xlane.f32.xlu0 %v3519
        %v3521 = vpop.xlane.xlu0 %3520
        %v3522 = vsel %vm961, %v3481, 0.0
        %3523 = vadd.xlane.f32.xlu0 %v3522
        %v3524 = vpop.xlane.xlu0 %3523
        %v3525 = vsel %vm961, %v3483, 0.0
        %3526 = vadd.xlane.f32.xlu0 %v3525
        %v3527 = vpop.xlane.xlu0 %3526
        %v3528 = vsel %vm961, %v3485, 0.0
        %3529 = vadd.xlane.f32.xlu0 %v3528
        %v3530 = vpop.xlane.xlu0 %3529
        %v3531 = vsel %vm961, %v3487, 0.0
        %3532 = vadd.xlane.f32.xlu0 %v3531
        %v3533 = vpop.xlane.xlu0 %3532
        %v3534 = vsel %vm961, %v3489, 0.0
        %3535 = vadd.xlane.f32.xlu0 %v3534
        %v3536 = vpop.xlane.xlu0 %3535
        %v3537 = vsel %vm961, %v3491, 0.0
        %3538 = vadd.xlane.f32.xlu0 %v3537
        %v3539 = vpop.xlane.xlu0 %3538
        %v3540 = vrcp.pop %v3494
        %v3541 = vrcp.pop %v3497
        %v3542 = vrcp.pop %v3500
        %v3543 = vrcp.pop %v3503
        %v3544 = vrcp.pop %v3506
        %v3545 = vrcp.pop %v3509
        %v3546 = vrcp.pop %v3512
        %v3547 = vrcp.pop %v3515
        %v3548 = vrcp.pop %v3518
        %v3549 = vrcp.pop %v3521
        %v3550 = vrcp.pop %v3524
        %v3551 = vrcp.pop %v3527
        %v3552 = vrcp.pop %v3530
        %v3553 = vrcp.pop %v3533
        %v3554 = vrcp.pop %v3536
        %v3555 = vrcp.pop %v3539
        %v3556 = vmul.f32 %v3461, %v3540
        %v3557 = vmul.f32 %v3463, %v3541
        %v3558 = vmul.f32 %v3465, %v3542
        %v3559 = vmul.f32 %v3467, %v3543
        %v3560 = vmul.f32 %v3469, %v3544
        %v3561 = vmul.f32 %v3471, %v3545
        %v3562 = vmul.f32 %v3473, %v3546
        %v3563 = vmul.f32 %v3475, %v3547
        %v3564 = vmul.f32 %v3477, %v3548
        %v3565 = vmul.f32 %v3479, %v3549
        %v3566 = vmul.f32 %v3481, %v3550
        %v3567 = vmul.f32 %v3483, %v3551
        %v3568 = vmul.f32 %v3485, %v3552
        %v3569 = vmul.f32 %v3487, %v3553
        %v3570 = vmul.f32 %v3489, %v3554
        %v3571 = vmul.f32 %v3491, %v3555
        %3573 = vset.pattern.permute.xlu0 0
        %3574 = vperm.xlu0 %3573, %v3556
        %v3575 = vpop.permute.xlu0 %3574
        %3578 = vset.pattern.permute.xlu0 0
        %3579 = vperm.xlu0 %3578, %v3557
        %v3580 = vpop.permute.xlu0 %3579
        %3583 = vset.pattern.permute.xlu0 0
        %3584 = vperm.xlu0 %3583, %v3558
        %v3585 = vpop.permute.xlu0 %3584
        %3588 = vset.pattern.permute.xlu0 0
        %3589 = vperm.xlu0 %3588, %v3559
        %v3590 = vpop.permute.xlu0 %3589
        %3593 = vset.pattern.permute.xlu0 0
        %3594 = vperm.xlu0 %3593, %v3560
        %v3595 = vpop.permute.xlu0 %3594
        %3598 = vset.pattern.permute.xlu0 0
        %3599 = vperm.xlu0 %3598, %v3561
        %v3600 = vpop.permute.xlu0 %3599
        %3603 = vset.pattern.permute.xlu0 0
        %3604 = vperm.xlu0 %3603, %v3562
        %v3605 = vpop.permute.xlu0 %3604
        %3608 = vset.pattern.permute.xlu0 0
        %3609 = vperm.xlu0 %3608, %v3563
        %v3610 = vpop.permute.xlu0 %3609
        %3613 = vset.pattern.permute.xlu0 0
        %3614 = vperm.xlu0 %3613, %v3564
        %v3615 = vpop.permute.xlu0 %3614
        %3618 = vset.pattern.permute.xlu0 0
        %3619 = vperm.xlu0 %3618, %v3565
        %v3620 = vpop.permute.xlu0 %3619
        %3623 = vset.pattern.permute.xlu0 0
        %3624 = vperm.xlu0 %3623, %v3566
        %v3625 = vpop.permute.xlu0 %3624
        %3628 = vset.pattern.permute.xlu0 0
        %3629 = vperm.xlu0 %3628, %v3567
        %v3630 = vpop.permute.xlu0 %3629
        %3633 = vset.pattern.permute.xlu0 0
        %3634 = vperm.xlu0 %3633, %v3568
        %v3635 = vpop.permute.xlu0 %3634
        %3638 = vset.pattern.permute.xlu0 0
        %3639 = vperm.xlu0 %3638, %v3569
        %v3640 = vpop.permute.xlu0 %3639
        %3643 = vset.pattern.permute.xlu0 0
        %3644 = vperm.xlu0 %3643, %v3570
        %v3645 = vpop.permute.xlu0 %3644
        %3648 = vset.pattern.permute.xlu0 0
        %3649 = vperm.xlu0 %3648, %v3571
        %v3650 = vpop.permute.xlu0 %3649
        %v3652 = vmul.f32 %v3575, %v2641
        %v3653 = vmul.f32 %v3580, %v2644
        %v3654 = vmul.f32 %v3585, %v2649
        %v3655 = vmul.f32 %v3590, %v2652
        %v3656 = vmul.f32 %v3595, %v2657
        %v3657 = vmul.f32 %v3600, %v2660
        %v3658 = vmul.f32 %v3605, %v2665
        %v3659 = vmul.f32 %v3610, %v2668
        %v3660 = vmul.f32 %v3615, %v2673
        %v3661 = vmul.f32 %v3620, %v2676
        %v3662 = vmul.f32 %v3625, %v2681
        %v3663 = vmul.f32 %v3630, %v2684
        %v3664 = vmul.f32 %v3635, %v2689
        %v3665 = vmul.f32 %v3640, %v2692
        %v3666 = vmul.f32 %v3645, %v2697
        %v3667 = vmul.f32 %v3650, %v2700
        %3668 = vset.pattern.permute.xlu0 1
        %3669 = vperm.xlu0 %3668, %v3556
        %v3670 = vpop.permute.xlu0 %3669
        %3672 = vset.pattern.permute.xlu0 1
        %3673 = vperm.xlu0 %3672, %v3557
        %v3674 = vpop.permute.xlu0 %3673
        %3676 = vset.pattern.permute.xlu0 1
        %3677 = vperm.xlu0 %3676, %v3558
        %v3678 = vpop.permute.xlu0 %3677
        %3680 = vset.pattern.permute.xlu0 1
        %3681 = vperm.xlu0 %3680, %v3559
        %v3682 = vpop.permute.xlu0 %3681
        %3684 = vset.pattern.permute.xlu0 1
        %3685 = vperm.xlu0 %3684, %v3560
        %v3686 = vpop.permute.xlu0 %3685
        %3688 = vset.pattern.permute.xlu0 1
        %3689 = vperm.xlu0 %3688, %v3561
        %v3690 = vpop.permute.xlu0 %3689
        %3692 = vset.pattern.permute.xlu0 1
        %3693 = vperm.xlu0 %3692, %v3562
        %v3694 = vpop.permute.xlu0 %3693
        %3696 = vset.pattern.permute.xlu0 1
        %3697 = vperm.xlu0 %3696, %v3563
        %v3698 = vpop.permute.xlu0 %3697
        %3700 = vset.pattern.permute.xlu0 1
        %3701 = vperm.xlu0 %3700, %v3564
        %v3702 = vpop.permute.xlu0 %3701
        %3704 = vset.pattern.permute.xlu0 1
        %3705 = vperm.xlu0 %3704, %v3565
        %v3706 = vpop.permute.xlu0 %3705
        %3708 = vset.pattern.permute.xlu0 1
        %3709 = vperm.xlu0 %3708, %v3566
        %v3710 = vpop.permute.xlu0 %3709
        %3712 = vset.pattern.permute.xlu0 1
        %3713 = vperm.xlu0 %3712, %v3567
        %v3714 = vpop.permute.xlu0 %3713
        %3716 = vset.pattern.permute.xlu0 1
        %3717 = vperm.xlu0 %3716, %v3568
        %v3718 = vpop.permute.xlu0 %3717
        %3720 = vset.pattern.permute.xlu0 1
        %3721 = vperm.xlu0 %3720, %v3569
        %v3722 = vpop.permute.xlu0 %3721
        %3724 = vset.pattern.permute.xlu0 1
        %3725 = vperm.xlu0 %3724, %v3570
        %v3726 = vpop.permute.xlu0 %3725
        %3728 = vset.pattern.permute.xlu0 1
        %3729 = vperm.xlu0 %3728, %v3571
        %v3730 = vpop.permute.xlu0 %3729
        %v3732 = vmul.f32 %v3670, %v2641
        %v3733 = vmul.f32 %v3674, %v2644
        %v3734 = vmul.f32 %v3678, %v2649
        %v3735 = vmul.f32 %v3682, %v2652
        %v3736 = vmul.f32 %v3686, %v2657
        %v3737 = vmul.f32 %v3690, %v2660
        %v3738 = vmul.f32 %v3694, %v2665
        %v3739 = vmul.f32 %v3698, %v2668
        %v3740 = vmul.f32 %v3702, %v2673
        %v3741 = vmul.f32 %v3706, %v2676
        %v3742 = vmul.f32 %v3710, %v2681
        %v3743 = vmul.f32 %v3714, %v2684
        %v3744 = vmul.f32 %v3718, %v2689
        %v3745 = vmul.f32 %v3722, %v2692
        %v3746 = vmul.f32 %v3726, %v2697
        %v3747 = vmul.f32 %v3730, %v2700
        %3764 = vrot.lane.b32.xlu0 %v3732, 96
        %v3765 = vpop.permute.xlu0 %3764
        %3766 = vrot.lane.b32.xlu0 %v3733, 96
        %v3767 = vpop.permute.xlu0 %3766
        %3768 = vrot.lane.b32.xlu0 %v3734, 96
        %v3769 = vpop.permute.xlu0 %3768
        %3770 = vrot.lane.b32.xlu0 %v3735, 96
        %v3771 = vpop.permute.xlu0 %3770
        %3772 = vrot.lane.b32.xlu0 %v3736, 96
        %v3773 = vpop.permute.xlu0 %3772
        %3774 = vrot.lane.b32.xlu0 %v3737, 96
        %v3775 = vpop.permute.xlu0 %3774
        %3776 = vrot.lane.b32.xlu0 %v3738, 96
        %v3777 = vpop.permute.xlu0 %3776
        %3778 = vrot.lane.b32.xlu0 %v3739, 96
        %v3779 = vpop.permute.xlu0 %3778
        %3780 = vrot.lane.b32.xlu0 %v3740, 96
        %v3781 = vpop.permute.xlu0 %3780
        %3782 = vrot.lane.b32.xlu0 %v3741, 96
        %v3783 = vpop.permute.xlu0 %3782
        %3784 = vrot.lane.b32.xlu0 %v3742, 96
        %v3785 = vpop.permute.xlu0 %3784
        %3786 = vrot.lane.b32.xlu0 %v3743, 96
        %v3787 = vpop.permute.xlu0 %3786
        %3788 = vrot.lane.b32.xlu0 %v3744, 96
        %v3789 = vpop.permute.xlu0 %3788
        %3790 = vrot.lane.b32.xlu0 %v3745, 96
        %v3791 = vpop.permute.xlu0 %3790
        %3792 = vrot.lane.b32.xlu0 %v3746, 96
        %v3793 = vpop.permute.xlu0 %3792
        %3794 = vrot.lane.b32.xlu0 %v3747, 96
        %v3795 = vpop.permute.xlu0 %3794
        %v3812 = vadd.f32 %v3652, %v3765
        %v3813 = vadd.f32 %v3653, %v3767
        %v3814 = vadd.f32 %v3654, %v3769
        %v3815 = vadd.f32 %v3655, %v3771
        %v3816 = vadd.f32 %v3656, %v3773
        %v3817 = vadd.f32 %v3657, %v3775
        %v3818 = vadd.f32 %v3658, %v3777
        %v3819 = vadd.f32 %v3659, %v3779
        %v3820 = vadd.f32 %v3660, %v3781
        %v3821 = vadd.f32 %v3661, %v3783
        %v3822 = vadd.f32 %v3662, %v3785
        %v3823 = vadd.f32 %v3663, %v3787
        %v3824 = vadd.f32 %v3664, %v3789
        %v3825 = vadd.f32 %v3665, %v3791
        %v3826 = vadd.f32 %v3666, %v3793
        %v3827 = vadd.f32 %v3667, %v3795
        %3828 = vset.pattern.permute.xlu0 2
        %3829 = vperm.xlu0 %3828, %v3556
        %v3830 = vpop.permute.xlu0 %3829
        %3832 = vset.pattern.permute.xlu0 2
        %3833 = vperm.xlu0 %3832, %v3557
        %v3834 = vpop.permute.xlu0 %3833
        %3836 = vset.pattern.permute.xlu0 2
        %3837 = vperm.xlu0 %3836, %v3558
        %v3838 = vpop.permute.xlu0 %3837
        %3840 = vset.pattern.permute.xlu0 2
        %3841 = vperm.xlu0 %3840, %v3559
        %v3842 = vpop.permute.xlu0 %3841
        %3844 = vset.pattern.permute.xlu0 2
        %3845 = vperm.xlu0 %3844, %v3560
        %v3846 = vpop.permute.xlu0 %3845
        %3848 = vset.pattern.permute.xlu0 2
        %3849 = vperm.xlu0 %3848, %v3561
        %v3850 = vpop.permute.xlu0 %3849
        %3852 = vset.pattern.permute.xlu0 2
        %3853 = vperm.xlu0 %3852, %v3562
        %v3854 = vpop.permute.xlu0 %3853
        %3856 = vset.pattern.permute.xlu0 2
        %3857 = vperm.xlu0 %3856, %v3563
        %v3858 = vpop.permute.xlu0 %3857
        %3860 = vset.pattern.permute.xlu0 2
        %3861 = vperm.xlu0 %3860, %v3564
        %v3862 = vpop.permute.xlu0 %3861
        %3864 = vset.pattern.permute.xlu0 2
        %3865 = vperm.xlu0 %3864, %v3565
        %v3866 = vpop.permute.xlu0 %3865
        %3868 = vset.pattern.permute.xlu0 2
        %3869 = vperm.xlu0 %3868, %v3566
        %v3870 = vpop.permute.xlu0 %3869
        %3872 = vset.pattern.permute.xlu0 2
        %3873 = vperm.xlu0 %3872, %v3567
        %v3874 = vpop.permute.xlu0 %3873
        %3876 = vset.pattern.permute.xlu0 2
        %3877 = vperm.xlu0 %3876, %v3568
        %v3878 = vpop.permute.xlu0 %3877
        %3880 = vset.pattern.permute.xlu0 2
        %3881 = vperm.xlu0 %3880, %v3569
        %v3882 = vpop.permute.xlu0 %3881
        %3884 = vset.pattern.permute.xlu0 2
        %3885 = vperm.xlu0 %3884, %v3570
        %v3886 = vpop.permute.xlu0 %3885
        %3888 = vset.pattern.permute.xlu0 2
        %3889 = vperm.xlu0 %3888, %v3571
        %v3890 = vpop.permute.xlu0 %3889
        %v3892 = vmul.f32 %v3830, %v2641
        %v3893 = vmul.f32 %v3834, %v2644
        %v3894 = vmul.f32 %v3838, %v2649
        %v3895 = vmul.f32 %v3842, %v2652
        %v3896 = vmul.f32 %v3846, %v2657
        %v3897 = vmul.f32 %v3850, %v2660
        %v3898 = vmul.f32 %v3854, %v2665
        %v3899 = vmul.f32 %v3858, %v2668
        %v3900 = vmul.f32 %v3862, %v2673
        %v3901 = vmul.f32 %v3866, %v2676
        %v3902 = vmul.f32 %v3870, %v2681
        %v3903 = vmul.f32 %v3874, %v2684
        %v3904 = vmul.f32 %v3878, %v2689
        %v3905 = vmul.f32 %v3882, %v2692
        %v3906 = vmul.f32 %v3886, %v2697
        %v3907 = vmul.f32 %v3890, %v2700
        %3924 = vrot.lane.b32.xlu0 %v3892, 64
        %v3925 = vpop.permute.xlu0 %3924
        %3926 = vrot.lane.b32.xlu0 %v3893, 64
        %v3927 = vpop.permute.xlu0 %3926
        %3928 = vrot.lane.b32.xlu0 %v3894, 64
        %v3929 = vpop.permute.xlu0 %3928
        %3930 = vrot.lane.b32.xlu0 %v3895, 64
        %v3931 = vpop.permute.xlu0 %3930
        %3932 = vrot.lane.b32.xlu0 %v3896, 64
        %v3933 = vpop.permute.xlu0 %3932
        %3934 = vrot.lane.b32.xlu0 %v3897, 64
        %v3935 = vpop.permute.xlu0 %3934
        %3936 = vrot.lane.b32.xlu0 %v3898, 64
        %v3937 = vpop.permute.xlu0 %3936
        %3938 = vrot.lane.b32.xlu0 %v3899, 64
        %v3939 = vpop.permute.xlu0 %3938
        %3940 = vrot.lane.b32.xlu0 %v3900, 64
        %v3941 = vpop.permute.xlu0 %3940
        %3942 = vrot.lane.b32.xlu0 %v3901, 64
        %v3943 = vpop.permute.xlu0 %3942
        %3944 = vrot.lane.b32.xlu0 %v3902, 64
        %v3945 = vpop.permute.xlu0 %3944
        %3946 = vrot.lane.b32.xlu0 %v3903, 64
        %v3947 = vpop.permute.xlu0 %3946
        %3948 = vrot.lane.b32.xlu0 %v3904, 64
        %v3949 = vpop.permute.xlu0 %3948
        %3950 = vrot.lane.b32.xlu0 %v3905, 64
        %v3951 = vpop.permute.xlu0 %3950
        %3952 = vrot.lane.b32.xlu0 %v3906, 64
        %v3953 = vpop.permute.xlu0 %3952
        %3954 = vrot.lane.b32.xlu0 %v3907, 64
        %v3955 = vpop.permute.xlu0 %3954
        %v3972 = vadd.f32 %v3812, %v3925
        %v3973 = vadd.f32 %v3813, %v3927
        %v3974 = vadd.f32 %v3814, %v3929
        %v3975 = vadd.f32 %v3815, %v3931
        %v3976 = vadd.f32 %v3816, %v3933
        %v3977 = vadd.f32 %v3817, %v3935
        %v3978 = vadd.f32 %v3818, %v3937
        %v3979 = vadd.f32 %v3819, %v3939
        %v3980 = vadd.f32 %v3820, %v3941
        %v3981 = vadd.f32 %v3821, %v3943
        %v3982 = vadd.f32 %v3822, %v3945
        %v3983 = vadd.f32 %v3823, %v3947
        %v3984 = vadd.f32 %v3824, %v3949
        %v3985 = vadd.f32 %v3825, %v3951
        %v3986 = vadd.f32 %v3826, %v3953
        %v3987 = vadd.f32 %v3827, %v3955
        %v3988 = vadd.f32 %v1538, %v3972
        %v3989 = vadd.f32 %v1539, %v3973
        %v3990 = vadd.f32 %v1540, %v3974
        %v3991 = vadd.f32 %v1541, %v3975
        %v3992 = vadd.f32 %v1542, %v3976
        %v3993 = vadd.f32 %v1543, %v3977
        %v3994 = vadd.f32 %v1544, %v3978
        %v3995 = vadd.f32 %v1545, %v3979
        %v3996 = vadd.f32 %v1546, %v3980
        %v3997 = vadd.f32 %v1547, %v3981
        %v3998 = vadd.f32 %v1548, %v3982
        %v3999 = vadd.f32 %v1549, %v3983
        %v4000 = vadd.f32 %v1550, %v3984
        %v4001 = vadd.f32 %v1551, %v3985
        %v4002 = vadd.f32 %v1552, %v3986
        %v4003 = vadd.f32 %v1553, %v3987
        %v4004 = vpack.c.bf16 %v3989, %v3988
        %v4005 = vpack.c.bf16 %v3991, %v3990
        %v4006 = vpack.c.bf16 %v3993, %v3992
        %v4007 = vpack.c.bf16 %v3995, %v3994
        %v4008 = vpack.c.bf16 %v3997, %v3996
        %v4009 = vpack.c.bf16 %v3999, %v3998
        %v4010 = vpack.c.bf16 %v4001, %v4000
        %v4011 = vpack.c.bf16 %v4003, %v4002
        %v4012 = vld [vmem:[#allocation4 + $0x1c] sm:$0xf]
        %v4013 = vld [vmem:[#allocation4 + $0x3c] sm:$0xf]
        %v4014 = vld [vmem:[#allocation4 + $0x5c] sm:$0xf]
        %v4015 = vld [vmem:[#allocation4 + $0x7c] sm:$0xf]
        %v4016 = vld [vmem:[%s3 + $0x7] sm:$0x1]
        %v4018 = vlaneseq
        %v4019 = vshrl.u32 %v4018, 7
        %v4020 = vsub.s32 0, %v4019
        %v4021 = vrot.slane %v4016, %v4020
        %v4027 = vunpack.c.l.b16 %v4012
        %v4028 = vunpack.c.l.b16 %v4013
        %v4029 = vunpack.c.l.b16 %v4014
        %v4030 = vunpack.c.l.b16 %v4015
        %v4031 = vpack.c.b16 %v4028, %v4027
        %v4032 = vpack.c.b16 %v4030, %v4029
        %v4036 = vsel %vm1619, %v4004, 0
        %v4039 = vsel %vm1619, %v4005, 0
        %v4042 = vsel %vm1619, %v4006, 0
        %v4045 = vsel %vm1619, %v4007, 0
        %v4048 = vsel %vm1619, %v4008, 0
        %v4051 = vsel %vm1619, %v4009, 0
        %v4054 = vsel %vm1619, %v4010, 0
        %v4057 = vsel %vm1619, %v4011, 0
        %4059 = vmatprep.subr.bf16.mxu0 0
        %4060 = vmatpush1.bf16.msra.mxu0 %v4031
        %4061 = vmatprep.subr.bf16.mxu0 0
        %4062 = vmatpush1.bf16.msra.mxu0 %v4032
        %4063 = vmatprep.subr.bf16.mxu0 0
        %4064 = vmatpush1.bf16.msra.mxu0 0
        %4065 = vmatprep.subr.bf16.mxu0 0
        %4066 = vmatpush1.bf16.msra.mxu0 0
        %4067 = vmatprep.subr.bf16.mxu0 0
        %4068 = vmatpush1.bf16.msra.mxu0 0
        %4069 = vmatprep.subr.bf16.mxu0 0
        %4070 = vmatpush1.bf16.msra.mxu0 0
        %4071 = vmatprep.subr.bf16.mxu0 0
        %4072 = vmatpush1.bf16.msra.mxu0 0
        %4073 = vmatprep.subr.bf16.mxu0 0
        %4074 = vmatpush1.bf16.msra.mxu0 0
        %4075 = vmatprep.subr.bf16.mxu0 0
        %4076 = vmatpush1.bf16.msra.mxu0 0
        %4077 = vmatprep.subr.bf16.mxu0 0
        %4078 = vmatpush1.bf16.msra.mxu0 0
        %4079 = vmatprep.subr.bf16.mxu0 0
        %4080 = vmatpush1.bf16.msra.mxu0 0
        %4081 = vmatprep.subr.bf16.mxu0 0
        %4082 = vmatpush1.bf16.msra.mxu0 0
        %4083 = vmatprep.subr.bf16.mxu0 0
        %4084 = vmatpush1.bf16.msra.mxu0 0
        %4085 = vmatprep.subr.bf16.mxu0 0
        %4086 = vmatpush1.bf16.msra.mxu0 0
        %4087 = vmatprep.subr.bf16.mxu0 0
        %4088 = vmatpush1.bf16.msra.mxu0 0
        %4089 = vmatprep.subr.bf16.mxu0 0
        %4090 = vmatpush1.bf16.msra.mxu0 0
        %4091 = vmatprep.mubr.bf16.mxu0 0
        %4092 = vmatmul.mubr.bf16.gmra.mrb[0].mxu0 %v4036
        %v4093 = vpop.f32.mrb[0].mxu0
        %v4094 = vadd.f32 %v4021, %v4093
        %v4095 = vpop.f32.mrb[0].mxu0
        %v4096 = vpop.f32.mrb[0].mxu0
        %v4097 = vadd.f32 %v4021, %v4096
        %v4098 = vpop.f32.mrb[0].mxu0
        %4099 = vmatprep.mubr.bf16.mxu0 0
        %4100 = vmatmul.mubr.bf16.gmra.mrb[0].mxu0 %v4039
        %v4101 = vpop.f32.mrb[0].mxu0
        %v4102 = vadd.f32 %v4021, %v4101
        %v4103 = vpop.f32.mrb[0].mxu0
        %v4104 = vpop.f32.mrb[0].mxu0
        %v4105 = vadd.f32 %v4021, %v4104
        %v4106 = vpop.f32.mrb[0].mxu0
        %4107 = vmatprep.mubr.bf16.mxu0 0
        %4108 = vmatmul.mubr.bf16.gmra.mrb[0].mxu0 %v4042
        %v4109 = vpop.f32.mrb[0].mxu0
        %v4110 = vadd.f32 %v4021, %v4109
        %v4111 = vpop.f32.mrb[0].mxu0
        %v4112 = vpop.f32.mrb[0].mxu0
        %v4113 = vadd.f32 %v4021, %v4112
        %v4114 = vpop.f32.mrb[0].mxu0
        %4115 = vmatprep.mubr.bf16.mxu0 0
        %4116 = vmatmul.mubr.bf16.gmra.mrb[0].mxu0 %v4045
        %v4117 = vpop.f32.mrb[0].mxu0
        %v4118 = vadd.f32 %v4021, %v4117
        %v4119 = vpop.f32.mrb[0].mxu0
        %v4120 = vpop.f32.mrb[0].mxu0
        %v4121 = vadd.f32 %v4021, %v4120
        %v4122 = vpop.f32.mrb[0].mxu0
        %4123 = vmatprep.mubr.bf16.mxu0 0
        %4124 = vmatmul.mubr.bf16.gmra.mrb[0].mxu0 %v4048
        %v4125 = vpop.f32.mrb[0].mxu0
        %v4126 = vadd.f32 %v4021, %v4125
        %v4127 = vpop.f32.mrb[0].mxu0
        %v4128 = vpop.f32.mrb[0].mxu0
        %v4129 = vadd.f32 %v4021, %v4128
        %v4130 = vpop.f32.mrb[0].mxu0
        %4131 = vmatprep.mubr.bf16.mxu0 0
        %4132 = vmatmul.mubr.bf16.gmra.mrb[0].mxu0 %v4051
        %v4133 = vpop.f32.mrb[0].mxu0
        %v4134 = vadd.f32 %v4021, %v4133
        %v4135 = vpop.f32.mrb[0].mxu0
        %v4136 = vpop.f32.mrb[0].mxu0
        %v4137 = vadd.f32 %v4021, %v4136
        %v4138 = vpop.f32.mrb[0].mxu0
        %4139 = vmatprep.mubr.bf16.mxu0 0
        %4140 = vmatmul.mubr.bf16.gmra.mrb[0].mxu0 %v4054
        %v4141 = vpop.f32.mrb[0].mxu0
        %v4142 = vadd.f32 %v4021, %v4141
        %v4143 = vpop.f32.mrb[0].mxu0
        %v4144 = vpop.f32.mrb[0].mxu0
        %v4145 = vadd.f32 %v4021, %v4144
        %v4146 = vpop.f32.mrb[0].mxu0
        %4147 = vmatprep.mubr.bf16.mxu0 0
        %4148 = vmatmul.mubr.bf16.gmra.mrb[0].mxu0 %v4057
        %v4149 = vpop.f32.mrb[0].mxu0
        %v4150 = vadd.f32 %v4021, %v4149
        %v4151 = vpop.f32.mrb[0].mxu0
        %v4152 = vpop.f32.mrb[0].mxu0
        %v4153 = vadd.f32 %v4021, %v4152
        %v4154 = vpop.f32.mrb[0].mxu0
        %4155 = vdwg.mxu0
        %v4156 = vmul.f32 %v4094, 0.5
        %v4157 = vmul.f32 %v4097, 0.5
        %v4158 = vmul.f32 %v4102, 0.5
        %v4159 = vmul.f32 %v4105, 0.5
        %v4160 = vmul.f32 %v4110, 0.5
        %v4161 = vmul.f32 %v4113, 0.5
        %v4162 = vmul.f32 %v4118, 0.5
        %v4163 = vmul.f32 %v4121, 0.5
        %v4164 = vmul.f32 %v4126, 0.5
        %v4165 = vmul.f32 %v4129, 0.5
        %v4166 = vmul.f32 %v4134, 0.5
        %v4167 = vmul.f32 %v4137, 0.5
        %v4168 = vmul.f32 %v4142, 0.5
        %v4169 = vmul.f32 %v4145, 0.5
        %v4170 = vmul.f32 %v4150, 0.5
        %v4171 = vmul.f32 %v4153, 0.5
        %v4172 = vmul.f32 %v4094, 0.7978846
        %v4173 = vmul.f32 %v4097, 0.7978846
        %v4174 = vmul.f32 %v4102, 0.7978846
        %v4175 = vmul.f32 %v4105, 0.7978846
        %v4176 = vmul.f32 %v4110, 0.7978846
        %v4177 = vmul.f32 %v4113, 0.7978846
        %v4178 = vmul.f32 %v4118, 0.7978846
        %v4179 = vmul.f32 %v4121, 0.7978846
        %v4180 = vmul.f32 %v4126, 0.7978846
        %v4181 = vmul.f32 %v4129, 0.7978846
        %v4182 = vmul.f32 %v4134, 0.7978846
        %v4183 = vmul.f32 %v4137, 0.7978846
        %v4184 = vmul.f32 %v4142, 0.7978846
        %v4185 = vmul.f32 %v4145, 0.7978846
        %v4186 = vmul.f32 %v4150, 0.7978846
        %v4187 = vmul.f32 %v4153, 0.7978846
        %v4188 = vmul.f32 %v4094, 0.044715
        %v4189 = vmul.f32 %v4097, 0.044715
        %v4190 = vmul.f32 %v4102, 0.044715
        %v4191 = vmul.f32 %v4105, 0.044715
        %v4192 = vmul.f32 %v4110, 0.044715
        %v4193 = vmul.f32 %v4113, 0.044715
        %v4194 = vmul.f32 %v4118, 0.044715
        %v4195 = vmul.f32 %v4121, 0.044715
        %v4196 = vmul.f32 %v4126, 0.044715
        %v4197 = vmul.f32 %v4129, 0.044715
        %v4198 = vmul.f32 %v4134, 0.044715
        %v4199 = vmul.f32 %v4137, 0.044715
        %v4200 = vmul.f32 %v4142, 0.044715
        %v4201 = vmul.f32 %v4145, 0.044715
        %v4202 = vmul.f32 %v4150, 0.044715
        %v4203 = vmul.f32 %v4153, 0.044715
        %v4204 = vmul.f32 %v4188, %v4094
        %v4205 = vmul.f32 %v4189, %v4097
        %v4206 = vmul.f32 %v4190, %v4102
        %v4207 = vmul.f32 %v4191, %v4105
        %v4208 = vmul.f32 %v4192, %v4110
        %v4209 = vmul.f32 %v4193, %v4113
        %v4210 = vmul.f32 %v4194, %v4118
        %v4211 = vmul.f32 %v4195, %v4121
        %v4212 = vmul.f32 %v4196, %v4126
        %v4213 = vmul.f32 %v4197, %v4129
        %v4214 = vmul.f32 %v4198, %v4134
        %v4215 = vmul.f32 %v4199, %v4137
        %v4216 = vmul.f32 %v4200, %v4142
        %v4217 = vmul.f32 %v4201, %v4145
        %v4218 = vmul.f32 %v4202, %v4150
        %v4219 = vmul.f32 %v4203, %v4153
        %v4220 = vadd.f32 %v4204, 1.0
        %v4221 = vadd.f32 %v4205, 1.0
        %v4222 = vadd.f32 %v4206, 1.0
        %v4223 = vadd.f32 %v4207, 1.0
        %v4224 = vadd.f32 %v4208, 1.0
        %v4225 = vadd.f32 %v4209, 1.0
        %v4226 = vadd.f32 %v4210, 1.0
        %v4227 = vadd.f32 %v4211, 1.0
        %v4228 = vadd.f32 %v4212, 1.0
        %v4229 = vadd.f32 %v4213, 1.0
        %v4230 = vadd.f32 %v4214, 1.0
        %v4231 = vadd.f32 %v4215, 1.0
        %v4232 = vadd.f32 %v4216, 1.0
        %v4233 = vadd.f32 %v4217, 1.0
        %v4234 = vadd.f32 %v4218, 1.0
        %v4235 = vadd.f32 %v4219, 1.0
        %v4236 = vmul.f32 %v4172, %v4220
        %v4237 = vmul.f32 %v4173, %v4221
        %v4238 = vmul.f32 %v4174, %v4222
        %v4239 = vmul.f32 %v4175, %v4223
        %v4240 = vmul.f32 %v4176, %v4224
        %v4241 = vmul.f32 %v4177, %v4225
        %v4242 = vmul.f32 %v4178, %v4226
        %v4243 = vmul.f32 %v4179, %v4227
        %v4244 = vmul.f32 %v4180, %v4228
        %v4245 = vmul.f32 %v4181, %v4229
        %v4246 = vmul.f32 %v4182, %v4230
        %v4247 = vmul.f32 %v4183, %v4231
        %v4248 = vmul.f32 %v4184, %v4232
        %v4249 = vmul.f32 %v4185, %v4233
        %v4250 = vmul.f32 %v4186, %v4234
        %v4251 = vmul.f32 %v4187, %v4235
        %v4252 = vtanh.pop %v4236
        %v4253 = vtanh.pop %v4237
        %v4254 = vtanh.pop %v4238
        %v4255 = vtanh.pop %v4239
        %v4256 = vtanh.pop %v4240
        %v4257 = vtanh.pop %v4241
        %v4258 = vtanh.pop %v4242
        %v4259 = vtanh.pop %v4243
        %v4260 = vtanh.pop %v4244
        %v4261 = vtanh.pop %v4245
        %v4262 = vtanh.pop %v4246
        %v4263 = vtanh.pop %v4247
        %v4264 = vtanh.pop %v4248
        %v4265 = vtanh.pop %v4249
        %v4266 = vtanh.pop %v4250
        %v4267 = vtanh.pop %v4251
        %v4268 = vadd.f32 %v4252, 1.0
        %v4269 = vadd.f32 %v4253, 1.0
        %v4270 = vadd.f32 %v4254, 1.0
        %v4271 = vadd.f32 %v4255, 1.0
        %v4272 = vadd.f32 %v4256, 1.0
        %v4273 = vadd.f32 %v4257, 1.0
        %v4274 = vadd.f32 %v4258, 1.0
        %v4275 = vadd.f32 %v4259, 1.0
        %v4276 = vadd.f32 %v4260, 1.0
        %v4277 = vadd.f32 %v4261, 1.0
        %v4278 = vadd.f32 %v4262, 1.0
        %v4279 = vadd.f32 %v4263, 1.0
        %v4280 = vadd.f32 %v4264, 1.0
        %v4281 = vadd.f32 %v4265, 1.0
        %v4282 = vadd.f32 %v4266, 1.0
        %v4283 = vadd.f32 %v4267, 1.0
        %v4284 = vmul.f32 %v4156, %v4268
        %v4285 = vmul.f32 %v4157, %v4269
        %v4286 = vmul.f32 %v4158, %v4270
        %v4287 = vmul.f32 %v4159, %v4271
        %v4288 = vmul.f32 %v4160, %v4272
        %v4289 = vmul.f32 %v4161, %v4273
        %v4290 = vmul.f32 %v4162, %v4274
        %v4291 = vmul.f32 %v4163, %v4275
        %v4292 = vmul.f32 %v4164, %v4276
        %v4293 = vmul.f32 %v4165, %v4277
        %v4294 = vmul.f32 %v4166, %v4278
        %v4295 = vmul.f32 %v4167, %v4279
        %v4296 = vmul.f32 %v4168, %v4280
        %v4297 = vmul.f32 %v4169, %v4281
        %v4298 = vmul.f32 %v4170, %v4282
        %v4299 = vmul.f32 %v4171, %v4283
        %v4300 = vpack.c.bf16 %v4285, %v4284
        %v4301 = vpack.c.bf16 %v4287, %v4286
        %v4302 = vpack.c.bf16 %v4289, %v4288
        %v4303 = vpack.c.bf16 %v4291, %v4290
        %v4304 = vpack.c.bf16 %v4293, %v4292
        %v4305 = vpack.c.bf16 %v4295, %v4294
        %v4306 = vpack.c.bf16 %v4297, %v4296
        %v4307 = vpack.c.bf16 %v4299, %v4298
        %v4308 = vld [vmem:[#allocation6 + $0x4] sm:$0xf]
        %v4309 = vld [vmem:[#allocation6 + $0x14] sm:$0xf]
        %v4310 = vld [vmem:[#allocation6 + $0x24] sm:$0xf]
        %v4311 = vld [vmem:[#allocation6 + $0x34] sm:$0xf]
        %v4312 = vld [vmem:[#allocation6 + $0x44] sm:$0xf]
        %v4313 = vld [vmem:[#allocation6 + $0x54] sm:$0xf]
        %v4314 = vld [vmem:[#allocation6 + $0x64] sm:$0xf]
        %v4315 = vld [vmem:[#allocation6 + $0x74] sm:$0xf]
        %v4316 = vld [vmem:[#allocation6 + $0x84] sm:$0xf]
        %v4317 = vld [vmem:[#allocation6 + $0x94] sm:$0xf]
        %v4318 = vld [vmem:[#allocation6 + $0xa4] sm:$0xf]
        %v4319 = vld [vmem:[#allocation6 + $0xb4] sm:$0xf]
        %v4320 = vld [vmem:[#allocation6 + $0xc4] sm:$0xf]
        %v4321 = vld [vmem:[#allocation6 + $0xd4] sm:$0xf]
        %v4322 = vld [vmem:[#allocation6 + $0xe4] sm:$0xf]
        %v4323 = vld [vmem:[#allocation6 + $0xf4] sm:$0xf]
        %v4340 = vunpack.c.l.b16 %v4308
        %v4341 = vunpack.c.l.b16 %v4309
        %v4342 = vunpack.c.l.b16 %v4310
        %v4343 = vunpack.c.l.b16 %v4311
        %v4344 = vunpack.c.l.b16 %v4312
        %v4345 = vunpack.c.l.b16 %v4313
        %v4346 = vunpack.c.l.b16 %v4314
        %v4347 = vunpack.c.l.b16 %v4315
        %v4348 = vunpack.c.l.b16 %v4316
        %v4349 = vunpack.c.l.b16 %v4317
        %v4350 = vunpack.c.l.b16 %v4318
        %v4351 = vunpack.c.l.b16 %v4319
        %v4352 = vunpack.c.l.b16 %v4320
        %v4353 = vunpack.c.l.b16 %v4321
        %v4354 = vunpack.c.l.b16 %v4322
        %v4355 = vunpack.c.l.b16 %v4323
        %v4356 = vpack.c.b16 %v4341, %v4340
        %v4357 = vpack.c.b16 %v4343, %v4342
        %v4358 = vpack.c.b16 %v4345, %v4344
        %v4359 = vpack.c.b16 %v4347, %v4346
        %v4360 = vpack.c.b16 %v4349, %v4348
        %v4361 = vpack.c.b16 %v4351, %v4350
        %v4362 = vpack.c.b16 %v4353, %v4352
        %v4363 = vpack.c.b16 %v4355, %v4354
        %4364 = vrot.lane.b32.xlu0 %v4356, 32
        %v4365 = vpop.permute.xlu0 %4364
        %4366 = vrot.lane.b32.xlu0 %v4357, 32
        %v4367 = vpop.permute.xlu0 %4366
        %4368 = vrot.lane.b32.xlu0 %v4358, 32
        %v4369 = vpop.permute.xlu0 %4368
        %4370 = vrot.lane.b32.xlu0 %v4359, 32
        %v4371 = vpop.permute.xlu0 %4370
        %4372 = vrot.lane.b32.xlu0 %v4360, 32
        %v4373 = vpop.permute.xlu0 %4372
        %4374 = vrot.lane.b32.xlu0 %v4361, 32
        %v4375 = vpop.permute.xlu0 %4374
        %4376 = vrot.lane.b32.xlu0 %v4362, 32
        %v4377 = vpop.permute.xlu0 %4376
        %4378 = vrot.lane.b32.xlu0 %v4363, 32
        %v4379 = vpop.permute.xlu0 %4378
        %4388 = vrot.lane.b32.xlu0 %v2363, 32
        %v4389 = vpop.permute.xlu0 %4388
        %4391 = vmatprep.subr.bf16.mxu0 0
        %4392 = vmatpush1.bf16.msra.mxu0 %v4365
        %4393 = vmatprep.subr.bf16.mxu0 0
        %4394 = vmatpush1.bf16.msra.mxu0 %v4367
        %4395 = vmatprep.subr.bf16.mxu0 0
        %4396 = vmatpush1.bf16.msra.mxu0 %v4369
        %4397 = vmatprep.subr.bf16.mxu0 0
        %4398 = vmatpush1.bf16.msra.mxu0 %v4371
        %4399 = vmatprep.subr.bf16.mxu0 0
        %4400 = vmatpush1.bf16.msra.mxu0 %v4373
        %4401 = vmatprep.subr.bf16.mxu0 0
        %4402 = vmatpush1.bf16.msra.mxu0 %v4375
        %4403 = vmatprep.subr.bf16.mxu0 0
        %4404 = vmatpush1.bf16.msra.mxu0 %v4377
        %4405 = vmatprep.subr.bf16.mxu0 0
        %4406 = vmatpush1.bf16.msra.mxu0 %v4379
        %4407 = vmatprep.subr.bf16.mxu0 0
        %4408 = vmatpush1.bf16.msra.mxu0 0
        %4409 = vmatprep.subr.bf16.mxu0 0
        %4410 = vmatpush1.bf16.msra.mxu0 0
        %4411 = vmatprep.subr.bf16.mxu0 0
        %4412 = vmatpush1.bf16.msra.mxu0 0
        %4413 = vmatprep.subr.bf16.mxu0 0
        %4414 = vmatpush1.bf16.msra.mxu0 0
        %4415 = vmatprep.subr.bf16.mxu0 0
        %4416 = vmatpush1.bf16.msra.mxu0 0
        %4417 = vmatprep.subr.bf16.mxu0 0
        %4418 = vmatpush1.bf16.msra.mxu0 0
        %4419 = vmatprep.subr.bf16.mxu0 0
        %4420 = vmatpush1.bf16.msra.mxu0 0
        %4421 = vmatprep.subr.bf16.mxu0 0
        %4422 = vmatpush1.bf16.msra.mxu0 0
        %4423 = vmatprep.mubr.bf16.mxu0 0
        %4424 = vmatmul.mubr.bf16.gmra.mrb[0].mxu0 %v4300
        %v4425 = vpop.f32.mrb[0].mxu0
        %v4426 = vadd.f32 %v4389, %v4425
        %v4427 = vpop.f32.mrb[0].mxu0
        %v4428 = vpop.f32.mrb[0].mxu0
        %v4429 = vadd.f32 %v4389, %v4428
        %v4430 = vpop.f32.mrb[0].mxu0
        %4431 = vmatprep.mubr.bf16.mxu0 0
        %4432 = vmatmul.mubr.bf16.gmra.mrb[0].mxu0 %v4301
        %v4433 = vpop.f32.mrb[0].mxu0
        %v4434 = vadd.f32 %v4389, %v4433
        %v4435 = vpop.f32.mrb[0].mxu0
        %v4436 = vpop.f32.mrb[0].mxu0
        %v4437 = vadd.f32 %v4389, %v4436
        %v4438 = vpop.f32.mrb[0].mxu0
        %4439 = vmatprep.mubr.bf16.mxu0 0
        %4440 = vmatmul.mubr.bf16.gmra.mrb[0].mxu0 %v4302
        %v4441 = vpop.f32.mrb[0].mxu0
        %v4442 = vadd.f32 %v4389, %v4441
        %v4443 = vpop.f32.mrb[0].mxu0
        %v4444 = vpop.f32.mrb[0].mxu0
        %v4445 = vadd.f32 %v4389, %v4444
        %v4446 = vpop.f32.mrb[0].mxu0
        %4447 = vmatprep.mubr.bf16.mxu0 0
        %4448 = vmatmul.mubr.bf16.gmra.mrb[0].mxu0 %v4303
        %v4449 = vpop.f32.mrb[0].mxu0
        %v4450 = vadd.f32 %v4389, %v4449
        %v4451 = vpop.f32.mrb[0].mxu0
        %v4452 = vpop.f32.mrb[0].mxu0
        %v4453 = vadd.f32 %v4389, %v4452
        %v4454 = vpop.f32.mrb[0].mxu0
        %4455 = vmatprep.mubr.bf16.mxu0 0
        %4456 = vmatmul.mubr.bf16.gmra.mrb[0].mxu0 %v4304
        %v4457 = vpop.f32.mrb[0].mxu0
        %v4458 = vadd.f32 %v4389, %v4457
        %v4459 = vpop.f32.mrb[0].mxu0
        %v4460 = vpop.f32.mrb[0].mxu0
        %v4461 = vadd.f32 %v4389, %v4460
        %v4462 = vpop.f32.mrb[0].mxu0
        %4463 = vmatprep.mubr.bf16.mxu0 0
        %4464 = vmatmul.mubr.bf16.gmra.mrb[0].mxu0 %v4305
        %v4465 = vpop.f32.mrb[0].mxu0
        %v4466 = vadd.f32 %v4389, %v4465
        %v4467 = vpop.f32.mrb[0].mxu0
        %v4468 = vpop.f32.mrb[0].mxu0
        %v4469 = vadd.f32 %v4389, %v4468
        %v4470 = vpop.f32.mrb[0].mxu0
        %4471 = vmatprep.mubr.bf16.mxu0 0
        %4472 = vmatmul.mubr.bf16.gmra.mrb[0].mxu0 %v4306
        %v4473 = vpop.f32.mrb[0].mxu0
        %v4474 = vadd.f32 %v4389, %v4473
        %v4475 = vpop.f32.mrb[0].mxu0
        %v4476 = vpop.f32.mrb[0].mxu0
        %v4477 = vadd.f32 %v4389, %v4476
        %v4478 = vpop.f32.mrb[0].mxu0
        %4479 = vmatprep.mubr.bf16.mxu0 0
        %4480 = vmatmul.mubr.bf16.gmra.mrb[0].mxu0 %v4307
        %v4481 = vpop.f32.mrb[0].mxu0
        %v4482 = vadd.f32 %v4389, %v4481
        %v4483 = vpop.f32.mrb[0].mxu0
        %v4484 = vpop.f32.mrb[0].mxu0
        %v4485 = vadd.f32 %v4389, %v4484
        %v4486 = vpop.f32.mrb[0].mxu0
        %4487 = vdwg.mxu0
        %v4488 = vpack.c.bf16 %v4429, %v4426
        %v4489 = vpack.c.bf16 %v4437, %v4434
        %v4490 = vpack.c.bf16 %v4445, %v4442
        %v4491 = vpack.c.bf16 %v4453, %v4450
        %v4492 = vpack.c.bf16 %v4461, %v4458
        %v4493 = vpack.c.bf16 %v4469, %v4466
        %v4494 = vpack.c.bf16 %v4477, %v4474
        %v4495 = vpack.c.bf16 %v4485, %v4482
        %v4496 = vld [vmem:[#allocation4] sm:$0xff]
        %v4497 = vld [vmem:[#allocation4 + $0x8] sm:$0xff]
        %v4498 = vld [vmem:[#allocation4 + $0x20] sm:$0xff]
        %v4499 = vld [vmem:[#allocation4 + $0x28] sm:$0xff]
        %v4500 = vld [vmem:[#allocation4 + $0x40] sm:$0xff]
        %v4501 = vld [vmem:[#allocation4 + $0x48] sm:$0xff]
        %v4502 = vld [vmem:[#allocation4 + $0x60] sm:$0xff]
        %v4503 = vld [vmem:[#allocation4 + $0x68] sm:$0xff]
        %v4504 = vld [vmem:[%s3] sm:$0xf]
        %v4506 = vlaneseq
        %v4507 = vshrl.u32 %v4506, 7
        %v4508 = vsub.s32 0, %v4507
        %v4509 = vrot.slane %v4504, %v4508
        %v4510 = vlaneseq
        %v4511 = vshrl.u32 %v4510, 7
        %v4512 = vsub.s32 1, %v4511
        %v4513 = vrot.slane %v4504, %v4512
        %v4514 = vlaneseq
        %v4515 = vshrl.u32 %v4514, 7
        %v4516 = vsub.s32 2, %v4515
        %v4517 = vrot.slane %v4504, %v4516
        %v4518 = vlaneseq
        %v4519 = vshrl.u32 %v4518, 7
        %v4520 = vsub.s32 3, %v4519
        %v4521 = vrot.slane %v4504, %v4520
        %v4534 = vunpack.c.l.b16 %v4496
        %v4535 = vunpack.c.h.b16 %v4496
        %v4536 = vunpack.c.l.b16 %v4497
        %v4537 = vunpack.c.h.b16 %v4497
        %v4538 = vunpack.c.l.b16 %v4498
        %v4539 = vunpack.c.h.b16 %v4498
        %v4540 = vunpack.c.l.b16 %v4499
        %v4541 = vunpack.c.h.b16 %v4499
        %v4542 = vunpack.c.l.b16 %v4500
        %v4543 = vunpack.c.h.b16 %v4500
        %v4544 = vunpack.c.l.b16 %v4501
        %v4545 = vunpack.c.h.b16 %v4501
        %v4546 = vunpack.c.l.b16 %v4502
        %v4547 = vunpack.c.h.b16 %v4502
        %v4548 = vunpack.c.l.b16 %v4503
        %v4549 = vunpack.c.h.b16 %v4503
        %v4550 = vpack.c.b16 %v4538, %v4534
        %v4551 = vpack.c.b16 %v4539, %v4535
        %v4552 = vpack.c.b16 %v4540, %v4536
        %v4553 = vpack.c.b16 %v4541, %v4537
        %v4554 = vpack.c.b16 %v4546, %v4542
        %v4555 = vpack.c.b16 %v4547, %v4543
        %v4556 = vpack.c.b16 %v4548, %v4544
        %v4557 = vpack.c.b16 %v4549, %v4545
        %v4567 = vsel %vm1619, %v4488, 0
        %v4570 = vsel %vm1619, %v4489, 0
        %v4573 = vsel %vm1619, %v4490, 0
        %v4576 = vsel %vm1619, %v4491, 0
        %v4579 = vsel %vm1619, %v4492, 0
        %v4582 = vsel %vm1619, %v4493, 0
        %v4585 = vsel %vm1619, %v4494, 0
        %v4588 = vsel %vm1619, %v4495, 0
        %4590 = vmatprep.subr.bf16.mxu0 %v4551
        %4591 = vmatpush1.bf16.msra.mxu0 %v4550
        %4592 = vmatprep.subr.bf16.mxu0 %v4555
        %4593 = vmatpush1.bf16.msra.mxu0 %v4554
        %4594 = vmatprep.subr.bf16.mxu0 0
        %4595 = vmatpush1.bf16.msra.mxu0 0
        %4596 = vmatprep.subr.bf16.mxu0 0
        %4597 = vmatpush1.bf16.msra.mxu0 0
        %4598 = vmatprep.subr.bf16.mxu0 0
        %4599 = vmatpush1.bf16.msra.mxu0 0
        %4600 = vmatprep.subr.bf16.mxu0 0
        %4601 = vmatpush1.bf16.msra.mxu0 0
        %4602 = vmatprep.subr.bf16.mxu0 0
        %4603 = vmatpush1.bf16.msra.mxu0 0
        %4604 = vmatprep.subr.bf16.mxu0 0
        %4605 = vmatpush1.bf16.msra.mxu0 0
        %4606 = vmatprep.subr.bf16.mxu0 0
        %4607 = vmatpush1.bf16.msra.mxu0 0
        %4608 = vmatprep.subr.bf16.mxu0 0
        %4609 = vmatpush1.bf16.msra.mxu0 0
        %4610 = vmatprep.subr.bf16.mxu0 0
        %4611 = vmatpush1.bf16.msra.mxu0 0
        %4612 = vmatprep.subr.bf16.mxu0 0
        %4613 = vmatpush1.bf16.msra.mxu0 0
        %4614 = vmatprep.subr.bf16.mxu0 0
        %4615 = vmatpush1.bf16.msra.mxu0 0
        %4616 = vmatprep.subr.bf16.mxu0 0
        %4617 = vmatpush1.bf16.msra.mxu0 0
        %4618 = vmatprep.subr.bf16.mxu0 0
        %4619 = vmatpush1.bf16.msra.mxu0 0
        %4620 = vmatprep.subr.bf16.mxu0 0
        %4621 = vmatpush1.bf16.msra.mxu0 0
        %4622 = vmatprep.mubr.bf16.mxu0 0
        %4623 = vmatmul.mubr.bf16.gmra.mrb[0].mxu0 %v4567
        %v4624 = vpop.f32.mrb[0].mxu0
        %v4625 = vadd.f32 %v4509, %v4624
        %v4626 = vpop.f32.mrb[0].mxu0
        %v4627 = vadd.f32 %v4513, %v4626
        %v4628 = vpop.f32.mrb[0].mxu0
        %v4629 = vadd.f32 %v4509, %v4628
        %v4630 = vpop.f32.mrb[0].mxu0
        %v4631 = vadd.f32 %v4513, %v4630
        %4632 = vmatprep.mubr.bf16.mxu0 0
        %4633 = vmatmul.mubr.bf16.gmra.mrb[0].mxu0 %v4570
        %v4634 = vpop.f32.mrb[0].mxu0
        %v4635 = vadd.f32 %v4509, %v4634
        %v4636 = vpop.f32.mrb[0].mxu0
        %v4637 = vadd.f32 %v4513, %v4636
        %v4638 = vpop.f32.mrb[0].mxu0
        %v4639 = vadd.f32 %v4509, %v4638
        %v4640 = vpop.f32.mrb[0].mxu0
        %v4641 = vadd.f32 %v4513, %v4640
        %4642 = vmatprep.mubr.bf16.mxu0 0
        %4643 = vmatmul.mubr.bf16.gmra.mrb[0].mxu0 %v4573
        %v4644 = vpop.f32.mrb[0].mxu0
        %v4645 = vadd.f32 %v4509, %v4644
        %v4646 = vpop.f32.mrb[0].mxu0
        %v4647 = vadd.f32 %v4513, %v4646
        %v4648 = vpop.f32.mrb[0].mxu0
        %v4649 = vadd.f32 %v4509, %v4648
        %v4650 = vpop.f32.mrb[0].mxu0
        %v4651 = vadd.f32 %v4513, %v4650
        %4652 = vmatprep.mubr.bf16.mxu0 0
        %4653 = vmatmul.mubr.bf16.gmra.mrb[0].mxu0 %v4576
        %v4654 = vpop.f32.mrb[0].mxu0
        %v4655 = vadd.f32 %v4509, %v4654
        %v4656 = vpop.f32.mrb[0].mxu0
        %v4657 = vadd.f32 %v4513, %v4656
        %v4658 = vpop.f32.mrb[0].mxu0
        %v4659 = vadd.f32 %v4509, %v4658
        %v4660 = vpop.f32.mrb[0].mxu0
        %v4661 = vadd.f32 %v4513, %v4660
        %4662 = vmatprep.mubr.bf16.mxu0 0
        %4663 = vmatmul.mubr.bf16.gmra.mrb[0].mxu0 %v4579
        %v4664 = vpop.f32.mrb[0].mxu0
        %v4665 = vadd.f32 %v4509, %v4664
        %v4666 = vpop.f32.mrb[0].mxu0
        %v4667 = vadd.f32 %v4513, %v4666
        %v4668 = vpop.f32.mrb[0].mxu0
        %v4669 = vadd.f32 %v4509, %v4668
        %v4670 = vpop.f32.mrb[0].mxu0
        %v4671 = vadd.f32 %v4513, %v4670
        %4672 = vmatprep.mubr.bf16.mxu0 0
        %4673 = vmatmul.mubr.bf16.gmra.mrb[0].mxu0 %v4582
        %v4674 = vpop.f32.mrb[0].mxu0
        %v4675 = vadd.f32 %v4509, %v4674
        %v4676 = vpop.f32.mrb[0].mxu0
        %v4677 = vadd.f32 %v4513, %v4676
        %v4678 = vpop.f32.mrb[0].mxu0
        %v4679 = vadd.f32 %v4509, %v4678
        %v4680 = vpop.f32.mrb[0].mxu0
        %v4681 = vadd.f32 %v4513, %v4680
        %4682 = vmatprep.mubr.bf16.mxu0 0
        %4683 = vmatmul.mubr.bf16.gmra.mrb[0].mxu0 %v4585
        %v4684 = vpop.f32.mrb[0].mxu0
        %v4685 = vadd.f32 %v4509, %v4684
        %v4686 = vpop.f32.mrb[0].mxu0
        %v4687 = vadd.f32 %v4513, %v4686
        %v4688 = vpop.f32.mrb[0].mxu0
        %v4689 = vadd.f32 %v4509, %v4688
        %v4690 = vpop.f32.mrb[0].mxu0
        %v4691 = vadd.f32 %v4513, %v4690
        %4692 = vmatprep.mubr.bf16.mxu0 0
        %4693 = vmatmul.mubr.bf16.gmra.mrb[0].mxu0 %v4588
        %v4694 = vpop.f32.mrb[0].mxu0
        %v4695 = vadd.f32 %v4509, %v4694
        %v4696 = vpop.f32.mrb[0].mxu0
        %v4697 = vadd.f32 %v4513, %v4696
        %v4698 = vpop.f32.mrb[0].mxu0
        %v4699 = vadd.f32 %v4509, %v4698
        %v4700 = vpop.f32.mrb[0].mxu0
        %v4701 = vadd.f32 %v4513, %v4700
        %4702 = vdwg.mxu0
        %4703 = vmatprep.subr.bf16.mxu0 %v4553
        %4704 = vmatpush1.bf16.msra.mxu0 %v4552
        %4705 = vmatprep.subr.bf16.mxu0 %v4557
        %4706 = vmatpush1.bf16.msra.mxu0 %v4556
        %4707 = vmatprep.subr.bf16.mxu0 0
        %4708 = vmatpush1.bf16.msra.mxu0 0
        %4709 = vmatprep.subr.bf16.mxu0 0
        %4710 = vmatpush1.bf16.msra.mxu0 0
        %4711 = vmatprep.subr.bf16.mxu0 0
        %4712 = vmatpush1.bf16.msra.mxu0 0
        %4713 = vmatprep.subr.bf16.mxu0 0
        %4714 = vmatpush1.bf16.msra.mxu0 0
        %4715 = vmatprep.subr.bf16.mxu0 0
        %4716 = vmatpush1.bf16.msra.mxu0 0
        %4717 = vmatprep.subr.bf16.mxu0 0
        %4718 = vmatpush1.bf16.msra.mxu0 0
        %4719 = vmatprep.subr.bf16.mxu0 0
        %4720 = vmatpush1.bf16.msra.mxu0 0
        %4721 = vmatprep.subr.bf16.mxu0 0
        %4722 = vmatpush1.bf16.msra.mxu0 0
        %4723 = vmatprep.subr.bf16.mxu0 0
        %4724 = vmatpush1.bf16.msra.mxu0 0
        %4725 = vmatprep.subr.bf16.mxu0 0
        %4726 = vmatpush1.bf16.msra.mxu0 0
        %4727 = vmatprep.subr.bf16.mxu0 0
        %4728 = vmatpush1.bf16.msra.mxu0 0
        %4729 = vmatprep.subr.bf16.mxu0 0
        %4730 = vmatpush1.bf16.msra.mxu0 0
        %4731 = vmatprep.subr.bf16.mxu0 0
        %4732 = vmatpush1.bf16.msra.mxu0 0
        %4733 = vmatprep.subr.bf16.mxu0 0
        %4734 = vmatpush1.bf16.msra.mxu0 0
        %4735 = vmatprep.mubr.bf16.mxu0 0
        %4736 = vmatmul.mubr.bf16.gmra.mrb[0].mxu0 %v4567
        %v4737 = vpop.f32.mrb[0].mxu0
        %v4738 = vadd.f32 %v4517, %v4737
        %v4739 = vpop.f32.mrb[0].mxu0
        %v4740 = vadd.f32 %v4521, %v4739
        %v4741 = vpop.f32.mrb[0].mxu0
        %v4742 = vadd.f32 %v4517, %v4741
        %v4743 = vpop.f32.mrb[0].mxu0
        %v4744 = vadd.f32 %v4521, %v4743
        %4745 = vmatprep.mubr.bf16.mxu0 0
        %4746 = vmatmul.mubr.bf16.gmra.mrb[0].mxu0 %v4570
        %v4747 = vpop.f32.mrb[0].mxu0
        %v4748 = vadd.f32 %v4517, %v4747
        %v4749 = vpop.f32.mrb[0].mxu0
        %v4750 = vadd.f32 %v4521, %v4749
        %v4751 = vpop.f32.mrb[0].mxu0
        %v4752 = vadd.f32 %v4517, %v4751
        %v4753 = vpop.f32.mrb[0].mxu0
        %v4754 = vadd.f32 %v4521, %v4753
        %4755 = vmatprep.mubr.bf16.mxu0 0
        %4756 = vmatmul.mubr.bf16.gmra.mrb[0].mxu0 %v4573
        %v4757 = vpop.f32.mrb[0].mxu0
        %v4758 = vadd.f32 %v4517, %v4757
        %v4759 = vpop.f32.mrb[0].mxu0
        %v4760 = vadd.f32 %v4521, %v4759
        %v4761 = vpop.f32.mrb[0].mxu0
        %v4762 = vadd.f32 %v4517, %v4761
        %v4763 = vpop.f32.mrb[0].mxu0
        %v4764 = vadd.f32 %v4521, %v4763
        %4765 = vmatprep.mubr.bf16.mxu0 0
        %4766 = vmatmul.mubr.bf16.gmra.mrb[0].mxu0 %v4576
        %v4767 = vpop.f32.mrb[0].mxu0
        %v4768 = vadd.f32 %v4517, %v4767
        %v4769 = vpop.f32.mrb[0].mxu0
        %v4770 = vadd.f32 %v4521, %v4769
        %v4771 = vpop.f32.mrb[0].mxu0
        %v4772 = vadd.f32 %v4517, %v4771
        %v4773 = vpop.f32.mrb[0].mxu0
        %v4774 = vadd.f32 %v4521, %v4773
        %4775 = vmatprep.mubr.bf16.mxu0 0
        %4776 = vmatmul.mubr.bf16.gmra.mrb[0].mxu0 %v4579
        %v4777 = vpop.f32.mrb[0].mxu0
        %v4778 = vadd.f32 %v4517, %v4777
        %v4779 = vpop.f32.mrb[0].mxu0
        %v4780 = vadd.f32 %v4521, %v4779
        %v4781 = vpop.f32.mrb[0].mxu0
        %v4782 = vadd.f32 %v4517, %v4781
        %v4783 = vpop.f32.mrb[0].mxu0
        %v4784 = vadd.f32 %v4521, %v4783
        %4785 = vmatprep.mubr.bf16.mxu0 0
        %4786 = vmatmul.mubr.bf16.gmra.mrb[0].mxu0 %v4582
        %v4787 = vpop.f32.mrb[0].mxu0
        %v4788 = vadd.f32 %v4517, %v4787
        %v4789 = vpop.f32.mrb[0].mxu0
        %v4790 = vadd.f32 %v4521, %v4789
        %v4791 = vpop.f32.mrb[0].mxu0
        %v4792 = vadd.f32 %v4517, %v4791
        %v4793 = vpop.f32.mrb[0].mxu0
        %v4794 = vadd.f32 %v4521, %v4793
        %4795 = vmatprep.mubr.bf16.mxu0 0
        %4796 = vmatmul.mubr.bf16.gmra.mrb[0].mxu0 %v4585
        %v4797 = vpop.f32.mrb[0].mxu0
        %v4798 = vadd.f32 %v4517, %v4797
        %v4799 = vpop.f32.mrb[0].mxu0
        %v4800 = vadd.f32 %v4521, %v4799
        %v4801 = vpop.f32.mrb[0].mxu0
        %v4802 = vadd.f32 %v4517, %v4801
        %v4803 = vpop.f32.mrb[0].mxu0
        %v4804 = vadd.f32 %v4521, %v4803
        %4805 = vmatprep.mubr.bf16.mxu0 0
        %4806 = vmatmul.mubr.bf16.gmra.mrb[0].mxu0 %v4588
        %v4807 = vpop.f32.mrb[0].mxu0
        %v4808 = vadd.f32 %v4517, %v4807
        %v4809 = vpop.f32.mrb[0].mxu0
        %v4810 = vadd.f32 %v4521, %v4809
        %v4811 = vpop.f32.mrb[0].mxu0
        %v4812 = vadd.f32 %v4517, %v4811
        %v4813 = vpop.f32.mrb[0].mxu0
        %v4814 = vadd.f32 %v4521, %v4813
        %4815 = vdwg.mxu0
        %v4816 = vmul.f32 %v4625, 0.5
        %v4817 = vmul.f32 %v4627, 0.5
        %v4818 = vmul.f32 %v4738, 0.5
        %v4819 = vmul.f32 %v4740, 0.5
        %v4820 = vmul.f32 %v4629, 0.5
        %v4821 = vmul.f32 %v4631, 0.5
        %v4822 = vmul.f32 %v4742, 0.5
        %v4823 = vmul.f32 %v4744, 0.5
        %v4824 = vmul.f32 %v4635, 0.5
        %v4825 = vmul.f32 %v4637, 0.5
        %v4826 = vmul.f32 %v4748, 0.5
        %v4827 = vmul.f32 %v4750, 0.5
        %v4828 = vmul.f32 %v4639, 0.5
        %v4829 = vmul.f32 %v4641, 0.5
        %v4830 = vmul.f32 %v4752, 0.5
        %v4831 = vmul.f32 %v4754, 0.5
        %v4832 = vmul.f32 %v4645, 0.5
        %v4833 = vmul.f32 %v4647, 0.5
        %v4834 = vmul.f32 %v4758, 0.5
        %v4835 = vmul.f32 %v4760, 0.5
        %v4836 = vmul.f32 %v4649, 0.5
        %v4837 = vmul.f32 %v4651, 0.5
        %v4838 = vmul.f32 %v4762, 0.5
        %v4839 = vmul.f32 %v4764, 0.5
        %v4840 = vmul.f32 %v4655, 0.5
        %v4841 = vmul.f32 %v4657, 0.5
        %v4842 = vmul.f32 %v4768, 0.5
        %v4843 = vmul.f32 %v4770, 0.5
        %v4844 = vmul.f32 %v4659, 0.5
        %v4845 = vmul.f32 %v4661, 0.5
        %v4846 = vmul.f32 %v4772, 0.5
        %v4847 = vmul.f32 %v4774, 0.5
        %v4848 = vmul.f32 %v4665, 0.5
        %v4849 = vmul.f32 %v4667, 0.5
        %v4850 = vmul.f32 %v4778, 0.5
        %v4851 = vmul.f32 %v4780, 0.5
        %v4852 = vmul.f32 %v4669, 0.5
        %v4853 = vmul.f32 %v4671, 0.5
        %v4854 = vmul.f32 %v4782, 0.5
        %v4855 = vmul.f32 %v4784, 0.5
        %v4856 = vmul.f32 %v4675, 0.5
        %v4857 = vmul.f32 %v4677, 0.5
        %v4858 = vmul.f32 %v4788, 0.5
        %v4859 = vmul.f32 %v4790, 0.5
        %v4860 = vmul.f32 %v4679, 0.5
        %v4861 = vmul.f32 %v4681, 0.5
        %v4862 = vmul.f32 %v4792, 0.5
        %v4863 = vmul.f32 %v4794, 0.5
        %v4864 = vmul.f32 %v4685, 0.5
        %v4865 = vmul.f32 %v4687, 0.5
        %v4866 = vmul.f32 %v4798, 0.5
        %v4867 = vmul.f32 %v4800, 0.5
        %v4868 = vmul.f32 %v4689, 0.5
        %v4869 = vmul.f32 %v4691, 0.5
        %v4870 = vmul.f32 %v4802, 0.5
        %v4871 = vmul.f32 %v4804, 0.5
        %v4872 = vmul.f32 %v4695, 0.5
        %v4873 = vmul.f32 %v4697, 0.5
        %v4874 = vmul.f32 %v4808, 0.5
        %v4875 = vmul.f32 %v4810, 0.5
        %v4876 = vmul.f32 %v4699, 0.5
        %v4877 = vmul.f32 %v4701, 0.5
        %v4878 = vmul.f32 %v4812, 0.5
        %v4879 = vmul.f32 %v4814, 0.5
        %v4880 = vmul.f32 %v4625, 0.7978846
        %v4881 = vmul.f32 %v4627, 0.7978846
        %v4882 = vmul.f32 %v4738, 0.7978846
        %v4883 = vmul.f32 %v4740, 0.7978846
        %v4884 = vmul.f32 %v4629, 0.7978846
        %v4885 = vmul.f32 %v4631, 0.7978846
        %v4886 = vmul.f32 %v4742, 0.7978846
        %v4887 = vmul.f32 %v4744, 0.7978846
        %v4888 = vmul.f32 %v4635, 0.7978846
        %v4889 = vmul.f32 %v4637, 0.7978846
        %v4890 = vmul.f32 %v4748, 0.7978846
        %v4891 = vmul.f32 %v4750, 0.7978846
        %v4892 = vmul.f32 %v4639, 0.7978846
        %v4893 = vmul.f32 %v4641, 0.7978846
        %v4894 = vmul.f32 %v4752, 0.7978846
        %v4895 = vmul.f32 %v4754, 0.7978846
        %v4896 = vmul.f32 %v4645, 0.7978846
        %v4897 = vmul.f32 %v4647, 0.7978846
        %v4898 = vmul.f32 %v4758, 0.7978846
        %v4899 = vmul.f32 %v4760, 0.7978846
        %v4900 = vmul.f32 %v4649, 0.7978846
        %v4901 = vmul.f32 %v4651, 0.7978846
        %v4902 = vmul.f32 %v4762, 0.7978846
        %v4903 = vmul.f32 %v4764, 0.7978846
        %v4904 = vmul.f32 %v4655, 0.7978846
        %v4905 = vmul.f32 %v4657, 0.7978846
        %v4906 = vmul.f32 %v4768, 0.7978846
        %v4907 = vmul.f32 %v4770, 0.7978846
        %v4908 = vmul.f32 %v4659, 0.7978846
        %v4909 = vmul.f32 %v4661, 0.7978846
        %v4910 = vmul.f32 %v4772, 0.7978846
        %v4911 = vmul.f32 %v4774, 0.7978846
        %v4912 = vmul.f32 %v4665, 0.7978846
        %v4913 = vmul.f32 %v4667, 0.7978846
        %v4914 = vmul.f32 %v4778, 0.7978846
        %v4915 = vmul.f32 %v4780, 0.7978846
        %v4916 = vmul.f32 %v4669, 0.7978846
        %v4917 = vmul.f32 %v4671, 0.7978846
        %v4918 = vmul.f32 %v4782, 0.7978846
        %v4919 = vmul.f32 %v4784, 0.7978846
        %v4920 = vmul.f32 %v4675, 0.7978846
        %v4921 = vmul.f32 %v4677, 0.7978846
        %v4922 = vmul.f32 %v4788, 0.7978846
        %v4923 = vmul.f32 %v4790, 0.7978846
        %v4924 = vmul.f32 %v4679, 0.7978846
        %v4925 = vmul.f32 %v4681, 0.7978846
        %v4926 = vmul.f32 %v4792, 0.7978846
        %v4927 = vmul.f32 %v4794, 0.7978846
        %v4928 = vmul.f32 %v4685, 0.7978846
        %v4929 = vmul.f32 %v4687, 0.7978846
        %v4930 = vmul.f32 %v4798, 0.7978846
        %v4931 = vmul.f32 %v4800, 0.7978846
        %v4932 = vmul.f32 %v4689, 0.7978846
        %v4933 = vmul.f32 %v4691, 0.7978846
        %v4934 = vmul.f32 %v4802, 0.7978846
        %v4935 = vmul.f32 %v4804, 0.7978846
        %v4936 = vmul.f32 %v4695, 0.7978846
        %v4937 = vmul.f32 %v4697, 0.7978846
        %v4938 = vmul.f32 %v4808, 0.7978846
        %v4939 = vmul.f32 %v4810, 0.7978846
        %v4940 = vmul.f32 %v4699, 0.7978846
        %v4941 = vmul.f32 %v4701, 0.7978846
        %v4942 = vmul.f32 %v4812, 0.7978846
        %v4943 = vmul.f32 %v4814, 0.7978846
        %v4944 = vmul.f32 %v4625, 0.044715
        %v4945 = vmul.f32 %v4627, 0.044715
        %v4946 = vmul.f32 %v4738, 0.044715
        %v4947 = vmul.f32 %v4740, 0.044715
        %v4948 = vmul.f32 %v4629, 0.044715
        %v4949 = vmul.f32 %v4631, 0.044715
        %v4950 = vmul.f32 %v4742, 0.044715
        %v4951 = vmul.f32 %v4744, 0.044715
        %v4952 = vmul.f32 %v4635, 0.044715
        %v4953 = vmul.f32 %v4637, 0.044715
        %v4954 = vmul.f32 %v4748, 0.044715
        %v4955 = vmul.f32 %v4750, 0.044715
        %v4956 = vmul.f32 %v4639, 0.044715
        %v4957 = vmul.f32 %v4641, 0.044715
        %v4958 = vmul.f32 %v4752, 0.044715
        %v4959 = vmul.f32 %v4754, 0.044715
        %v4960 = vmul.f32 %v4645, 0.044715
        %v4961 = vmul.f32 %v4647, 0.044715
        %v4962 = vmul.f32 %v4758, 0.044715
        %v4963 = vmul.f32 %v4760, 0.044715
        %v4964 = vmul.f32 %v4649, 0.044715
        %v4965 = vmul.f32 %v4651, 0.044715
        %v4966 = vmul.f32 %v4762, 0.044715
        %v4967 = vmul.f32 %v4764, 0.044715
        %v4968 = vmul.f32 %v4655, 0.044715
        %v4969 = vmul.f32 %v4657, 0.044715
        %v4970 = vmul.f32 %v4768, 0.044715
        %v4971 = vmul.f32 %v4770, 0.044715
        %v4972 = vmul.f32 %v4659, 0.044715
        %v4973 = vmul.f32 %v4661, 0.044715
        %v4974 = vmul.f32 %v4772, 0.044715
        %v4975 = vmul.f32 %v4774, 0.044715
        %v4976 = vmul.f32 %v4665, 0.044715
        %v4977 = vmul.f32 %v4667, 0.044715
        %v4978 = vmul.f32 %v4778, 0.044715
        %v4979 = vmul.f32 %v4780, 0.044715
        %v4980 = vmul.f32 %v4669, 0.044715
        %v4981 = vmul.f32 %v4671, 0.044715
        %v4982 = vmul.f32 %v4782, 0.044715
        %v4983 = vmul.f32 %v4784, 0.044715
        %v4984 = vmul.f32 %v4675, 0.044715
        %v4985 = vmul.f32 %v4677, 0.044715
        %v4986 = vmul.f32 %v4788, 0.044715
        %v4987 = vmul.f32 %v4790, 0.044715
        %v4988 = vmul.f32 %v4679, 0.044715
        %v4989 = vmul.f32 %v4681, 0.044715
        %v4990 = vmul.f32 %v4792, 0.044715
        %v4991 = vmul.f32 %v4794, 0.044715
        %v4992 = vmul.f32 %v4685, 0.044715
        %v4993 = vmul.f32 %v4687, 0.044715
        %v4994 = vmul.f32 %v4798, 0.044715
        %v4995 = vmul.f32 %v4800, 0.044715
        %v4996 = vmul.f32 %v4689, 0.044715
        %v4997 = vmul.f32 %v4691, 0.044715
        %v4998 = vmul.f32 %v4802, 0.044715
        %v4999 = vmul.f32 %v4804, 0.044715
        %v5000 = vmul.f32 %v4695, 0.044715
        %v5001 = vmul.f32 %v4697, 0.044715
        %v5002 = vmul.f32 %v4808, 0.044715
        %v5003 = vmul.f32 %v4810, 0.044715
        %v5004 = vmul.f32 %v4699, 0.044715
        %v5005 = vmul.f32 %v4701, 0.044715
        %v5006 = vmul.f32 %v4812, 0.044715
        %v5007 = vmul.f32 %v4814, 0.044715
        %v5008 = vmul.f32 %v4944, %v4625
        %v5009 = vmul.f32 %v4945, %v4627
        %v5010 = vmul.f32 %v4946, %v4738
        %v5011 = vmul.f32 %v4947, %v4740
        %v5012 = vmul.f32 %v4948, %v4629
        %v5013 = vmul.f32 %v4949, %v4631
        %v5014 = vmul.f32 %v4950, %v4742
        %v5015 = vmul.f32 %v4951, %v4744
        %v5016 = vmul.f32 %v4952, %v4635
        %v5017 = vmul.f32 %v4953, %v4637
        %v5018 = vmul.f32 %v4954, %v4748
        %v5019 = vmul.f32 %v4955, %v4750
        %v5020 = vmul.f32 %v4956, %v4639
        %v5021 = vmul.f32 %v4957, %v4641
        %v5022 = vmul.f32 %v4958, %v4752
        %v5023 = vmul.f32 %v4959, %v4754
        %v5024 = vmul.f32 %v4960, %v4645
        %v5025 = vmul.f32 %v4961, %v4647
        %v5026 = vmul.f32 %v4962, %v4758
        %v5027 = vmul.f32 %v4963, %v4760
        %v5028 = vmul.f32 %v4964, %v4649
        %v5029 = vmul.f32 %v4965, %v4651
        %v5030 = vmul.f32 %v4966, %v4762
        %v5031 = vmul.f32 %v4967, %v4764
        %v5032 = vmul.f32 %v4968, %v4655
        %v5033 = vmul.f32 %v4969, %v4657
        %v5034 = vmul.f32 %v4970, %v4768
        %v5035 = vmul.f32 %v4971, %v4770
        %v5036 = vmul.f32 %v4972, %v4659
        %v5037 = vmul.f32 %v4973, %v4661
        %v5038 = vmul.f32 %v4974, %v4772
        %v5039 = vmul.f32 %v4975, %v4774
        %v5040 = vmul.f32 %v4976, %v4665
        %v5041 = vmul.f32 %v4977, %v4667
        %v5042 = vmul.f32 %v4978, %v4778
        %v5043 = vmul.f32 %v4979, %v4780
        %v5044 = vmul.f32 %v4980, %v4669
        %v5045 = vmul.f32 %v4981, %v4671
        %v5046 = vmul.f32 %v4982, %v4782
        %v5047 = vmul.f32 %v4983, %v4784
        %v5048 = vmul.f32 %v4984, %v4675
        %v5049 = vmul.f32 %v4985, %v4677
        %v5050 = vmul.f32 %v4986, %v4788
        %v5051 = vmul.f32 %v4987, %v4790
        %v5052 = vmul.f32 %v4988, %v4679
        %v5053 = vmul.f32 %v4989, %v4681
        %v5054 = vmul.f32 %v4990, %v4792
        %v5055 = vmul.f32 %v4991, %v4794
        %v5056 = vmul.f32 %v4992, %v4685
        %v5057 = vmul.f32 %v4993, %v4687
        %v5058 = vmul.f32 %v4994, %v4798
        %v5059 = vmul.f32 %v4995, %v4800
        %v5060 = vmul.f32 %v4996, %v4689
        %v5061 = vmul.f32 %v4997, %v4691
        %v5062 = vmul.f32 %v4998, %v4802
        %v5063 = vmul.f32 %v4999, %v4804
        %v5064 = vmul.f32 %v5000, %v4695
        %v5065 = vmul.f32 %v5001, %v4697
        %v5066 = vmul.f32 %v5002, %v4808
        %v5067 = vmul.f32 %v5003, %v4810
        %v5068 = vmul.f32 %v5004, %v4699
        %v5069 = vmul.f32 %v5005, %v4701
        %v5070 = vmul.f32 %v5006, %v4812
        %v5071 = vmul.f32 %v5007, %v4814
        %v5072 = vadd.f32 %v5008, 1.0
        %v5073 = vadd.f32 %v5009, 1.0
        %v5074 = vadd.f32 %v5010, 1.0
        %v5075 = vadd.f32 %v5011, 1.0
        %v5076 = vadd.f32 %v5012, 1.0
        %v5077 = vadd.f32 %v5013, 1.0
        %v5078 = vadd.f32 %v5014, 1.0
        %v5079 = vadd.f32 %v5015, 1.0
        %v5080 = vadd.f32 %v5016, 1.0
        %v5081 = vadd.f32 %v5017, 1.0
        %v5082 = vadd.f32 %v5018, 1.0
        %v5083 = vadd.f32 %v5019, 1.0
        %v5084 = vadd.f32 %v5020, 1.0
        %v5085 = vadd.f32 %v5021, 1.0
        %v5086 = vadd.f32 %v5022, 1.0
        %v5087 = vadd.f32 %v5023, 1.0
        %v5088 = vadd.f32 %v5024, 1.0
        %v5089 = vadd.f32 %v5025, 1.0
        %v5090 = vadd.f32 %v5026, 1.0
        %v5091 = vadd.f32 %v5027, 1.0
        %v5092 = vadd.f32 %v5028, 1.0
        %v5093 = vadd.f32 %v5029, 1.0
        %v5094 = vadd.f32 %v5030, 1.0
        %v5095 = vadd.f32 %v5031, 1.0
        %v5096 = vadd.f32 %v5032, 1.0
        %v5097 = vadd.f32 %v5033, 1.0
        %v5098 = vadd.f32 %v5034, 1.0
        %v5099 = vadd.f32 %v5035, 1.0
        %v5100 = vadd.f32 %v5036, 1.0
        %v5101 = vadd.f32 %v5037, 1.0
        %v5102 = vadd.f32 %v5038, 1.0
        %v5103 = vadd.f32 %v5039, 1.0
        %v5104 = vadd.f32 %v5040, 1.0
        %v5105 = vadd.f32 %v5041, 1.0
        %v5106 = vadd.f32 %v5042, 1.0
        %v5107 = vadd.f32 %v5043, 1.0
        %v5108 = vadd.f32 %v5044, 1.0
        %v5109 = vadd.f32 %v5045, 1.0
        %v5110 = vadd.f32 %v5046, 1.0
        %v5111 = vadd.f32 %v5047, 1.0
        %v5112 = vadd.f32 %v5048, 1.0
        %v5113 = vadd.f32 %v5049, 1.0
        %v5114 = vadd.f32 %v5050, 1.0
        %v5115 = vadd.f32 %v5051, 1.0
        %v5116 = vadd.f32 %v5052, 1.0
        %v5117 = vadd.f32 %v5053, 1.0
        %v5118 = vadd.f32 %v5054, 1.0
        %v5119 = vadd.f32 %v5055, 1.0
        %v5120 = vadd.f32 %v5056, 1.0
        %v5121 = vadd.f32 %v5057, 1.0
        %v5122 = vadd.f32 %v5058, 1.0
        %v5123 = vadd.f32 %v5059, 1.0
        %v5124 = vadd.f32 %v5060, 1.0
        %v5125 = vadd.f32 %v5061, 1.0
        %v5126 = vadd.f32 %v5062, 1.0
        %v5127 = vadd.f32 %v5063, 1.0
        %v5128 = vadd.f32 %v5064, 1.0
        %v5129 = vadd.f32 %v5065, 1.0
        %v5130 = vadd.f32 %v5066, 1.0
        %v5131 = vadd.f32 %v5067, 1.0
        %v5132 = vadd.f32 %v5068, 1.0
        %v5133 = vadd.f32 %v5069, 1.0
        %v5134 = vadd.f32 %v5070, 1.0
        %v5135 = vadd.f32 %v5071, 1.0
        %v5136 = vmul.f32 %v4880, %v5072
        %v5137 = vmul.f32 %v4881, %v5073
        %v5138 = vmul.f32 %v4882, %v5074
        %v5139 = vmul.f32 %v4883, %v5075
        %v5140 = vmul.f32 %v4884, %v5076
        %v5141 = vmul.f32 %v4885, %v5077
        %v5142 = vmul.f32 %v4886, %v5078
        %v5143 = vmul.f32 %v4887, %v5079
        %v5144 = vmul.f32 %v4888, %v5080
        %v5145 = vmul.f32 %v4889, %v5081
        %v5146 = vmul.f32 %v4890, %v5082
        %v5147 = vmul.f32 %v4891, %v5083
        %v5148 = vmul.f32 %v4892, %v5084
        %v5149 = vmul.f32 %v4893, %v5085
        %v5150 = vmul.f32 %v4894, %v5086
        %v5151 = vmul.f32 %v4895, %v5087
        %v5152 = vmul.f32 %v4896, %v5088
        %v5153 = vmul.f32 %v4897, %v5089
        %v5154 = vmul.f32 %v4898, %v5090
        %v5155 = vmul.f32 %v4899, %v5091
        %v5156 = vmul.f32 %v4900, %v5092
        %v5157 = vmul.f32 %v4901, %v5093
        %v5158 = vmul.f32 %v4902, %v5094
        %v5159 = vmul.f32 %v4903, %v5095
        %v5160 = vmul.f32 %v4904, %v5096
        %v5161 = vmul.f32 %v4905, %v5097
        %v5162 = vmul.f32 %v4906, %v5098
        %v5163 = vmul.f32 %v4907, %v5099
        %v5164 = vmul.f32 %v4908, %v5100
        %v5165 = vmul.f32 %v4909, %v5101
        %v5166 = vmul.f32 %v4910, %v5102
        %v5167 = vmul.f32 %v4911, %v5103
        %v5168 = vmul.f32 %v4912, %v5104
        %v5169 = vmul.f32 %v4913, %v5105
        %v5170 = vmul.f32 %v4914, %v5106
        %v5171 = vmul.f32 %v4915, %v5107
        %v5172 = vmul.f32 %v4916, %v5108
        %v5173 = vmul.f32 %v4917, %v5109
        %v5174 = vmul.f32 %v4918, %v5110
        %v5175 = vmul.f32 %v4919, %v5111
        %v5176 = vmul.f32 %v4920, %v5112
        %v5177 = vmul.f32 %v4921, %v5113
        %v5178 = vmul.f32 %v4922, %v5114
        %v5179 = vmul.f32 %v4923, %v5115
        %v5180 = vmul.f32 %v4924, %v5116
        %v5181 = vmul.f32 %v4925, %v5117
        %v5182 = vmul.f32 %v4926, %v5118
        %v5183 = vmul.f32 %v4927, %v5119
        %v5184 = vmul.f32 %v4928, %v5120
        %v5185 = vmul.f32 %v4929, %v5121
        %v5186 = vmul.f32 %v4930, %v5122
        %v5187 = vmul.f32 %v4931, %v5123
        %v5188 = vmul.f32 %v4932, %v5124
        %v5189 = vmul.f32 %v4933, %v5125
        %v5190 = vmul.f32 %v4934, %v5126
        %v5191 = vmul.f32 %v4935, %v5127
        %v5192 = vmul.f32 %v4936, %v5128
        %v5193 = vmul.f32 %v4937, %v5129
        %v5194 = vmul.f32 %v4938, %v5130
        %v5195 = vmul.f32 %v4939, %v5131
        %v5196 = vmul.f32 %v4940, %v5132
        %v5197 = vmul.f32 %v4941, %v5133
        %v5198 = vmul.f32 %v4942, %v5134
        %v5199 = vmul.f32 %v4943, %v5135
        %v5200 = vtanh.pop %v5136
        %v5201 = vtanh.pop %v5137
        %v5202 = vtanh.pop %v5138
        %v5203 = vtanh.pop %v5139
        %v5204 = vtanh.pop %v5140
        %v5205 = vtanh.pop %v5141
        %v5206 = vtanh.pop %v5142
        %v5207 = vtanh.pop %v5143
        %v5208 = vtanh.pop %v5144
        %v5209 = vtanh.pop %v5145
        %v5210 = vtanh.pop %v5146
        %v5211 = vtanh.pop %v5147
        %v5212 = vtanh.pop %v5148
        %v5213 = vtanh.pop %v5149
        %v5214 = vtanh.pop %v5150
        %v5215 = vtanh.pop %v5151
        %v5216 = vtanh.pop %v5152
        %v5217 = vtanh.pop %v5153
        %v5218 = vtanh.pop %v5154
        %v5219 = vtanh.pop %v5155
        %v5220 = vtanh.pop %v5156
        %v5221 = vtanh.pop %v5157
        %v5222 = vtanh.pop %v5158
        %v5223 = vtanh.pop %v5159
        %v5224 = vtanh.pop %v5160
        %v5225 = vtanh.pop %v5161
        %v5226 = vtanh.pop %v5162
        %v5227 = vtanh.pop %v5163
        %v5228 = vtanh.pop %v5164
        %v5229 = vtanh.pop %v5165
        %v5230 = vtanh.pop %v5166
        %v5231 = vtanh.pop %v5167
        %v5232 = vtanh.pop %v5168
        %v5233 = vtanh.pop %v5169
        %v5234 = vtanh.pop %v5170
        %v5235 = vtanh.pop %v5171
        %v5236 = vtanh.pop %v5172
        %v5237 = vtanh.pop %v5173
        %v5238 = vtanh.pop %v5174
        %v5239 = vtanh.pop %v5175
        %v5240 = vtanh.pop %v5176
        %v5241 = vtanh.pop %v5177
        %v5242 = vtanh.pop %v5178
        %v5243 = vtanh.pop %v5179
        %v5244 = vtanh.pop %v5180
        %v5245 = vtanh.pop %v5181
        %v5246 = vtanh.pop %v5182
        %v5247 = vtanh.pop %v5183
        %v5248 = vtanh.pop %v5184
        %v5249 = vtanh.pop %v5185
        %v5250 = vtanh.pop %v5186
        %v5251 = vtanh.pop %v5187
        %v5252 = vtanh.pop %v5188
        %v5253 = vtanh.pop %v5189
        %v5254 = vtanh.pop %v5190
        %v5255 = vtanh.pop %v5191
        %v5256 = vtanh.pop %v5192
        %v5257 = vtanh.pop %v5193
        %v5258 = vtanh.pop %v5194
        %v5259 = vtanh.pop %v5195
        %v5260 = vtanh.pop %v5196
        %v5261 = vtanh.pop %v5197
        %v5262 = vtanh.pop %v5198
        %v5263 = vtanh.pop %v5199
        %v5264 = vadd.f32 %v5200, 1.0
        %v5265 = vadd.f32 %v5201, 1.0
        %v5266 = vadd.f32 %v5202, 1.0
        %v5267 = vadd.f32 %v5203, 1.0
        %v5268 = vadd.f32 %v5204, 1.0
        %v5269 = vadd.f32 %v5205, 1.0
        %v5270 = vadd.f32 %v5206, 1.0
        %v5271 = vadd.f32 %v5207, 1.0
        %v5272 = vadd.f32 %v5208, 1.0
        %v5273 = vadd.f32 %v5209, 1.0
        %v5274 = vadd.f32 %v5210, 1.0
        %v5275 = vadd.f32 %v5211, 1.0
        %v5276 = vadd.f32 %v5212, 1.0
        %v5277 = vadd.f32 %v5213, 1.0
        %v5278 = vadd.f32 %v5214, 1.0
        %v5279 = vadd.f32 %v5215, 1.0
        %v5280 = vadd.f32 %v5216, 1.0
        %v5281 = vadd.f32 %v5217, 1.0
        %v5282 = vadd.f32 %v5218, 1.0
        %v5283 = vadd.f32 %v5219, 1.0
        %v5284 = vadd.f32 %v5220, 1.0
        %v5285 = vadd.f32 %v5221, 1.0
        %v5286 = vadd.f32 %v5222, 1.0
        %v5287 = vadd.f32 %v5223, 1.0
        %v5288 = vadd.f32 %v5224, 1.0
        %v5289 = vadd.f32 %v5225, 1.0
        %v5290 = vadd.f32 %v5226, 1.0
        %v5291 = vadd.f32 %v5227, 1.0
        %v5292 = vadd.f32 %v5228, 1.0
        %v5293 = vadd.f32 %v5229, 1.0
        %v5294 = vadd.f32 %v5230, 1.0
        %v5295 = vadd.f32 %v5231, 1.0
        %v5296 = vadd.f32 %v5232, 1.0
        %v5297 = vadd.f32 %v5233, 1.0
        %v5298 = vadd.f32 %v5234, 1.0
        %v5299 = vadd.f32 %v5235, 1.0
        %v5300 = vadd.f32 %v5236, 1.0
        %v5301 = vadd.f32 %v5237, 1.0
        %v5302 = vadd.f32 %v5238, 1.0
        %v5303 = vadd.f32 %v5239, 1.0
        %v5304 = vadd.f32 %v5240, 1.0
        %v5305 = vadd.f32 %v5241, 1.0
        %v5306 = vadd.f32 %v5242, 1.0
        %v5307 = vadd.f32 %v5243, 1.0
        %v5308 = vadd.f32 %v5244, 1.0
        %v5309 = vadd.f32 %v5245, 1.0
        %v5310 = vadd.f32 %v5246, 1.0
        %v5311 = vadd.f32 %v5247, 1.0
        %v5312 = vadd.f32 %v5248, 1.0
        %v5313 = vadd.f32 %v5249, 1.0
        %v5314 = vadd.f32 %v5250, 1.0
        %v5315 = vadd.f32 %v5251, 1.0
        %v5316 = vadd.f32 %v5252, 1.0
        %v5317 = vadd.f32 %v5253, 1.0
        %v5318 = vadd.f32 %v5254, 1.0
        %v5319 = vadd.f32 %v5255, 1.0
        %v5320 = vadd.f32 %v5256, 1.0
        %v5321 = vadd.f32 %v5257, 1.0
        %v5322 = vadd.f32 %v5258, 1.0
        %v5323 = vadd.f32 %v5259, 1.0
        %v5324 = vadd.f32 %v5260, 1.0
        %v5325 = vadd.f32 %v5261, 1.0
        %v5326 = vadd.f32 %v5262, 1.0
        %v5327 = vadd.f32 %v5263, 1.0
        %v5328 = vmul.f32 %v4816, %v5264
        %v5329 = vmul.f32 %v4817, %v5265
        %v5330 = vmul.f32 %v4818, %v5266
        %v5331 = vmul.f32 %v4819, %v5267
        %v5332 = vmul.f32 %v4820, %v5268
        %v5333 = vmul.f32 %v4821, %v5269
        %v5334 = vmul.f32 %v4822, %v5270
        %v5335 = vmul.f32 %v4823, %v5271
        %v5336 = vmul.f32 %v4824, %v5272
        %v5337 = vmul.f32 %v4825, %v5273
        %v5338 = vmul.f32 %v4826, %v5274
        %v5339 = vmul.f32 %v4827, %v5275
        %v5340 = vmul.f32 %v4828, %v5276
        %v5341 = vmul.f32 %v4829, %v5277
        %v5342 = vmul.f32 %v4830, %v5278
        %v5343 = vmul.f32 %v4831, %v5279
        %v5344 = vmul.f32 %v4832, %v5280
        %v5345 = vmul.f32 %v4833, %v5281
        %v5346 = vmul.f32 %v4834, %v5282
        %v5347 = vmul.f32 %v4835, %v5283
        %v5348 = vmul.f32 %v4836, %v5284
        %v5349 = vmul.f32 %v4837, %v5285
        %v5350 = vmul.f32 %v4838, %v5286
        %v5351 = vmul.f32 %v4839, %v5287
        %v5352 = vmul.f32 %v4840, %v5288
        %v5353 = vmul.f32 %v4841, %v5289
        %v5354 = vmul.f32 %v4842, %v5290
        %v5355 = vmul.f32 %v4843, %v5291
        %v5356 = vmul.f32 %v4844, %v5292
        %v5357 = vmul.f32 %v4845, %v5293
        %v5358 = vmul.f32 %v4846, %v5294
        %v5359 = vmul.f32 %v4847, %v5295
        %v5360 = vmul.f32 %v4848, %v5296
        %v5361 = vmul.f32 %v4849, %v5297
        %v5362 = vmul.f32 %v4850, %v5298
        %v5363 = vmul.f32 %v4851, %v5299
        %v5364 = vmul.f32 %v4852, %v5300
        %v5365 = vmul.f32 %v4853, %v5301
        %v5366 = vmul.f32 %v4854, %v5302
        %v5367 = vmul.f32 %v4855, %v5303
        %v5368 = vmul.f32 %v4856, %v5304
        %v5369 = vmul.f32 %v4857, %v5305
        %v5370 = vmul.f32 %v4858, %v5306
        %v5371 = vmul.f32 %v4859, %v5307
        %v5372 = vmul.f32 %v4860, %v5308
        %v5373 = vmul.f32 %v4861, %v5309
        %v5374 = vmul.f32 %v4862, %v5310
        %v5375 = vmul.f32 %v4863, %v5311
        %v5376 = vmul.f32 %v4864, %v5312
        %v5377 = vmul.f32 %v4865, %v5313
        %v5378 = vmul.f32 %v4866, %v5314
        %v5379 = vmul.f32 %v4867, %v5315
        %v5380 = vmul.f32 %v4868, %v5316
        %v5381 = vmul.f32 %v4869, %v5317
        %v5382 = vmul.f32 %v4870, %v5318
        %v5383 = vmul.f32 %v4871, %v5319
        %v5384 = vmul.f32 %v4872, %v5320
        %v5385 = vmul.f32 %v4873, %v5321
        %v5386 = vmul.f32 %v4874, %v5322
        %v5387 = vmul.f32 %v4875, %v5323
        %v5388 = vmul.f32 %v4876, %v5324
        %v5389 = vmul.f32 %v4877, %v5325
        %v5390 = vmul.f32 %v4878, %v5326
        %v5391 = vmul.f32 %v4879, %v5327
        %v5392 = vpack.c.bf16 %v5332, %v5328
        %v5393 = vpack.c.bf16 %v5333, %v5329
        %v5394 = vpack.c.bf16 %v5334, %v5330
        %v5395 = vpack.c.bf16 %v5335, %v5331
        %v5396 = vpack.c.bf16 %v5340, %v5336
        %v5397 = vpack.c.bf16 %v5341, %v5337
        %v5398 = vpack.c.bf16 %v5342, %v5338
        %v5399 = vpack.c.bf16 %v5343, %v5339
        %v5400 = vpack.c.bf16 %v5348, %v5344
        %v5401 = vpack.c.bf16 %v5349, %v5345
        %v5402 = vpack.c.bf16 %v5350, %v5346
        %v5403 = vpack.c.bf16 %v5351, %v5347
        %v5404 = vpack.c.bf16 %v5356, %v5352
        %v5405 = vpack.c.bf16 %v5357, %v5353
        %v5406 = vpack.c.bf16 %v5358, %v5354
        %v5407 = vpack.c.bf16 %v5359, %v5355
        %v5408 = vpack.c.bf16 %v5364, %v5360
        %v5409 = vpack.c.bf16 %v5365, %v5361
        %v5410 = vpack.c.bf16 %v5366, %v5362
        %v5411 = vpack.c.bf16 %v5367, %v5363
        %v5412 = vpack.c.bf16 %v5372, %v5368
        %v5413 = vpack.c.bf16 %v5373, %v5369
        %v5414 = vpack.c.bf16 %v5374, %v5370
        %v5415 = vpack.c.bf16 %v5375, %v5371
        %v5416 = vpack.c.bf16 %v5380, %v5376
        %v5417 = vpack.c.bf16 %v5381, %v5377
        %v5418 = vpack.c.bf16 %v5382, %v5378
        %v5419 = vpack.c.bf16 %v5383, %v5379
        %v5420 = vpack.c.bf16 %v5388, %v5384
        %v5421 = vpack.c.bf16 %v5389, %v5385
        %v5422 = vpack.c.bf16 %v5390, %v5386
        %v5423 = vpack.c.bf16 %v5391, %v5387
        %v5424 = vld [vmem:[#allocation6] sm:$0xf]
        %v5425 = vld [vmem:[#allocation6 + $0x10] sm:$0xf]
        %v5426 = vld [vmem:[#allocation6 + $0x20] sm:$0xf]
        %v5427 = vld [vmem:[#allocation6 + $0x30] sm:$0xf]
        %v5428 = vld [vmem:[#allocation6 + $0x40] sm:$0xf]
        %v5429 = vld [vmem:[#allocation6 + $0x50] sm:$0xf]
        %v5430 = vld [vmem:[#allocation6 + $0x60] sm:$0xf]
        %v5431 = vld [vmem:[#allocation6 + $0x70] sm:$0xf]
        %v5432 = vld [vmem:[#allocation6 + $0x80] sm:$0xf]
        %v5433 = vld [vmem:[#allocation6 + $0x90] sm:$0xf]
        %v5434 = vld [vmem:[#allocation6 + $0xa0] sm:$0xf]
        %v5435 = vld [vmem:[#allocation6 + $0xb0] sm:$0xf]
        %v5436 = vld [vmem:[#allocation6 + $0xc0] sm:$0xf]
        %v5437 = vld [vmem:[#allocation6 + $0xd0] sm:$0xf]
        %v5438 = vld [vmem:[#allocation6 + $0xe0] sm:$0xf]
        %v5439 = vld [vmem:[#allocation6 + $0xf0] sm:$0xf]
        %v5440 = vld [vmem:[#allocation6 + $0x100] sm:$0xf]
        %v5441 = vld [vmem:[#allocation6 + $0x110] sm:$0xf]
        %v5442 = vld [vmem:[#allocation6 + $0x120] sm:$0xf]
        %v5443 = vld [vmem:[#allocation6 + $0x130] sm:$0xf]
        %v5444 = vld [vmem:[#allocation6 + $0x140] sm:$0xf]
        %v5445 = vld [vmem:[#allocation6 + $0x150] sm:$0xf]
        %v5446 = vld [vmem:[#allocation6 + $0x160] sm:$0xf]
        %v5447 = vld [vmem:[#allocation6 + $0x170] sm:$0xf]
        %v5448 = vld [vmem:[#allocation6 + $0x180] sm:$0xf]
        %v5449 = vld [vmem:[#allocation6 + $0x190] sm:$0xf]
        %v5450 = vld [vmem:[#allocation6 + $0x1a0] sm:$0xf]
        %v5451 = vld [vmem:[#allocation6 + $0x1b0] sm:$0xf]
        %v5452 = vld [vmem:[#allocation6 + $0x1c0] sm:$0xf]
        %v5453 = vld [vmem:[#allocation6 + $0x1d0] sm:$0xf]
        %v5454 = vld [vmem:[#allocation6 + $0x1e0] sm:$0xf]
        %v5455 = vld [vmem:[#allocation6 + $0x1f0] sm:$0xf]
        %v5456 = vld [vmem:[#allocation6 + $0x200] sm:$0xf]
        %v5457 = vld [vmem:[#allocation6 + $0x210] sm:$0xf]
        %v5458 = vld [vmem:[#allocation6 + $0x220] sm:$0xf]
        %v5459 = vld [vmem:[#allocation6 + $0x230] sm:$0xf]
        %v5460 = vld [vmem:[#allocation6 + $0x240] sm:$0xf]
        %v5461 = vld [vmem:[#allocation6 + $0x250] sm:$0xf]
        %v5462 = vld [vmem:[#allocation6 + $0x260] sm:$0xf]
        %v5463 = vld [vmem:[#allocation6 + $0x270] sm:$0xf]
        %v5464 = vld [vmem:[#allocation6 + $0x280] sm:$0xf]
        %v5465 = vld [vmem:[#allocation6 + $0x290] sm:$0xf]
        %v5466 = vld [vmem:[#allocation6 + $0x2a0] sm:$0xf]
        %v5467 = vld [vmem:[#allocation6 + $0x2b0] sm:$0xf]
        %v5468 = vld [vmem:[#allocation6 + $0x2c0] sm:$0xf]
        %v5469 = vld [vmem:[#allocation6 + $0x2d0] sm:$0xf]
        %v5470 = vld [vmem:[#allocation6 + $0x2e0] sm:$0xf]
        %v5471 = vld [vmem:[#allocation6 + $0x2f0] sm:$0xf]
        %v5472 = vld [vmem:[#allocation6 + $0x300] sm:$0xf]
        %v5473 = vld [vmem:[#allocation6 + $0x310] sm:$0xf]
        %v5474 = vld [vmem:[#allocation6 + $0x320] sm:$0xf]
        %v5475 = vld [vmem:[#allocation6 + $0x330] sm:$0xf]
        %v5476 = vld [vmem:[#allocation6 + $0x340] sm:$0xf]
        %v5477 = vld [vmem:[#allocation6 + $0x350] sm:$0xf]
        %v5478 = vld [vmem:[#allocation6 + $0x360] sm:$0xf]
        %v5479 = vld [vmem:[#allocation6 + $0x370] sm:$0xf]
        %v5480 = vld [vmem:[#allocation6 + $0x380] sm:$0xf]
        %v5481 = vld [vmem:[#allocation6 + $0x390] sm:$0xf]
        %v5482 = vld [vmem:[#allocation6 + $0x3a0] sm:$0xf]
        %v5483 = vld [vmem:[#allocation6 + $0x3b0] sm:$0xf]
        %v5484 = vld [vmem:[#allocation6 + $0x3c0] sm:$0xf]
        %v5485 = vld [vmem:[#allocation6 + $0x3d0] sm:$0xf]
        %v5486 = vld [vmem:[#allocation6 + $0x3e0] sm:$0xf]
        %v5487 = vld [vmem:[#allocation6 + $0x3f0] sm:$0xf]
        %v5488 = vld [vmem:[%s3 + $0x9] sm:$0x1]
        %v5490 = vlaneseq
        %v5491 = vshrl.u32 %v5490, 7
        %v5492 = vsub.s32 0, %v5491
        %v5493 = vrot.slane %v5488, %v5492
        %v5559 = vunpack.c.l.b16 %v5424
        %v5560 = vunpack.c.l.b16 %v5425
        %v5561 = vunpack.c.l.b16 %v5426
        %v5562 = vunpack.c.l.b16 %v5427
        %v5563 = vunpack.c.l.b16 %v5428
        %v5564 = vunpack.c.l.b16 %v5429
        %v5565 = vunpack.c.l.b16 %v5430
        %v5566 = vunpack.c.l.b16 %v5431
        %v5567 = vunpack.c.l.b16 %v5432
        %v5568 = vunpack.c.l.b16 %v5433
        %v5569 = vunpack.c.l.b16 %v5434
        %v5570 = vunpack.c.l.b16 %v5435
        %v5571 = vunpack.c.l.b16 %v5436
        %v5572 = vunpack.c.l.b16 %v5437
        %v5573 = vunpack.c.l.b16 %v5438
        %v5574 = vunpack.c.l.b16 %v5439
        %v5575 = vunpack.c.l.b16 %v5440
        %v5576 = vunpack.c.l.b16 %v5441
        %v5577 = vunpack.c.l.b16 %v5442
        %v5578 = vunpack.c.l.b16 %v5443
        %v5579 = vunpack.c.l.b16 %v5444
        %v5580 = vunpack.c.l.b16 %v5445
        %v5581 = vunpack.c.l.b16 %v5446
        %v5582 = vunpack.c.l.b16 %v5447
        %v5583 = vunpack.c.l.b16 %v5448
        %v5584 = vunpack.c.l.b16 %v5449
        %v5585 = vunpack.c.l.b16 %v5450
        %v5586 = vunpack.c.l.b16 %v5451
        %v5587 = vunpack.c.l.b16 %v5452
        %v5588 = vunpack.c.l.b16 %v5453
        %v5589 = vunpack.c.l.b16 %v5454
        %v5590 = vunpack.c.l.b16 %v5455
        %v5591 = vunpack.c.l.b16 %v5456
        %v5592 = vunpack.c.l.b16 %v5457
        %v5593 = vunpack.c.l.b16 %v5458
        %v5594 = vunpack.c.l.b16 %v5459
        %v5595 = vunpack.c.l.b16 %v5460
        %v5596 = vunpack.c.l.b16 %v5461
        %v5597 = vunpack.c.l.b16 %v5462
        %v5598 = vunpack.c.l.b16 %v5463
        %v5599 = vunpack.c.l.b16 %v5464
        %v5600 = vunpack.c.l.b16 %v5465
        %v5601 = vunpack.c.l.b16 %v5466
        %v5602 = vunpack.c.l.b16 %v5467
        %v5603 = vunpack.c.l.b16 %v5468
        %v5604 = vunpack.c.l.b16 %v5469
        %v5605 = vunpack.c.l.b16 %v5470
        %v5606 = vunpack.c.l.b16 %v5471
        %v5607 = vunpack.c.l.b16 %v5472
        %v5608 = vunpack.c.l.b16 %v5473
        %v5609 = vunpack.c.l.b16 %v5474
        %v5610 = vunpack.c.l.b16 %v5475
        %v5611 = vunpack.c.l.b16 %v5476
        %v5612 = vunpack.c.l.b16 %v5477
        %v5613 = vunpack.c.l.b16 %v5478
        %v5614 = vunpack.c.l.b16 %v5479
        %v5615 = vunpack.c.l.b16 %v5480
        %v5616 = vunpack.c.l.b16 %v5481
        %v5617 = vunpack.c.l.b16 %v5482
        %v5618 = vunpack.c.l.b16 %v5483
        %v5619 = vunpack.c.l.b16 %v5484
        %v5620 = vunpack.c.l.b16 %v5485
        %v5621 = vunpack.c.l.b16 %v5486
        %v5622 = vunpack.c.l.b16 %v5487
        %v5623 = vpack.c.b16 %v5560, %v5559
        %v5624 = vpack.c.b16 %v5562, %v5561
        %v5625 = vpack.c.b16 %v5564, %v5563
        %v5626 = vpack.c.b16 %v5566, %v5565
        %v5627 = vpack.c.b16 %v5568, %v5567
        %v5628 = vpack.c.b16 %v5570, %v5569
        %v5629 = vpack.c.b16 %v5572, %v5571
        %v5630 = vpack.c.b16 %v5574, %v5573
        %v5631 = vpack.c.b16 %v5576, %v5575
        %v5632 = vpack.c.b16 %v5578, %v5577
        %v5633 = vpack.c.b16 %v5580, %v5579
        %v5634 = vpack.c.b16 %v5582, %v5581
        %v5635 = vpack.c.b16 %v5584, %v5583
        %v5636 = vpack.c.b16 %v5586, %v5585
        %v5637 = vpack.c.b16 %v5588, %v5587
        %v5638 = vpack.c.b16 %v5590, %v5589
        %v5639 = vpack.c.b16 %v5592, %v5591
        %v5640 = vpack.c.b16 %v5594, %v5593
        %v5641 = vpack.c.b16 %v5596, %v5595
        %v5642 = vpack.c.b16 %v5598, %v5597
        %v5643 = vpack.c.b16 %v5600, %v5599
        %v5644 = vpack.c.b16 %v5602, %v5601
        %v5645 = vpack.c.b16 %v5604, %v5603
        %v5646 = vpack.c.b16 %v5606, %v5605
        %v5647 = vpack.c.b16 %v5608, %v5607
        %v5648 = vpack.c.b16 %v5610, %v5609
        %v5649 = vpack.c.b16 %v5612, %v5611
        %v5650 = vpack.c.b16 %v5614, %v5613
        %v5651 = vpack.c.b16 %v5616, %v5615
        %v5652 = vpack.c.b16 %v5618, %v5617
        %v5653 = vpack.c.b16 %v5620, %v5619
        %v5654 = vpack.c.b16 %v5622, %v5621
        %5687 = vmatprep.subr.bf16.mxu0 0
        %5688 = vmatpush1.bf16.msra.mxu0 %v5623
        %5689 = vmatprep.subr.bf16.mxu0 0
        %5690 = vmatpush1.bf16.msra.mxu0 %v5624
        %5691 = vmatprep.subr.bf16.mxu0 0
        %5692 = vmatpush1.bf16.msra.mxu0 %v5625
        %5693 = vmatprep.subr.bf16.mxu0 0
        %5694 = vmatpush1.bf16.msra.mxu0 %v5626
        %5695 = vmatprep.subr.bf16.mxu0 0
        %5696 = vmatpush1.bf16.msra.mxu0 %v5627
        %5697 = vmatprep.subr.bf16.mxu0 0
        %5698 = vmatpush1.bf16.msra.mxu0 %v5628
        %5699 = vmatprep.subr.bf16.mxu0 0
        %5700 = vmatpush1.bf16.msra.mxu0 %v5629
        %5701 = vmatprep.subr.bf16.mxu0 0
        %5702 = vmatpush1.bf16.msra.mxu0 %v5630
        %5703 = vmatprep.subr.bf16.mxu0 0
        %5704 = vmatpush1.bf16.msra.mxu0 %v5631
        %5705 = vmatprep.subr.bf16.mxu0 0
        %5706 = vmatpush1.bf16.msra.mxu0 %v5632
        %5707 = vmatprep.subr.bf16.mxu0 0
        %5708 = vmatpush1.bf16.msra.mxu0 %v5633
        %5709 = vmatprep.subr.bf16.mxu0 0
        %5710 = vmatpush1.bf16.msra.mxu0 %v5634
        %5711 = vmatprep.subr.bf16.mxu0 0
        %5712 = vmatpush1.bf16.msra.mxu0 %v5635
        %5713 = vmatprep.subr.bf16.mxu0 0
        %5714 = vmatpush1.bf16.msra.mxu0 %v5636
        %5715 = vmatprep.subr.bf16.mxu0 0
        %5716 = vmatpush1.bf16.msra.mxu0 %v5637
        %5717 = vmatprep.subr.bf16.mxu0 0
        %5718 = vmatpush1.bf16.msra.mxu0 %v5638
        %5719 = vmatprep.mubr.bf16.mxu0 %v5393
        %5720 = vmatmul.mubr.bf16.gmra.mrb[0].mxu0 %v5392
        %v5721 = vpop.f32.mrb[0].mxu0
        %v5722 = vadd.f32 %v5493, %v5721
        %v5723 = vpop.f32.mrb[0].mxu0
        %v5724 = vpop.f32.mrb[0].mxu0
        %v5725 = vadd.f32 %v5493, %v5724
        %v5726 = vpop.f32.mrb[0].mxu0
        %5727 = vmatprep.mubr.bf16.mxu0 %v5397
        %5728 = vmatmul.mubr.bf16.gmra.mrb[0].mxu0 %v5396
        %v5729 = vpop.f32.mrb[0].mxu0
        %v5730 = vadd.f32 %v5493, %v5729
        %v5731 = vpop.f32.mrb[0].mxu0
        %v5732 = vpop.f32.mrb[0].mxu0
        %v5733 = vadd.f32 %v5493, %v5732
        %v5734 = vpop.f32.mrb[0].mxu0
        %5735 = vmatprep.mubr.bf16.mxu0 %v5401
        %5736 = vmatmul.mubr.bf16.gmra.mrb[0].mxu0 %v5400
        %v5737 = vpop.f32.mrb[0].mxu0
        %v5738 = vadd.f32 %v5493, %v5737
        %v5739 = vpop.f32.mrb[0].mxu0
        %v5740 = vpop.f32.mrb[0].mxu0
        %v5741 = vadd.f32 %v5493, %v5740
        %v5742 = vpop.f32.mrb[0].mxu0
        %5743 = vmatprep.mubr.bf16.mxu0 %v5405
        %5744 = vmatmul.mubr.bf16.gmra.mrb[0].mxu0 %v5404
        %v5745 = vpop.f32.mrb[0].mxu0
        %v5746 = vadd.f32 %v5493, %v5745
        %v5747 = vpop.f32.mrb[0].mxu0
        %v5748 = vpop.f32.mrb[0].mxu0
        %v5749 = vadd.f32 %v5493, %v5748
        %v5750 = vpop.f32.mrb[0].mxu0
        %5751 = vmatprep.mubr.bf16.mxu0 %v5409
        %5752 = vmatmul.mubr.bf16.gmra.mrb[0].mxu0 %v5408
        %v5753 = vpop.f32.mrb[0].mxu0
        %v5754 = vadd.f32 %v5493, %v5753
        %v5755 = vpop.f32.mrb[0].mxu0
        %v5756 = vpop.f32.mrb[0].mxu0
        %v5757 = vadd.f32 %v5493, %v5756
        %v5758 = vpop.f32.mrb[0].mxu0
        %5759 = vmatprep.mubr.bf16.mxu0 %v5413
        %5760 = vmatmul.mubr.bf16.gmra.mrb[0].mxu0 %v5412
        %v5761 = vpop.f32.mrb[0].mxu0
        %v5762 = vadd.f32 %v5493, %v5761
        %v5763 = vpop.f32.mrb[0].mxu0
        %v5764 = vpop.f32.mrb[0].mxu0
        %v5765 = vadd.f32 %v5493, %v5764
        %v5766 = vpop.f32.mrb[0].mxu0
        %5767 = vmatprep.mubr.bf16.mxu0 %v5417
        %5768 = vmatmul.mubr.bf16.gmra.mrb[0].mxu0 %v5416
        %v5769 = vpop.f32.mrb[0].mxu0
        %v5770 = vadd.f32 %v5493, %v5769
        %v5771 = vpop.f32.mrb[0].mxu0
        %v5772 = vpop.f32.mrb[0].mxu0
        %v5773 = vadd.f32 %v5493, %v5772
        %v5774 = vpop.f32.mrb[0].mxu0
        %5775 = vmatprep.mubr.bf16.mxu0 %v5421
        %5776 = vmatmul.mubr.bf16.gmra.mrb[0].mxu0 %v5420
        %v5777 = vpop.f32.mrb[0].mxu0
        %v5778 = vadd.f32 %v5493, %v5777
        %v5779 = vpop.f32.mrb[0].mxu0
        %v5780 = vpop.f32.mrb[0].mxu0
        %v5781 = vadd.f32 %v5493, %v5780
        %v5782 = vpop.f32.mrb[0].mxu0
        %5783 = vdwg.mxu0
        %5784 = vmatprep.subr.bf16.mxu0 0
        %5785 = vmatpush1.bf16.msra.mxu0 %v5639
        %5786 = vmatprep.subr.bf16.mxu0 0
        %5787 = vmatpush1.bf16.msra.mxu0 %v5640
        %5788 = vmatprep.subr.bf16.mxu0 0
        %5789 = vmatpush1.bf16.msra.mxu0 %v5641
        %5790 = vmatprep.subr.bf16.mxu0 0
        %5791 = vmatpush1.bf16.msra.mxu0 %v5642
        %5792 = vmatprep.subr.bf16.mxu0 0
        %5793 = vmatpush1.bf16.msra.mxu0 %v5643
        %5794 = vmatprep.subr.bf16.mxu0 0
        %5795 = vmatpush1.bf16.msra.mxu0 %v5644
        %5796 = vmatprep.subr.bf16.mxu0 0
        %5797 = vmatpush1.bf16.msra.mxu0 %v5645
        %5798 = vmatprep.subr.bf16.mxu0 0
        %5799 = vmatpush1.bf16.msra.mxu0 %v5646
        %5800 = vmatprep.subr.bf16.mxu0 0
        %5801 = vmatpush1.bf16.msra.mxu0 %v5647
        %5802 = vmatprep.subr.bf16.mxu0 0
        %5803 = vmatpush1.bf16.msra.mxu0 %v5648
        %5804 = vmatprep.subr.bf16.mxu0 0
        %5805 = vmatpush1.bf16.msra.mxu0 %v5649
        %5806 = vmatprep.subr.bf16.mxu0 0
        %5807 = vmatpush1.bf16.msra.mxu0 %v5650
        %5808 = vmatprep.subr.bf16.mxu0 0
        %5809 = vmatpush1.bf16.msra.mxu0 %v5651
        %5810 = vmatprep.subr.bf16.mxu0 0
        %5811 = vmatpush1.bf16.msra.mxu0 %v5652
        %5812 = vmatprep.subr.bf16.mxu0 0
        %5813 = vmatpush1.bf16.msra.mxu0 %v5653
        %5814 = vmatprep.subr.bf16.mxu0 0
        %5815 = vmatpush1.bf16.msra.mxu0 %v5654
        %5816 = vmatprep.mubr.bf16.mxu0 %v5395
        %5817 = vmatmul.mubr.bf16.gmra.mrb[0].mxu0 %v5394
        %v5818 = vpop.f32.mrb[0].mxu0
        %v5819 = vadd.f32 %v5722, %v5818
        %v5820 = vpop.f32.mrb[0].mxu0
        %v5821 = vpop.f32.mrb[0].mxu0
        %v5822 = vadd.f32 %v5725, %v5821
        %v5823 = vpop.f32.mrb[0].mxu0
        %5824 = vmatprep.mubr.bf16.mxu0 %v5399
        %5825 = vmatmul.mubr.bf16.gmra.mrb[0].mxu0 %v5398
        %v5826 = vpop.f32.mrb[0].mxu0
        %v5827 = vadd.f32 %v5730, %v5826
        %v5828 = vpop.f32.mrb[0].mxu0
        %v5829 = vpop.f32.mrb[0].mxu0
        %v5830 = vadd.f32 %v5733, %v5829
        %v5831 = vpop.f32.mrb[0].mxu0
        %5832 = vmatprep.mubr.bf16.mxu0 %v5403
        %5833 = vmatmul.mubr.bf16.gmra.mrb[0].mxu0 %v5402
        %v5834 = vpop.f32.mrb[0].mxu0
        %v5835 = vadd.f32 %v5738, %v5834
        %v5836 = vpop.f32.mrb[0].mxu0
        %v5837 = vpop.f32.mrb[0].mxu0
        %v5838 = vadd.f32 %v5741, %v5837
        %v5839 = vpop.f32.mrb[0].mxu0
        %5840 = vmatprep.mubr.bf16.mxu0 %v5407
        %5841 = vmatmul.mubr.bf16.gmra.mrb[0].mxu0 %v5406
        %v5842 = vpop.f32.mrb[0].mxu0
        %v5843 = vadd.f32 %v5746, %v5842
        %v5844 = vpop.f32.mrb[0].mxu0
        %v5845 = vpop.f32.mrb[0].mxu0
        %v5846 = vadd.f32 %v5749, %v5845
        %v5847 = vpop.f32.mrb[0].mxu0
        %5848 = vmatprep.mubr.bf16.mxu0 %v5411
        %5849 = vmatmul.mubr.bf16.gmra.mrb[0].mxu0 %v5410
        %v5850 = vpop.f32.mrb[0].mxu0
        %v5851 = vadd.f32 %v5754, %v5850
        %v5852 = vpop.f32.mrb[0].mxu0
        %v5853 = vpop.f32.mrb[0].mxu0
        %v5854 = vadd.f32 %v5757, %v5853
        %v5855 = vpop.f32.mrb[0].mxu0
        %5856 = vmatprep.mubr.bf16.mxu0 %v5415
        %5857 = vmatmul.mubr.bf16.gmra.mrb[0].mxu0 %v5414
        %v5858 = vpop.f32.mrb[0].mxu0
        %v5859 = vadd.f32 %v5762, %v5858
        %v5860 = vpop.f32.mrb[0].mxu0
        %v5861 = vpop.f32.mrb[0].mxu0
        %v5862 = vadd.f32 %v5765, %v5861
        %v5863 = vpop.f32.mrb[0].mxu0
        %5864 = vmatprep.mubr.bf16.mxu0 %v5419
        %5865 = vmatmul.mubr.bf16.gmra.mrb[0].mxu0 %v5418
        %v5866 = vpop.f32.mrb[0].mxu0
        %v5867 = vadd.f32 %v5770, %v5866
        %v5868 = vpop.f32.mrb[0].mxu0
        %v5869 = vpop.f32.mrb[0].mxu0
        %v5870 = vadd.f32 %v5773, %v5869
        %v5871 = vpop.f32.mrb[0].mxu0
        %5872 = vmatprep.mubr.bf16.mxu0 %v5423
        %5873 = vmatmul.mubr.bf16.gmra.mrb[0].mxu0 %v5422
        %v5874 = vpop.f32.mrb[0].mxu0
        %v5875 = vadd.f32 %v5778, %v5874
        %v5876 = vpop.f32.mrb[0].mxu0
        %v5877 = vpop.f32.mrb[0].mxu0
        %v5878 = vadd.f32 %v5781, %v5877
        %v5879 = vpop.f32.mrb[0].mxu0
        %5880 = vdwg.mxu0
        %5897 = vrot.lane.b32.xlu0 %v5819, 124
        %v5898 = vpop.permute.xlu0 %5897
        %5899 = vrot.lane.b32.xlu0 %v5822, 124
        %v5900 = vpop.permute.xlu0 %5899
        %5901 = vrot.lane.b32.xlu0 %v5827, 124
        %v5902 = vpop.permute.xlu0 %5901
        %5903 = vrot.lane.b32.xlu0 %v5830, 124
        %v5904 = vpop.permute.xlu0 %5903
        %5905 = vrot.lane.b32.xlu0 %v5835, 124
        %v5906 = vpop.permute.xlu0 %5905
        %5907 = vrot.lane.b32.xlu0 %v5838, 124
        %v5908 = vpop.permute.xlu0 %5907
        %5909 = vrot.lane.b32.xlu0 %v5843, 124
        %v5910 = vpop.permute.xlu0 %5909
        %5911 = vrot.lane.b32.xlu0 %v5846, 124
        %v5912 = vpop.permute.xlu0 %5911
        %5913 = vrot.lane.b32.xlu0 %v5851, 124
        %v5914 = vpop.permute.xlu0 %5913
        %5915 = vrot.lane.b32.xlu0 %v5854, 124
        %v5916 = vpop.permute.xlu0 %5915
        %5917 = vrot.lane.b32.xlu0 %v5859, 124
        %v5918 = vpop.permute.xlu0 %5917
        %5919 = vrot.lane.b32.xlu0 %v5862, 124
        %v5920 = vpop.permute.xlu0 %5919
        %5921 = vrot.lane.b32.xlu0 %v5867, 124
        %v5922 = vpop.permute.xlu0 %5921
        %5923 = vrot.lane.b32.xlu0 %v5870, 124
        %v5924 = vpop.permute.xlu0 %5923
        %5925 = vrot.lane.b32.xlu0 %v5875, 124
        %v5926 = vpop.permute.xlu0 %5925
        %5927 = vrot.lane.b32.xlu0 %v5878, 124
        %v5928 = vpop.permute.xlu0 %5927
        %v5945 = vmax.f32 %v5819, %v5898
        %v5946 = vmax.f32 %v5822, %v5900
        %v5947 = vmax.f32 %v5827, %v5902
        %v5948 = vmax.f32 %v5830, %v5904
        %v5949 = vmax.f32 %v5835, %v5906
        %v5950 = vmax.f32 %v5838, %v5908
        %v5951 = vmax.f32 %v5843, %v5910
        %v5952 = vmax.f32 %v5846, %v5912
        %v5953 = vmax.f32 %v5851, %v5914
        %v5954 = vmax.f32 %v5854, %v5916
        %v5955 = vmax.f32 %v5859, %v5918
        %v5956 = vmax.f32 %v5862, %v5920
        %v5957 = vmax.f32 %v5867, %v5922
        %v5958 = vmax.f32 %v5870, %v5924
        %v5959 = vmax.f32 %v5875, %v5926
        %v5960 = vmax.f32 %v5878, %v5928
        %v5961 = vsub.f32 %v5819, %v5945
        %v5962 = vsub.f32 %v5822, %v5946
        %v5963 = vsub.f32 %v5827, %v5947
        %v5964 = vsub.f32 %v5830, %v5948
        %v5965 = vsub.f32 %v5835, %v5949
        %v5966 = vsub.f32 %v5838, %v5950
        %v5967 = vsub.f32 %v5843, %v5951
        %v5968 = vsub.f32 %v5846, %v5952
        %v5969 = vsub.f32 %v5851, %v5953
        %v5970 = vsub.f32 %v5854, %v5954
        %v5971 = vsub.f32 %v5859, %v5955
        %v5972 = vsub.f32 %v5862, %v5956
        %v5973 = vsub.f32 %v5867, %v5957
        %v5974 = vsub.f32 %v5870, %v5958
        %v5975 = vsub.f32 %v5875, %v5959
        %v5976 = vsub.f32 %v5878, %v5960
        %v5977 = vmul.f32 %v5961, 1.442695
        %v5978 = vpow.pop %v5977
        %v5979 = vmul.f32 %v5962, 1.442695
        %v5980 = vpow.pop %v5979
        %v5981 = vmul.f32 %v5963, 1.442695
        %v5982 = vpow.pop %v5981
        %v5983 = vmul.f32 %v5964, 1.442695
        %v5984 = vpow.pop %v5983
        %v5985 = vmul.f32 %v5965, 1.442695
        %v5986 = vpow.pop %v5985
        %v5987 = vmul.f32 %v5966, 1.442695
        %v5988 = vpow.pop %v5987
        %v5989 = vmul.f32 %v5967, 1.442695
        %v5990 = vpow.pop %v5989
        %v5991 = vmul.f32 %v5968, 1.442695
        %v5992 = vpow.pop %v5991
        %v5993 = vmul.f32 %v5969, 1.442695
        %v5994 = vpow.pop %v5993
        %v5995 = vmul.f32 %v5970, 1.442695
        %v5996 = vpow.pop %v5995
        %v5997 = vmul.f32 %v5971, 1.442695
        %v5998 = vpow.pop %v5997
        %v5999 = vmul.f32 %v5972, 1.442695
        %v6000 = vpow.pop %v5999
        %v6001 = vmul.f32 %v5973, 1.442695
        %v6002 = vpow.pop %v6001
        %v6003 = vmul.f32 %v5974, 1.442695
        %v6004 = vpow.pop %v6003
        %v6005 = vmul.f32 %v5975, 1.442695
        %v6006 = vpow.pop %v6005
        %v6007 = vmul.f32 %v5976, 1.442695
        %v6008 = vpow.pop %v6007
        %6025 = vrot.lane.b32.xlu0 %v5945, 4
        %v6026 = vpop.permute.xlu0 %6025
        %6027 = vrot.lane.b32.xlu0 %v5946, 4
        %v6028 = vpop.permute.xlu0 %6027
        %6029 = vrot.lane.b32.xlu0 %v5947, 4
        %v6030 = vpop.permute.xlu0 %6029
        %6031 = vrot.lane.b32.xlu0 %v5948, 4
        %v6032 = vpop.permute.xlu0 %6031
        %6033 = vrot.lane.b32.xlu0 %v5949, 4
        %v6034 = vpop.permute.xlu0 %6033
        %6035 = vrot.lane.b32.xlu0 %v5950, 4
        %v6036 = vpop.permute.xlu0 %6035
        %6037 = vrot.lane.b32.xlu0 %v5951, 4
        %v6038 = vpop.permute.xlu0 %6037
        %6039 = vrot.lane.b32.xlu0 %v5952, 4
        %v6040 = vpop.permute.xlu0 %6039
        %6041 = vrot.lane.b32.xlu0 %v5953, 4
        %v6042 = vpop.permute.xlu0 %6041
        %6043 = vrot.lane.b32.xlu0 %v5954, 4
        %v6044 = vpop.permute.xlu0 %6043
        %6045 = vrot.lane.b32.xlu0 %v5955, 4
        %v6046 = vpop.permute.xlu0 %6045
        %6047 = vrot.lane.b32.xlu0 %v5956, 4
        %v6048 = vpop.permute.xlu0 %6047
        %6049 = vrot.lane.b32.xlu0 %v5957, 4
        %v6050 = vpop.permute.xlu0 %6049
        %6051 = vrot.lane.b32.xlu0 %v5958, 4
        %v6052 = vpop.permute.xlu0 %6051
        %6053 = vrot.lane.b32.xlu0 %v5959, 4
        %v6054 = vpop.permute.xlu0 %6053
        %6055 = vrot.lane.b32.xlu0 %v5960, 4
        %v6056 = vpop.permute.xlu0 %6055
        %v6073 = vsub.f32 %v5819, %v6026
        %v6074 = vsub.f32 %v5822, %v6028
        %v6075 = vsub.f32 %v5827, %v6030
        %v6076 = vsub.f32 %v5830, %v6032
        %v6077 = vsub.f32 %v5835, %v6034
        %v6078 = vsub.f32 %v5838, %v6036
        %v6079 = vsub.f32 %v5843, %v6038
        %v6080 = vsub.f32 %v5846, %v6040
        %v6081 = vsub.f32 %v5851, %v6042
        %v6082 = vsub.f32 %v5854, %v6044
        %v6083 = vsub.f32 %v5859, %v6046
        %v6084 = vsub.f32 %v5862, %v6048
        %v6085 = vsub.f32 %v5867, %v6050
        %v6086 = vsub.f32 %v5870, %v6052
        %v6087 = vsub.f32 %v5875, %v6054
        %v6088 = vsub.f32 %v5878, %v6056
        %v6089 = vmul.f32 %v6073, 1.442695
        %v6090 = vpow.pop %v6089
        %v6091 = vmul.f32 %v6074, 1.442695
        %v6092 = vpow.pop %v6091
        %v6093 = vmul.f32 %v6075, 1.442695
        %v6094 = vpow.pop %v6093
        %v6095 = vmul.f32 %v6076, 1.442695
        %v6096 = vpow.pop %v6095
        %v6097 = vmul.f32 %v6077, 1.442695
        %v6098 = vpow.pop %v6097
        %v6099 = vmul.f32 %v6078, 1.442695
        %v6100 = vpow.pop %v6099
        %v6101 = vmul.f32 %v6079, 1.442695
        %v6102 = vpow.pop %v6101
        %v6103 = vmul.f32 %v6080, 1.442695
        %v6104 = vpow.pop %v6103
        %v6105 = vmul.f32 %v6081, 1.442695
        %v6106 = vpow.pop %v6105
        %v6107 = vmul.f32 %v6082, 1.442695
        %v6108 = vpow.pop %v6107
        %v6109 = vmul.f32 %v6083, 1.442695
        %v6110 = vpow.pop %v6109
        %v6111 = vmul.f32 %v6084, 1.442695
        %v6112 = vpow.pop %v6111
        %v6113 = vmul.f32 %v6085, 1.442695
        %v6114 = vpow.pop %v6113
        %v6115 = vmul.f32 %v6086, 1.442695
        %v6116 = vpow.pop %v6115
        %v6117 = vmul.f32 %v6087, 1.442695
        %v6118 = vpow.pop %v6117
        %v6119 = vmul.f32 %v6088, 1.442695
        %v6120 = vpow.pop %v6119
        %6137 = vrot.lane.b32.xlu0 %v6090, 124
        %v6138 = vpop.permute.xlu0 %6137
        %6139 = vrot.lane.b32.xlu0 %v6092, 124
        %v6140 = vpop.permute.xlu0 %6139
        %6141 = vrot.lane.b32.xlu0 %v6094, 124
        %v6142 = vpop.permute.xlu0 %6141
        %6143 = vrot.lane.b32.xlu0 %v6096, 124
        %v6144 = vpop.permute.xlu0 %6143
        %6145 = vrot.lane.b32.xlu0 %v6098, 124
        %v6146 = vpop.permute.xlu0 %6145
        %6147 = vrot.lane.b32.xlu0 %v6100, 124
        %v6148 = vpop.permute.xlu0 %6147
        %6149 = vrot.lane.b32.xlu0 %v6102, 124
        %v6150 = vpop.permute.xlu0 %6149
        %6151 = vrot.lane.b32.xlu0 %v6104, 124
        %v6152 = vpop.permute.xlu0 %6151
        %6153 = vrot.lane.b32.xlu0 %v6106, 124
        %v6154 = vpop.permute.xlu0 %6153
        %6155 = vrot.lane.b32.xlu0 %v6108, 124
        %v6156 = vpop.permute.xlu0 %6155
        %6157 = vrot.lane.b32.xlu0 %v6110, 124
        %v6158 = vpop.permute.xlu0 %6157
        %6159 = vrot.lane.b32.xlu0 %v6112, 124
        %v6160 = vpop.permute.xlu0 %6159
        %6161 = vrot.lane.b32.xlu0 %v6114, 124
        %v6162 = vpop.permute.xlu0 %6161
        %6163 = vrot.lane.b32.xlu0 %v6116, 124
        %v6164 = vpop.permute.xlu0 %6163
        %6165 = vrot.lane.b32.xlu0 %v6118, 124
        %v6166 = vpop.permute.xlu0 %6165
        %6167 = vrot.lane.b32.xlu0 %v6120, 124
        %v6168 = vpop.permute.xlu0 %6167
        %v6185 = vadd.f32 %v5978, %v6138
        %v6186 = vadd.f32 %v5980, %v6140
        %v6187 = vadd.f32 %v5982, %v6142
        %v6188 = vadd.f32 %v5984, %v6144
        %v6189 = vadd.f32 %v5986, %v6146
        %v6190 = vadd.f32 %v5988, %v6148
        %v6191 = vadd.f32 %v5990, %v6150
        %v6192 = vadd.f32 %v5992, %v6152
        %v6193 = vadd.f32 %v5994, %v6154
        %v6194 = vadd.f32 %v5996, %v6156
        %v6195 = vadd.f32 %v5998, %v6158
        %v6196 = vadd.f32 %v6000, %v6160
        %v6197 = vadd.f32 %v6002, %v6162
        %v6198 = vadd.f32 %v6004, %v6164
        %v6199 = vadd.f32 %v6006, %v6166
        %v6200 = vadd.f32 %v6008, %v6168
        %v6201 = vlog2.pop %v6185
        %v6202 = vmul.f32 %v6201, 0.6931472
        %v6203 = vlog2.pop %v6186
        %v6204 = vmul.f32 %v6203, 0.6931472
        %v6205 = vlog2.pop %v6187
        %v6206 = vmul.f32 %v6205, 0.6931472
        %v6207 = vlog2.pop %v6188
        %v6208 = vmul.f32 %v6207, 0.6931472
        %v6209 = vlog2.pop %v6189
        %v6210 = vmul.f32 %v6209, 0.6931472
        %v6211 = vlog2.pop %v6190
        %v6212 = vmul.f32 %v6211, 0.6931472
        %v6213 = vlog2.pop %v6191
        %v6214 = vmul.f32 %v6213, 0.6931472
        %v6215 = vlog2.pop %v6192
        %v6216 = vmul.f32 %v6215, 0.6931472
        %v6217 = vlog2.pop %v6193
        %v6218 = vmul.f32 %v6217, 0.6931472
        %v6219 = vlog2.pop %v6194
        %v6220 = vmul.f32 %v6219, 0.6931472
        %v6221 = vlog2.pop %v6195
        %v6222 = vmul.f32 %v6221, 0.6931472
        %v6223 = vlog2.pop %v6196
        %v6224 = vmul.f32 %v6223, 0.6931472
        %v6225 = vlog2.pop %v6197
        %v6226 = vmul.f32 %v6225, 0.6931472
        %v6227 = vlog2.pop %v6198
        %v6228 = vmul.f32 %v6227, 0.6931472
        %v6229 = vlog2.pop %v6199
        %v6230 = vmul.f32 %v6229, 0.6931472
        %v6231 = vlog2.pop %v6200
        %v6232 = vmul.f32 %v6231, 0.6931472
        %v6233 = vadd.f32 %v5945, %v6202
        %v6234 = vadd.f32 %v5946, %v6204
        %v6235 = vadd.f32 %v5947, %v6206
        %v6236 = vadd.f32 %v5948, %v6208
        %v6237 = vadd.f32 %v5949, %v6210
        %v6238 = vadd.f32 %v5950, %v6212
        %v6239 = vadd.f32 %v5951, %v6214
        %v6240 = vadd.f32 %v5952, %v6216
        %v6241 = vadd.f32 %v5953, %v6218
        %v6242 = vadd.f32 %v5954, %v6220
        %v6243 = vadd.f32 %v5955, %v6222
        %v6244 = vadd.f32 %v5956, %v6224
        %v6245 = vadd.f32 %v5957, %v6226
        %v6246 = vadd.f32 %v5958, %v6228
        %v6247 = vadd.f32 %v5959, %v6230
        %v6248 = vadd.f32 %v5960, %v6232
        %vm6249 = vcmp.gt.f32.partialorder %v250, 0.5
        %vm6250 = vcmp.gt.f32.partialorder %v251, 0.5
        %vm6251 = vcmp.gt.f32.partialorder %v252, 0.5
        %vm6252 = vcmp.gt.f32.partialorder %v253, 0.5
        %vm6253 = vcmp.gt.f32.partialorder %v254, 0.5
        %vm6254 = vcmp.gt.f32.partialorder %v255, 0.5
        %vm6255 = vcmp.gt.f32.partialorder %v256, 0.5
        %vm6256 = vcmp.gt.f32.partialorder %v257, 0.5
        %vm6257 = vcmp.gt.f32.partialorder %v258, 0.5
        %vm6258 = vcmp.gt.f32.partialorder %v259, 0.5
        %vm6259 = vcmp.gt.f32.partialorder %v260, 0.5
        %vm6260 = vcmp.gt.f32.partialorder %v261, 0.5
        %vm6261 = vcmp.gt.f32.partialorder %v262, 0.5
        %vm6262 = vcmp.gt.f32.partialorder %v263, 0.5
        %vm6263 = vcmp.gt.f32.partialorder %v264, 0.5
        %vm6264 = vcmp.gt.f32.partialorder %v265, 0.5
        %6265 = vrot.lane.b32.xlu0 %v5819, 96
        %v6266 = vpop.permute.xlu0 %6265
        %6267 = vrot.lane.b32.xlu0 %v5822, 96
        %v6268 = vpop.permute.xlu0 %6267
        %6269 = vrot.lane.b32.xlu0 %v5827, 96
        %v6270 = vpop.permute.xlu0 %6269
        %6271 = vrot.lane.b32.xlu0 %v5830, 96
        %v6272 = vpop.permute.xlu0 %6271
        %6273 = vrot.lane.b32.xlu0 %v5835, 96
        %v6274 = vpop.permute.xlu0 %6273
        %6275 = vrot.lane.b32.xlu0 %v5838, 96
        %v6276 = vpop.permute.xlu0 %6275
        %6277 = vrot.lane.b32.xlu0 %v5843, 96
        %v6278 = vpop.permute.xlu0 %6277
        %6279 = vrot.lane.b32.xlu0 %v5846, 96
        %v6280 = vpop.permute.xlu0 %6279
        %6281 = vrot.lane.b32.xlu0 %v5851, 96
        %v6282 = vpop.permute.xlu0 %6281
        %6283 = vrot.lane.b32.xlu0 %v5854, 96
        %v6284 = vpop.permute.xlu0 %6283
        %6285 = vrot.lane.b32.xlu0 %v5859, 96
        %v6286 = vpop.permute.xlu0 %6285
        %6287 = vrot.lane.b32.xlu0 %v5862, 96
        %v6288 = vpop.permute.xlu0 %6287
        %6289 = vrot.lane.b32.xlu0 %v5867, 96
        %v6290 = vpop.permute.xlu0 %6289
        %6291 = vrot.lane.b32.xlu0 %v5870, 96
        %v6292 = vpop.permute.xlu0 %6291
        %6293 = vrot.lane.b32.xlu0 %v5875, 96
        %v6294 = vpop.permute.xlu0 %6293
        %6295 = vrot.lane.b32.xlu0 %v5878, 96
        %v6296 = vpop.permute.xlu0 %6295
        %6313 = vrot.lane.b32.xlu0 %v5819, 100
        %v6314 = vpop.permute.xlu0 %6313
        %6315 = vrot.lane.b32.xlu0 %v5822, 100
        %v6316 = vpop.permute.xlu0 %6315
        %6317 = vrot.lane.b32.xlu0 %v5827, 100
        %v6318 = vpop.permute.xlu0 %6317
        %6319 = vrot.lane.b32.xlu0 %v5830, 100
        %v6320 = vpop.permute.xlu0 %6319
        %6321 = vrot.lane.b32.xlu0 %v5835, 100
        %v6322 = vpop.permute.xlu0 %6321
        %6323 = vrot.lane.b32.xlu0 %v5838, 100
        %v6324 = vpop.permute.xlu0 %6323
        %6325 = vrot.lane.b32.xlu0 %v5843, 100
        %v6326 = vpop.permute.xlu0 %6325
        %6327 = vrot.lane.b32.xlu0 %v5846, 100
        %v6328 = vpop.permute.xlu0 %6327
        %6329 = vrot.lane.b32.xlu0 %v5851, 100
        %v6330 = vpop.permute.xlu0 %6329
        %6331 = vrot.lane.b32.xlu0 %v5854, 100
        %v6332 = vpop.permute.xlu0 %6331
        %6333 = vrot.lane.b32.xlu0 %v5859, 100
        %v6334 = vpop.permute.xlu0 %6333
        %6335 = vrot.lane.b32.xlu0 %v5862, 100
        %v6336 = vpop.permute.xlu0 %6335
        %6337 = vrot.lane.b32.xlu0 %v5867, 100
        %v6338 = vpop.permute.xlu0 %6337
        %6339 = vrot.lane.b32.xlu0 %v5870, 100
        %v6340 = vpop.permute.xlu0 %6339
        %6341 = vrot.lane.b32.xlu0 %v5875, 100
        %v6342 = vpop.permute.xlu0 %6341
        %6343 = vrot.lane.b32.xlu0 %v5878, 100
        %v6344 = vpop.permute.xlu0 %6343
        %v6361 = vsel %vm6249, %v6266, %v6314
        %v6362 = vsel %vm6250, %v6268, %v6316
        %v6363 = vsel %vm6251, %v6270, %v6318
        %v6364 = vsel %vm6252, %v6272, %v6320
        %v6365 = vsel %vm6253, %v6274, %v6322
        %v6366 = vsel %vm6254, %v6276, %v6324
        %v6367 = vsel %vm6255, %v6278, %v6326
        %v6368 = vsel %vm6256, %v6280, %v6328
        %v6369 = vsel %vm6257, %v6282, %v6330
        %v6370 = vsel %vm6258, %v6284, %v6332
        %v6371 = vsel %vm6259, %v6286, %v6334
        %v6372 = vsel %vm6260, %v6288, %v6336
        %v6373 = vsel %vm6261, %v6290, %v6338
        %v6374 = vsel %vm6262, %v6292, %v6340
        %v6375 = vsel %vm6263, %v6294, %v6342
        %v6376 = vsel %vm6264, %v6296, %v6344
        %6393 = vrot.lane.b32.xlu0 %v6361, 28
        %v6394 = vpop.permute.xlu0 %6393
        %6395 = vrot.lane.b32.xlu0 %v6362, 28
        %v6396 = vpop.permute.xlu0 %6395
        %6397 = vrot.lane.b32.xlu0 %v6363, 28
        %v6398 = vpop.permute.xlu0 %6397
        %6399 = vrot.lane.b32.xlu0 %v6364, 28
        %v6400 = vpop.permute.xlu0 %6399
        %6401 = vrot.lane.b32.xlu0 %v6365, 28
        %v6402 = vpop.permute.xlu0 %6401
        %6403 = vrot.lane.b32.xlu0 %v6366, 28
        %v6404 = vpop.permute.xlu0 %6403
        %6405 = vrot.lane.b32.xlu0 %v6367, 28
        %v6406 = vpop.permute.xlu0 %6405
        %6407 = vrot.lane.b32.xlu0 %v6368, 28
        %v6408 = vpop.permute.xlu0 %6407
        %6409 = vrot.lane.b32.xlu0 %v6369, 28
        %v6410 = vpop.permute.xlu0 %6409
        %6411 = vrot.lane.b32.xlu0 %v6370, 28
        %v6412 = vpop.permute.xlu0 %6411
        %6413 = vrot.lane.b32.xlu0 %v6371, 28
        %v6414 = vpop.permute.xlu0 %6413
        %6415 = vrot.lane.b32.xlu0 %v6372, 28
        %v6416 = vpop.permute.xlu0 %6415
        %6417 = vrot.lane.b32.xlu0 %v6373, 28
        %v6418 = vpop.permute.xlu0 %6417
        %6419 = vrot.lane.b32.xlu0 %v6374, 28
        %v6420 = vpop.permute.xlu0 %6419
        %6421 = vrot.lane.b32.xlu0 %v6375, 28
        %v6422 = vpop.permute.xlu0 %6421
        %6423 = vrot.lane.b32.xlu0 %v6376, 28
        %v6424 = vpop.permute.xlu0 %6423
        %v6441 = vsub.f32 %v6233, %v6394
        %v6442 = vsub.f32 %v6234, %v6396
        %v6443 = vsub.f32 %v6235, %v6398
        %v6444 = vsub.f32 %v6236, %v6400
        %v6445 = vsub.f32 %v6237, %v6402
        %v6446 = vsub.f32 %v6238, %v6404
        %v6447 = vsub.f32 %v6239, %v6406
        %v6448 = vsub.f32 %v6240, %v6408
        %v6449 = vsub.f32 %v6241, %v6410
        %v6450 = vsub.f32 %v6242, %v6412
        %v6451 = vsub.f32 %v6243, %v6414
        %v6452 = vsub.f32 %v6244, %v6416
        %v6453 = vsub.f32 %v6245, %v6418
        %v6454 = vsub.f32 %v6246, %v6420
        %v6455 = vsub.f32 %v6247, %v6422
        %v6456 = vsub.f32 %v6248, %v6424
        %vm6457 = vcmask 31744
        %v6458 = vsel %vm6457, %v6441, 0.0
        %6459 = vadd.xlane.f32.xlu0 %v6458
        %v6460 = vpop.xlane.xlu0 %6459
        %v6461 = vsel %vm6457, %v6442, 0.0
        %6462 = vadd.xlane.f32.xlu0 %v6461
        %v6463 = vpop.xlane.xlu0 %6462
        %v6464 = vsel %vm6457, %v6443, 0.0
        %6465 = vadd.xlane.f32.xlu0 %v6464
        %v6466 = vpop.xlane.xlu0 %6465
        %v6467 = vsel %vm6457, %v6444, 0.0
        %6468 = vadd.xlane.f32.xlu0 %v6467
        %v6469 = vpop.xlane.xlu0 %6468
        %v6470 = vsel %vm6457, %v6445, 0.0
        %6471 = vadd.xlane.f32.xlu0 %v6470
        %v6472 = vpop.xlane.xlu0 %6471
        %v6473 = vsel %vm6457, %v6446, 0.0
        %6474 = vadd.xlane.f32.xlu0 %v6473
        %v6475 = vpop.xlane.xlu0 %6474
        %v6476 = vsel %vm6457, %v6447, 0.0
        %6477 = vadd.xlane.f32.xlu0 %v6476
        %v6478 = vpop.xlane.xlu0 %6477
        %v6479 = vsel %vm6457, %v6448, 0.0
        %6480 = vadd.xlane.f32.xlu0 %v6479
        %v6481 = vpop.xlane.xlu0 %6480
        %v6482 = vsel %vm6457, %v6449, 0.0
        %6483 = vadd.xlane.f32.xlu0 %v6482
        %v6484 = vpop.xlane.xlu0 %6483
        %v6485 = vsel %vm6457, %v6450, 0.0
        %6486 = vadd.xlane.f32.xlu0 %v6485
        %v6487 = vpop.xlane.xlu0 %6486
        %v6488 = vsel %vm6457, %v6451, 0.0
        %6489 = vadd.xlane.f32.xlu0 %v6488
        %v6490 = vpop.xlane.xlu0 %6489
        %v6491 = vsel %vm6457, %v6452, 0.0
        %6492 = vadd.xlane.f32.xlu0 %v6491
        %v6493 = vpop.xlane.xlu0 %6492
        %v6494 = vsel %vm6457, %v6453, 0.0
        %6495 = vadd.xlane.f32.xlu0 %v6494
        %v6496 = vpop.xlane.xlu0 %6495
        %v6497 = vsel %vm6457, %v6454, 0.0
        %6498 = vadd.xlane.f32.xlu0 %v6497
        %v6499 = vpop.xlane.xlu0 %6498
        %v6500 = vsel %vm6457, %v6455, 0.0
        %6501 = vadd.xlane.f32.xlu0 %v6500
        %v6502 = vpop.xlane.xlu0 %6501
        %v6503 = vsel %vm6457, %v6456, 0.0
        %6504 = vadd.xlane.f32.xlu0 %v6503
        %v6505 = vpop.xlane.xlu0 %6504
        %v6506 = vadd.f32 %v6460, %v3040
        %v6507 = vadd.f32 %v6463, %v3041
        %v6508 = vadd.f32 %v6466, %v3042
        %v6509 = vadd.f32 %v6469, %v3043
        %v6510 = vadd.f32 %v6472, %v3044
        %v6511 = vadd.f32 %v6475, %v3045
        %v6512 = vadd.f32 %v6478, %v3046
        %v6513 = vadd.f32 %v6481, %v3047
        %v6514 = vadd.f32 %v6484, %v3048
        %v6515 = vadd.f32 %v6487, %v3049
        %v6516 = vadd.f32 %v6490, %v3050
        %v6517 = vadd.f32 %v6493, %v3051
        %v6518 = vadd.f32 %v6496, %v3052
        %v6519 = vadd.f32 %v6499, %v3053
        %v6520 = vadd.f32 %v6502, %v3054
        %v6521 = vadd.f32 %v6505, %v3055
        %v6522 = vmul.f32 %v6506, %v250
        %v6523 = vmul.f32 %v6507, %v251
        %v6524 = vmul.f32 %v6508, %v252
        %v6525 = vmul.f32 %v6509, %v253
        %v6526 = vmul.f32 %v6510, %v254
        %v6527 = vmul.f32 %v6511, %v255
        %v6528 = vmul.f32 %v6512, %v256
        %v6529 = vmul.f32 %v6513, %v257
        %v6530 = vmul.f32 %v6514, %v258
        %v6531 = vmul.f32 %v6515, %v259
        %v6532 = vmul.f32 %v6516, %v260
        %v6533 = vmul.f32 %v6517, %v261
        %v6534 = vmul.f32 %v6518, %v262
        %v6535 = vmul.f32 %v6519, %v263
        %v6536 = vmul.f32 %v6520, %v264
        %v6537 = vmul.f32 %v6521, %v265
        %6554 = vrot.lane.b32.xlu0 %v6522, 32
        %v6555 = vpop.permute.xlu0 %6554
        %6556 = vrot.lane.b32.xlu0 %v6523, 32
        %v6557 = vpop.permute.xlu0 %6556
        %6558 = vrot.lane.b32.xlu0 %v6524, 32
        %v6559 = vpop.permute.xlu0 %6558
        %6560 = vrot.lane.b32.xlu0 %v6525, 32
        %v6561 = vpop.permute.xlu0 %6560
        %6562 = vrot.lane.b32.xlu0 %v6526, 32
        %v6563 = vpop.permute.xlu0 %6562
        %6564 = vrot.lane.b32.xlu0 %v6527, 32
        %v6565 = vpop.permute.xlu0 %6564
        %6566 = vrot.lane.b32.xlu0 %v6528, 32
        %v6567 = vpop.permute.xlu0 %6566
        %6568 = vrot.lane.b32.xlu0 %v6529, 32
        %v6569 = vpop.permute.xlu0 %6568
        %6570 = vrot.lane.b32.xlu0 %v6530, 32
        %v6571 = vpop.permute.xlu0 %6570
        %6572 = vrot.lane.b32.xlu0 %v6531, 32
        %v6573 = vpop.permute.xlu0 %6572
        %6574 = vrot.lane.b32.xlu0 %v6532, 32
        %v6575 = vpop.permute.xlu0 %6574
        %6576 = vrot.lane.b32.xlu0 %v6533, 32
        %v6577 = vpop.permute.xlu0 %6576
        %6578 = vrot.lane.b32.xlu0 %v6534, 32
        %v6579 = vpop.permute.xlu0 %6578
        %6580 = vrot.lane.b32.xlu0 %v6535, 32
        %v6581 = vpop.permute.xlu0 %6580
        %6582 = vrot.lane.b32.xlu0 %v6536, 32
        %v6583 = vpop.permute.xlu0 %6582
        %6584 = vrot.lane.b32.xlu0 %v6537, 32
        %v6585 = vpop.permute.xlu0 %6584
        %vm6602 = vcmask 64512
        %v6603 = vsel %vm6602, %v5819, %v6555
        %v6604 = vsel %vm6602, %v5822, %v6557
        %v6605 = vsel %vm6602, %v5827, %v6559
        %v6606 = vsel %vm6602, %v5830, %v6561
        %v6607 = vsel %vm6602, %v5835, %v6563
        %v6608 = vsel %vm6602, %v5838, %v6565
        %v6609 = vsel %vm6602, %v5843, %v6567
        %v6610 = vsel %vm6602, %v5846, %v6569
        %v6611 = vsel %vm6602, %v5851, %v6571
        %v6612 = vsel %vm6602, %v5854, %v6573
        %v6613 = vsel %vm6602, %v5859, %v6575
        %v6614 = vsel %vm6602, %v5862, %v6577
        %v6615 = vsel %vm6602, %v5867, %v6579
        %v6616 = vsel %vm6602, %v5870, %v6581
        %v6617 = vsel %vm6602, %v5875, %v6583
        %v6618 = vsel %vm6602, %v5878, %v6585
        %vm6619 = vcmask 72704
        %v6620 = vsel %vm6619, %v6603, 0.0
        %v6621 = vsel %vm6619, %v6604, 0.0
        %v6622 = vsel %vm6619, %v6605, 0.0
        %v6623 = vsel %vm6619, %v6606, 0.0
        %v6624 = vsel %vm6619, %v6607, 0.0
        %v6625 = vsel %vm6619, %v6608, 0.0
        %v6626 = vsel %vm6619, %v6609, 0.0
        %v6627 = vsel %vm6619, %v6610, 0.0
        %v6628 = vsel %vm6619, %v6611, 0.0
        %v6629 = vsel %vm6619, %v6612, 0.0
        %v6630 = vsel %vm6619, %v6613, 0.0
        %v6631 = vsel %vm6619, %v6614, 0.0
        %v6632 = vsel %vm6619, %v6615, 0.0
        %v6633 = vsel %vm6619, %v6616, 0.0
        %v6634 = vsel %vm6619, %v6617, 0.0
        %v6635 = vsel %vm6619, %v6618, 0.0
        %vm6636 = vcmask 130048
        %6637 = vst.msk [vmem:[%s247] sm:$0xff] %vm6636, %v6620
        %6638 = vst.msk [vmem:[%s247 + $0x8] sm:$0xff] %vm6636, %v6621
        %6639 = vst.msk [vmem:[%s247 + $0x10] sm:$0xff] %vm6636, %v6622
        %6640 = vst.msk [vmem:[%s247 + $0x18] sm:$0xff] %vm6636, %v6623
        %6641 = vst.msk [vmem:[%s247 + $0x20] sm:$0xff] %vm6636, %v6624
        %6642 = vst.msk [vmem:[%s247 + $0x28] sm:$0xff] %vm6636, %v6625
        %6643 = vst.msk [vmem:[%s247 + $0x30] sm:$0xff] %vm6636, %v6626
        %6644 = vst.msk [vmem:[%s247 + $0x38] sm:$0xff] %vm6636, %v6627
        %6645 = vst.msk [vmem:[%s247 + $0x40] sm:$0xff] %vm6636, %v6628
        %6646 = vst.msk [vmem:[%s247 + $0x48] sm:$0xff] %vm6636, %v6629
        %6647 = vst.msk [vmem:[%s247 + $0x50] sm:$0xff] %vm6636, %v6630
        %6648 = vst.msk [vmem:[%s247 + $0x58] sm:$0xff] %vm6636, %v6631
        %6649 = vst.msk [vmem:[%s247 + $0x60] sm:$0xff] %vm6636, %v6632
        %6650 = vst.msk [vmem:[%s247 + $0x68] sm:$0xff] %vm6636, %v6633
        %6651 = vst.msk [vmem:[%s247 + $0x70] sm:$0xff] %vm6636, %v6634
        %6652 = vst.msk [vmem:[%s247 + $0x78] sm:$0xff] %vm6636, %v6635
        %s6653 = smul.u32 16, %s19
        %p6654 = scmp.lt.s32.totalorder %s6653, 31
        %s6655 = scalar_select %p6654, %s6653, 31
        %s6656 = smul.addr %s6655, 8
        %s6657 = scalar_lea.vmem %s4, %s6656
        // Predicated region
        $region49: #{tpu_custom_call.1} parent=35 // pred_check
          %p6658 = pneg %p126
        $region50: #{tpu_custom_call.1} parent=35 // pred_check_branch
          %6660 = sbr.rel (%p6658) target = $region52
        $region51: #{tpu_custom_call.1} parent=35 // pred_region
          %s6661 = smul.u32 16, %s19
        $region52: #{tpu_custom_call.1} parent=35 // pred_fallthru
          _
      $region36: #{tpu_custom_call.1} parent=5 // pred_fallthru
        _
      %p6662 = scmp.le.s32.totalorder 2, %s14
      // Predicated region
      $region53: #{tpu_custom_call.1} parent=5 // pred_check
        %p6663 = pneg %p6662
      $region54: #{tpu_custom_call.1} parent=5 // pred_check_branch
        %6665 = sbr.rel (%p6663) target = $region56
      $region55: #{tpu_custom_call.1} parent=5 // pred_region
        %s6666 = ssub.s32 %s14, 2
        // Predicated region
        $region57: #{tpu_custom_call.1} parent=55 // pred_check
          %p6667 = pneg %p132
        $region58: #{tpu_custom_call.1} parent=55 // pred_check_branch
          %6669 = sbr.rel (%p6667) target = $region60
        $region59: #{tpu_custom_call.1} parent=55 // pred_region
          %s6670 = smul.u32 16, %s20
          %p6671 = scmp.lt.s32.totalorder %s6670, 31
          %s6672 = scalar_select %p6671, %s6670, 31
          %s6673 = smul.addr %s6672, 8
          %s6674 = scalar_lea.vmem %s4, %s6673
        $region60: #{tpu_custom_call.1} parent=55 // pred_fallthru
          _
      $region56: #{tpu_custom_call.1} parent=5 // pred_fallthru
        _
    $region6: #{tpu_custom_call.1} parent=1 // loop_footer
      %s18 = sadd.s32 1, %s14
    $region7: #{tpu_custom_call.1} parent=1 // loop_footer_branch
      %13 = sbr.rel target = $region3
    $region8: #{tpu_custom_call.1} parent=1 // loop_exit
      _
    %6675 = vsyncpa [#allocation3], 1
    %s6676 = scalar_lea.sflag [#allocation3], 1
    %6677 = vsyncpa %s6676, 1
    %6678 = vsyncpa [#allocation5], 1

</llo_original>
